<compile_context>
chip_gen: v5e
topology: v5e:2x2
jax: 0.10.0
libtpu: 0.0.40
codegen_flags: <defaults>
</compile_context>

<pallas_src>
import numpy as np

import jax
import jax.numpy as jnp
from jax import lax
from jax.experimental import pallas as pl
from jax.experimental.pallas import tpu as pltpu

BN_EPS = 1e-5


# ---------------------------------------------------------------------------
# Trace-time helpers (all constant folding / layout prep, no runtime cost)
# ---------------------------------------------------------------------------
def _selection_matrices(ih, iw, kh, kw, stride):
    """sel[o, out_row, in_row] = 1 where offset o = ki*kw + kj gathers the input pixel
    feeding output position out_row.  Lets the kernel express conv patch extraction as
    tiny MXU matmuls (exact 0/1 gathers) instead of strided slices inside VMEM."""
    oh = (ih - kh) // stride + 1
    ow = (iw - kw) // stride + 1
    sel = np.zeros((kh * kw, oh * ow, ih * iw), np.float32)
    for ki in range(kh):
        for kj in range(kw):
            o = ki * kw + kj
            for i in range(oh):
                for j in range(ow):
                    sel[o, i * ow + j, (i * stride + ki) * iw + (j * stride + kj)] = 1.0
    return sel, oh, ow


def _fold_bn(conv_b, gamma, beta, mean, var):
    s = gamma / jnp.sqrt(var + BN_EPS)            # per-channel scale
    shift = beta + (conv_b - mean) * s            # conv bias folded in
    return s, shift


def _conv_weight(w, scale):
    """torch (Cout, Cin, KH, KW) -> (KH*KW, Cin, Cout) with the BN scale folded in."""
    cout, cin, kh, kw = w.shape
    return jnp.transpose(w, (2, 3, 1, 0)).reshape(kh * kw, cin, cout) * scale[None, None, :]


def _conv1_patches(x_nchw, kh, kw, stride):
    """im2col of the raw input only (done once, outside the kernel).
    Rows = (oh, ow) row-major; columns ordered (ki, kj, c) to match _conv_weight."""
    n, c, h, w = x_nchw.shape
    oh = (h - kh) // stride + 1
    ow = (w - kw) // stride + 1
    x = jnp.transpose(x_nchw, (0, 2, 3, 1))       # NHWC
    cols = [x[:, ki:ki + stride * (oh - 1) + 1:stride,
               kj:kj + stride * (ow - 1) + 1:stride, :]
            for ki in range(kh) for kj in range(kw)]
    p = jnp.concatenate(cols, axis=-1)            # (n, oh, ow, kh*kw*c)
    return p.reshape(n, oh * ow, kh * kw * c), oh, ow


# ---------------------------------------------------------------------------
# Fused Pallas kernel: one grid step == one sample, everything VMEM-resident.
# ---------------------------------------------------------------------------
def _dqnbn_kernel(p1_ref, w1_ref, sh1_ref,
                  sel2_ref, w2_ref, sh2_ref,
                  sel3_ref, w3_ref, sh3_ref,
                  wf1_ref, bf1_ref, wf2_ref, bf2_ref,
                  o_ref):
    f32, bf16 = jnp.float32, jnp.bfloat16

    # ---- conv1 + bn1 + relu : a single MXU matmul (/255 and BN scale folded in w1) ----
    x1 = jnp.dot(p1_ref[0], w1_ref[...], preferred_element_type=f32)
    x1 = jnp.maximum(x1 + sh1_ref[...], 0.0).astype(bf16)          # (R1, 32)

    # ---- conv2 + bn2 + relu : sum over kernel offsets of (gather-matmul @ weight) ----
    y2 = jnp.zeros((sel2_ref.shape[1], w2_ref.shape[2]), f32)
    for o in range(sel2_ref.shape[0]):
        t = jnp.dot(sel2_ref[o], x1, preferred_element_type=f32).astype(bf16)   # exact gather
        y2 = y2 + jnp.dot(t, w2_ref[o], preferred_element_type=f32)
    x2 = jnp.maximum(y2 + sh2_ref[...], 0.0).astype(bf16)          # (R2, 64)

    # ---- conv3 + bn3 + relu : same decomposition ----
    y3 = jnp.zeros((sel3_ref.shape[1], w3_ref.shape[2]), f32)
    for o in range(sel3_ref.shape[0]):
        t = jnp.dot(sel3_ref[o], x2, preferred_element_type=f32).astype(bf16)
        y3 = y3 + jnp.dot(t, w3_ref[o], preferred_element_type=f32)
    x3 = jnp.maximum(y3 + sh3_ref[...], 0.0).astype(bf16)          # (R3, 64)

    # ---- flatten + fc1 + relu (fc1 weight pre-permuted per conv3 spatial position) ----
    y4 = jnp.zeros((1, wf1_ref.shape[2]), f32)
    for r in range(wf1_ref.shape[0]):
        y4 = y4 + jnp.dot(x3[r:r + 1, :], wf1_ref[r], preferred_element_type=f32)
    x4 = jnp.maximum(y4 + bf1_ref[...], 0.0).astype(bf16)          # (1, 512)

    # ---- fc2 (weights zero-padded to 128 lanes -> dense, unmasked output store) ----
    y5 = jnp.dot(x4, wf2_ref[...], preferred_element_type=f32) + bf2_ref[...]
    o_ref[0] = jnp.broadcast_to(y5, o_ref.shape[1:])


# ---------------------------------------------------------------------------
# Forward pass wrapper
# ---------------------------------------------------------------------------
def dqnbn_forward(params, x_nchw):
    n, c, _, _ = x_nchw.shape
    x = x_nchw.astype(jnp.float32)                # torch: x.float(); /255 folded into w1

    # Only the raw input gets patch-extracted outside the kernel.
    p1, oh1, ow1 = _conv1_patches(x, 8, 8, 4)
    r1, k1 = oh1 * ow1, 8 * 8 * c

    sc1, sh1 = _fold_bn(params["conv1_b"], *params["bn1"])
    sc2, sh2 = _fold_bn(params["conv2_b"], *params["bn2"])
    sc3, sh3 = _fold_bn(params["conv3_b"], *params["bn3"])

    w1s = _conv_weight(params["conv1_w"], sc1 / 255.0).reshape(k1, 32)   # (K1, 32)
    w2s = _conv_weight(params["conv2_w"], sc2)                           # (16, 32, 64)
    w3s = _conv_weight(params["conv3_w"], sc3)                           # (9, 64, 64)

    sel2_np, oh2, ow2 = _selection_matrices(oh1, ow1, 4, 4, 2)
    sel3_np, oh3, ow3 = _selection_matrices(oh2, ow2, 3, 3, 1)
    r2, r3 = oh2 * ow2, oh3 * ow3

    # fc1: torch flatten order is (c, oh3, ow3) -> pre-permute weight to (r3, 64, 512).
    wf1 = jnp.transpose(params["fc1_w"].reshape(512, 64, r3), (2, 1, 0))
    bf1 = params["fc1_b"].reshape(1, 512)

    a = params["fc2_w"].shape[0]
    npad = 128 * ((a + 127) // 128)
    wf2 = jnp.zeros((512, npad), jnp.float32).at[:, :a].set(params["fc2_w"].T)
    bf2 = jnp.zeros((1, npad), jnp.float32).at[:, :a].set(params["fc2_b"][None, :])

    bf16, f32 = jnp.bfloat16, jnp.float32
    args = (
        p1.astype(bf16),
        w1s.astype(bf16), sh1.reshape(1, 32).astype(f32),
        jnp.asarray(sel2_np, bf16), w2s.astype(bf16), sh2.reshape(1, 64).astype(f32),
        jnp.asarray(sel3_np, bf16), w3s.astype(bf16), sh3.reshape(1, 64).astype(f32),
        wf1.astype(bf16), bf1.astype(f32),
        wf2.astype(bf16), bf2,
    )

    def full2(shape):
        return pl.BlockSpec(shape, lambda i: (0, 0))

    def full3(shape):
        return pl.BlockSpec(shape, lambda i: (0, 0, 0))

    in_specs = [
        pl.BlockSpec((1, r1, k1), lambda i: (i, 0, 0)),   # conv1 patches, per sample
        full2((k1, 32)), full2((1, 32)),
        full3((16, r2, r1)), full3((16, 32, 64)), full2((1, 64)),
        full3((9, r3, r2)), full3((9, 64, 64)), full2((1, 64)),
        full3((r3, 64, 512)), full2((1, 512)),
        full2((512, npad)), full2((1, npad)),
    ]

    out = pl.pallas_call(
        _dqnbn_kernel,
        out_shape=jax.ShapeDtypeStruct((n, 8, npad), jnp.float32),
        grid_spec=pltpu.PrefetchScalarGridSpec(
            num_scalar_prefetch=0,
            grid=(n,),
            in_specs=in_specs,
            out_specs=pl.BlockSpec((1, 8, npad), lambda i: (i, 0, 0)),
        ),
        compiler_params=pltpu.CompilerParams(
            dimension_semantics=("parallel",)),
    )(*args)

    return out[:, 0, :a]


# ----------------------- deterministic parameter init -----------------------
def init_params(key, obs_dim, action_dim):
    h, w, c = obs_dim
    oh1, ow1 = (h - 8) // 4 + 1, (w - 8) // 4 + 1
    oh2, ow2 = (oh1 - 4) // 2 + 1, (ow1 - 4) // 2 + 1
    oh3, ow3 = oh2 - 2, ow2 - 2
    conv_out = 64 * oh3 * ow3

    ks = iter(jax.random.split(key, 32))

    def uniform(k, shape, fan_in):
        bound = 1.0 / (fan_in ** 0.5)
        return jax.random.uniform(k, shape, jnp.float32, -bound, bound)

    def bn(cc):
        gamma = 1.0 + 0.05 * jax.random.normal(next(ks), (cc,), jnp.float32)
        beta = 0.05 * jax.random.normal(next(ks), (cc,), jnp.float32)
        mean = 0.1 * jax.random.normal(next(ks), (cc,), jnp.float32)
        var = 1.0 + 0.1 * jnp.abs(jax.random.normal(next(ks), (cc,), jnp.float32))
        return gamma, beta, mean, var

    return {
        "conv1_w": uniform(next(ks), (32, c, 8, 8), c * 64),
        "conv1_b": uniform(next(ks), (32,), c * 64),
        "bn1": bn(32),
        "conv2_w": uniform(next(ks), (64, 32, 4, 4), 32 * 16),
        "conv2_b": uniform(next(ks), (64,), 32 * 16),
        "bn2": bn(64),
        "conv3_w": uniform(next(ks), (64, 64, 3, 3), 64 * 9),
        "conv3_b": uniform(next(ks), (64,), 64 * 9),
        "bn3": bn(64),
        "fc1_w": uniform(next(ks), (512, conv_out), conv_out),
        "fc1_b": uniform(next(ks), (512,), conv_out),
        "fc2_w": uniform(next(ks), (action_dim, 512), 512),
        "fc2_b": uniform(next(ks), (action_dim,), 512),
    }


# ------------------------- pure-JAX reference check -------------------------
def reference_forward(params, x_nchw):
    x = x_nchw.astype(jnp.float32) / 255.0

    def conv_bn_relu(x, w, b, bn, stride):
        y = lax.conv_general_dilated(
            x, w, (stride, stride), "VALID",
            dimension_numbers=("NCHW", "OIHW", "NCHW"))
        y = y + b.reshape(1, -1, 1, 1)
        gamma, beta, mean, var = bn
        y = (y - mean.reshape(1, -1, 1, 1)) / jnp.sqrt(var.reshape(1, -1, 1, 1) + BN_EPS)
        y = y * gamma.reshape(1, -1, 1, 1) + beta.reshape(1, -1, 1, 1)
        return jnp.maximum(y, 0.0)

    x = conv_bn_relu(x, params["conv1_w"], params["conv1_b"], params["bn1"], 4)
    x = conv_bn_relu(x, params["conv2_w"], params["conv2_b"], params["bn2"], 2)
    x = conv_bn_relu(x, params["conv3_w"], params["conv3_b"], params["bn3"], 1)
    x = x.reshape(x.shape[0], -1)
    x = jnp.maximum(x @ params["fc1_w"].T + params["fc1_b"], 0.0)
    return x @ params["fc2_w"].T + params["fc2_b"]


if __name__ == "__main__":
    obs_dim = (36, 36, 4)    # (H, W, C): small spatial size that survives the 3 strided convs
    action_dim = 6
    batch = 2

    key = jax.random.PRNGKey(0)
    kx, kp = jax.random.split(key)
    params = init_params(kp, obs_dim, action_dim)
    x = jax.random.randint(kx, (batch, obs_dim[2], obs_dim[0], obs_dim[1]),
                           0, 256, dtype=jnp.int32).astype(jnp.float32)

    out = jax.block_until_ready(jax.jit(dqnbn_forward)(params, x))
    ref = reference_forward(params, x)

    assert out.shape == (batch, action_dim)
    # bf16 MXU inputs (f32 accumulation) vs. an all-f32 reference: tolerance loosened
    # accordingly (per review's correctness note).
    assert jnp.allclose(out, ref, rtol=5e-2, atol=5e-2), float(jnp.max(jnp.abs(out - ref)))
    print("KERNEL_OK")
</pallas_src>

<mosaic_0001>
module attributes {stable_mosaic.version = 11 : i64} {
  func.func @_dqnbn_kernel(%arg0: i32, %arg1: memref<1x64x256xbf16, #tpu.memory_space<vmem>>, %arg2: memref<256x32xbf16, #tpu.memory_space<vmem>>, %arg3: memref<1x32xf32, #tpu.memory_space<vmem>>, %arg4: memref<16x9x64xbf16, #tpu.memory_space<vmem>>, %arg5: memref<16x32x64xbf16, #tpu.memory_space<vmem>>, %arg6: memref<1x64xf32, #tpu.memory_space<vmem>>, %arg7: memref<9x1x9xbf16, #tpu.memory_space<vmem>>, %arg8: memref<9x64x64xbf16, #tpu.memory_space<vmem>>, %arg9: memref<1x64xf32, #tpu.memory_space<vmem>>, %arg10: memref<1x64x512xbf16, #tpu.memory_space<vmem>>, %arg11: memref<1x512xf32, #tpu.memory_space<vmem>>, %arg12: memref<512x128xbf16, #tpu.memory_space<vmem>>, %arg13: memref<1x128xf32, #tpu.memory_space<vmem>>, %arg14: memref<1x8x128xf32, #tpu.memory_space<vmem>>) attributes {dimension_semantics = [#tpu.dimension_semantics<parallel>], iteration_bounds = array<i64: 2>, scalar_prefetch = 0 : i64, scratch_operands = 0 : i64, tpu.core_type = #tpu.core_type<tc>, window_params = [{transform_indices = @transform_0, window_bounds = array<i64: 1, 64, 256>}, {pipeline_mode = #tpu.pipeline_mode<synchronous>, transform_indices = @transform_1, window_bounds = array<i64: 256, 32>}, {pipeline_mode = #tpu.pipeline_mode<synchronous>, transform_indices = @transform_2, window_bounds = array<i64: 1, 32>}, {pipeline_mode = #tpu.pipeline_mode<synchronous>, transform_indices = @transform_3, window_bounds = array<i64: 16, 9, 64>}, {pipeline_mode = #tpu.pipeline_mode<synchronous>, transform_indices = @transform_4, window_bounds = array<i64: 16, 32, 64>}, {pipeline_mode = #tpu.pipeline_mode<synchronous>, transform_indices = @transform_5, window_bounds = array<i64: 1, 64>}, {pipeline_mode = #tpu.pipeline_mode<synchronous>, transform_indices = @transform_6, window_bounds = array<i64: 9, 1, 9>}, {pipeline_mode = #tpu.pipeline_mode<synchronous>, transform_indices = @transform_7, window_bounds = array<i64: 9, 64, 64>}, {pipeline_mode = #tpu.pipeline_mode<synchronous>, transform_indices = @transform_8, window_bounds = array<i64: 1, 64>}, {pipeline_mode = #tpu.pipeline_mode<synchronous>, transform_indices = @transform_9, window_bounds = array<i64: 1, 64, 512>}, {pipeline_mode = #tpu.pipeline_mode<synchronous>, transform_indices = @transform_10, window_bounds = array<i64: 1, 512>}, {pipeline_mode = #tpu.pipeline_mode<synchronous>, transform_indices = @transform_11, window_bounds = array<i64: 512, 128>}, {pipeline_mode = #tpu.pipeline_mode<synchronous>, transform_indices = @transform_12, window_bounds = array<i64: 1, 128>}, {transform_indices = @transform_13, window_bounds = array<i64: 1, 8, 128>}]} {
    %c0 = arith.constant 0 : index
    %c0_0 = arith.constant 0 : index
    %c0_1 = arith.constant 0 : index
    %0 = vector.load %arg1[%c0, %c0_0, %c0_1] : memref<1x64x256xbf16, #tpu.memory_space<vmem>>, vector<1x64x256xbf16>
    %1 = vector.shape_cast %0 : vector<1x64x256xbf16> to vector<64x256xbf16>
    %c0_2 = arith.constant 0 : index
    %c0_3 = arith.constant 0 : index
    %2 = vector.load %arg2[%c0_2, %c0_3] : memref<256x32xbf16, #tpu.memory_space<vmem>>, vector<256x32xbf16>
    %cst = arith.constant dense<0.000000e+00> : vector<64x32xf32>
    %3 = tpu.matmul %1, %2, %cst {dimension_numbers = #tpu.dot_dimension_numbers<[1], [0], [0], [1], [0, 0, 1, 1], [], []>} : vector<64x256xbf16>, vector<256x32xbf16>, vector<64x32xf32> -> vector<64x32xf32>
    %c0_4 = arith.constant 0 : index
    %c0_5 = arith.constant 0 : index
    %4 = vector.load %arg3[%c0_4, %c0_5] : memref<1x32xf32, #tpu.memory_space<vmem>>, vector<1x32xf32>
    %5 = vector.broadcast %4 : vector<1x32xf32> to vector<64x32xf32>
    %6 = arith.addf %3, %5 : vector<64x32xf32>
    %cst_6 = arith.constant 0.000000e+00 : f32
    %7 = vector.broadcast %cst_6 : f32 to vector<64x32xf32>
    %8 = arith.maximumf %6, %7 : vector<64x32xf32>
    %9 = arith.truncf %8 : vector<64x32xf32> to vector<64x32xbf16>
    %cst_7 = arith.constant 0.000000e+00 : f32
    %10 = vector.broadcast %cst_7 : f32 to vector<9x64xf32>
    %c0_8 = arith.constant 0 : index
    %c0_9 = arith.constant 0 : index
    %c0_10 = arith.constant 0 : index
    %11 = vector.load %arg4[%c0_8, %c0_9, %c0_10] : memref<16x9x64xbf16, #tpu.memory_space<vmem>>, vector<1x9x64xbf16>
    %12 = vector.shape_cast %11 : vector<1x9x64xbf16> to vector<9x64xbf16>
    %cst_11 = arith.constant dense<0.000000e+00> : vector<9x32xf32>
    %13 = tpu.matmul %12, %9, %cst_11 {dimension_numbers = #tpu.dot_dimension_numbers<[1], [0], [0], [1], [0, 0, 1, 1], [], []>} : vector<9x64xbf16>, vector<64x32xbf16>, vector<9x32xf32> -> vector<9x32xf32>
    %14 = arith.truncf %13 : vector<9x32xf32> to vector<9x32xbf16>
    %c0_12 = arith.constant 0 : index
    %c0_13 = arith.constant 0 : index
    %c0_14 = arith.constant 0 : index
    %15 = vector.load %arg5[%c0_12, %c0_13, %c0_14] : memref<16x32x64xbf16, #tpu.memory_space<vmem>>, vector<1x32x64xbf16>
    %16 = vector.shape_cast %15 : vector<1x32x64xbf16> to vector<32x64xbf16>
    %cst_15 = arith.constant dense<0.000000e+00> : vector<9x64xf32>
    %17 = tpu.matmul %14, %16, %cst_15 {dimension_numbers = #tpu.dot_dimension_numbers<[1], [0], [0], [1], [0, 0, 1, 1], [], []>} : vector<9x32xbf16>, vector<32x64xbf16>, vector<9x64xf32> -> vector<9x64xf32>
    %18 = arith.addf %10, %17 : vector<9x64xf32>
    %c1 = arith.constant 1 : index
    %c0_16 = arith.constant 0 : index
    %c0_17 = arith.constant 0 : index
    %19 = vector.load %arg4[%c1, %c0_16, %c0_17] : memref<16x9x64xbf16, #tpu.memory_space<vmem>>, vector<1x9x64xbf16>
    %20 = vector.shape_cast %19 : vector<1x9x64xbf16> to vector<9x64xbf16>
    %cst_18 = arith.constant dense<0.000000e+00> : vector<9x32xf32>
    %21 = tpu.matmul %20, %9, %cst_18 {dimension_numbers = #tpu.dot_dimension_numbers<[1], [0], [0], [1], [0, 0, 1, 1], [], []>} : vector<9x64xbf16>, vector<64x32xbf16>, vector<9x32xf32> -> vector<9x32xf32>
    %22 = arith.truncf %21 : vector<9x32xf32> to vector<9x32xbf16>
    %c1_19 = arith.constant 1 : index
    %c0_20 = arith.constant 0 : index
    %c0_21 = arith.constant 0 : index
    %23 = vector.load %arg5[%c1_19, %c0_20, %c0_21] : memref<16x32x64xbf16, #tpu.memory_space<vmem>>, vector<1x32x64xbf16>
    %24 = vector.shape_cast %23 : vector<1x32x64xbf16> to vector<32x64xbf16>
    %cst_22 = arith.constant dense<0.000000e+00> : vector<9x64xf32>
    %25 = tpu.matmul %22, %24, %cst_22 {dimension_numbers = #tpu.dot_dimension_numbers<[1], [0], [0], [1], [0, 0, 1, 1], [], []>} : vector<9x32xbf16>, vector<32x64xbf16>, vector<9x64xf32> -> vector<9x64xf32>
    %26 = arith.addf %18, %25 : vector<9x64xf32>
    %c2 = arith.constant 2 : index
    %c0_23 = arith.constant 0 : index
    %c0_24 = arith.constant 0 : index
    %27 = vector.load %arg4[%c2, %c0_23, %c0_24] : memref<16x9x64xbf16, #tpu.memory_space<vmem>>, vector<1x9x64xbf16>
    %28 = vector.shape_cast %27 : vector<1x9x64xbf16> to vector<9x64xbf16>
    %cst_25 = arith.constant dense<0.000000e+00> : vector<9x32xf32>
    %29 = tpu.matmul %28, %9, %cst_25 {dimension_numbers = #tpu.dot_dimension_numbers<[1], [0], [0], [1], [0, 0, 1, 1], [], []>} : vector<9x64xbf16>, vector<64x32xbf16>, vector<9x32xf32> -> vector<9x32xf32>
    %30 = arith.truncf %29 : vector<9x32xf32> to vector<9x32xbf16>
    %c2_26 = arith.constant 2 : index
    %c0_27 = arith.constant 0 : index
    %c0_28 = arith.constant 0 : index
    %31 = vector.load %arg5[%c2_26, %c0_27, %c0_28] : memref<16x32x64xbf16, #tpu.memory_space<vmem>>, vector<1x32x64xbf16>
    %32 = vector.shape_cast %31 : vector<1x32x64xbf16> to vector<32x64xbf16>
    %cst_29 = arith.constant dense<0.000000e+00> : vector<9x64xf32>
    %33 = tpu.matmul %30, %32, %cst_29 {dimension_numbers = #tpu.dot_dimension_numbers<[1], [0], [0], [1], [0, 0, 1, 1], [], []>} : vector<9x32xbf16>, vector<32x64xbf16>, vector<9x64xf32> -> vector<9x64xf32>
    %34 = arith.addf %26, %33 : vector<9x64xf32>
    %c3 = arith.constant 3 : index
    %c0_30 = arith.constant 0 : index
    %c0_31 = arith.constant 0 : index
    %35 = vector.load %arg4[%c3, %c0_30, %c0_31] : memref<16x9x64xbf16, #tpu.memory_space<vmem>>, vector<1x9x64xbf16>
    %36 = vector.shape_cast %35 : vector<1x9x64xbf16> to vector<9x64xbf16>
    %cst_32 = arith.constant dense<0.000000e+00> : vector<9x32xf32>
    %37 = tpu.matmul %36, %9, %cst_32 {dimension_numbers = #tpu.dot_dimension_numbers<[1], [0], [0], [1], [0, 0, 1, 1], [], []>} : vector<9x64xbf16>, vector<64x32xbf16>, vector<9x32xf32> -> vector<9x32xf32>
    %38 = arith.truncf %37 : vector<9x32xf32> to vector<9x32xbf16>
    %c3_33 = arith.constant 3 : index
    %c0_34 = arith.constant 0 : index
    %c0_35 = arith.constant 0 : index
    %39 = vector.load %arg5[%c3_33, %c0_34, %c0_35] : memref<16x32x64xbf16, #tpu.memory_space<vmem>>, vector<1x32x64xbf16>
    %40 = vector.shape_cast %39 : vector<1x32x64xbf16> to vector<32x64xbf16>
    %cst_36 = arith.constant dense<0.000000e+00> : vector<9x64xf32>
    %41 = tpu.matmul %38, %40, %cst_36 {dimension_numbers = #tpu.dot_dimension_numbers<[1], [0], [0], [1], [0, 0, 1, 1], [], []>} : vector<9x32xbf16>, vector<32x64xbf16>, vector<9x64xf32> -> vector<9x64xf32>
    %42 = arith.addf %34, %41 : vector<9x64xf32>
    %c4 = arith.constant 4 : index
    %c0_37 = arith.constant 0 : index
    %c0_38 = arith.constant 0 : index
    %43 = vector.load %arg4[%c4, %c0_37, %c0_38] : memref<16x9x64xbf16, #tpu.memory_space<vmem>>, vector<1x9x64xbf16>
    %44 = vector.shape_cast %43 : vector<1x9x64xbf16> to vector<9x64xbf16>
    %cst_39 = arith.constant dense<0.000000e+00> : vector<9x32xf32>
    %45 = tpu.matmul %44, %9, %cst_39 {dimension_numbers = #tpu.dot_dimension_numbers<[1], [0], [0], [1], [0, 0, 1, 1], [], []>} : vector<9x64xbf16>, vector<64x32xbf16>, vector<9x32xf32> -> vector<9x32xf32>
    %46 = arith.truncf %45 : vector<9x32xf32> to vector<9x32xbf16>
    %c4_40 = arith.constant 4 : index
    %c0_41 = arith.constant 0 : index
    %c0_42 = arith.constant 0 : index
    %47 = vector.load %arg5[%c4_40, %c0_41, %c0_42] : memref<16x32x64xbf16, #tpu.memory_space<vmem>>, vector<1x32x64xbf16>
    %48 = vector.shape_cast %47 : vector<1x32x64xbf16> to vector<32x64xbf16>
    %cst_43 = arith.constant dense<0.000000e+00> : vector<9x64xf32>
    %49 = tpu.matmul %46, %48, %cst_43 {dimension_numbers = #tpu.dot_dimension_numbers<[1], [0], [0], [1], [0, 0, 1, 1], [], []>} : vector<9x32xbf16>, vector<32x64xbf16>, vector<9x64xf32> -> vector<9x64xf32>
    %50 = arith.addf %42, %49 : vector<9x64xf32>
    %c5 = arith.constant 5 : index
    %c0_44 = arith.constant 0 : index
    %c0_45 = arith.constant 0 : index
    %51 = vector.load %arg4[%c5, %c0_44, %c0_45] : memref<16x9x64xbf16, #tpu.memory_space<vmem>>, vector<1x9x64xbf16>
    %52 = vector.shape_cast %51 : vector<1x9x64xbf16> to vector<9x64xbf16>
    %cst_46 = arith.constant dense<0.000000e+00> : vector<9x32xf32>
    %53 = tpu.matmul %52, %9, %cst_46 {dimension_numbers = #tpu.dot_dimension_numbers<[1], [0], [0], [1], [0, 0, 1, 1], [], []>} : vector<9x64xbf16>, vector<64x32xbf16>, vector<9x32xf32> -> vector<9x32xf32>
    %54 = arith.truncf %53 : vector<9x32xf32> to vector<9x32xbf16>
    %c5_47 = arith.constant 5 : index
    %c0_48 = arith.constant 0 : index
    %c0_49 = arith.constant 0 : index
    %55 = vector.load %arg5[%c5_47, %c0_48, %c0_49] : memref<16x32x64xbf16, #tpu.memory_space<vmem>>, vector<1x32x64xbf16>
    %56 = vector.shape_cast %55 : vector<1x32x64xbf16> to vector<32x64xbf16>
    %cst_50 = arith.constant dense<0.000000e+00> : vector<9x64xf32>
    %57 = tpu.matmul %54, %56, %cst_50 {dimension_numbers = #tpu.dot_dimension_numbers<[1], [0], [0], [1], [0, 0, 1, 1], [], []>} : vector<9x32xbf16>, vector<32x64xbf16>, vector<9x64xf32> -> vector<9x64xf32>
    %58 = arith.addf %50, %57 : vector<9x64xf32>
    %c6 = arith.constant 6 : index
    %c0_51 = arith.constant 0 : index
    %c0_52 = arith.constant 0 : index
    %59 = vector.load %arg4[%c6, %c0_51, %c0_52] : memref<16x9x64xbf16, #tpu.memory_space<vmem>>, vector<1x9x64xbf16>
    %60 = vector.shape_cast %59 : vector<1x9x64xbf16> to vector<9x64xbf16>
    %cst_53 = arith.constant dense<0.000000e+00> : vector<9x32xf32>
    %61 = tpu.matmul %60, %9, %cst_53 {dimension_numbers = #tpu.dot_dimension_numbers<[1], [0], [0], [1], [0, 0, 1, 1], [], []>} : vector<9x64xbf16>, vector<64x32xbf16>, vector<9x32xf32> -> vector<9x32xf32>
    %62 = arith.truncf %61 : vector<9x32xf32> to vector<9x32xbf16>
    %c6_54 = arith.constant 6 : index
    %c0_55 = arith.constant 0 : index
    %c0_56 = arith.constant 0 : index
    %63 = vector.load %arg5[%c6_54, %c0_55, %c0_56] : memref<16x32x64xbf16, #tpu.memory_space<vmem>>, vector<1x32x64xbf16>
    %64 = vector.shape_cast %63 : vector<1x32x64xbf16> to vector<32x64xbf16>
    %cst_57 = arith.constant dense<0.000000e+00> : vector<9x64xf32>
    %65 = tpu.matmul %62, %64, %cst_57 {dimension_numbers = #tpu.dot_dimension_numbers<[1], [0], [0], [1], [0, 0, 1, 1], [], []>} : vector<9x32xbf16>, vector<32x64xbf16>, vector<9x64xf32> -> vector<9x64xf32>
    %66 = arith.addf %58, %65 : vector<9x64xf32>
    %c7 = arith.constant 7 : index
    %c0_58 = arith.constant 0 : index
    %c0_59 = arith.constant 0 : index
    %67 = vector.load %arg4[%c7, %c0_58, %c0_59] : memref<16x9x64xbf16, #tpu.memory_space<vmem>>, vector<1x9x64xbf16>
    %68 = vector.shape_cast %67 : vector<1x9x64xbf16> to vector<9x64xbf16>
    %cst_60 = arith.constant dense<0.000000e+00> : vector<9x32xf32>
    %69 = tpu.matmul %68, %9, %cst_60 {dimension_numbers = #tpu.dot_dimension_numbers<[1], [0], [0], [1], [0, 0, 1, 1], [], []>} : vector<9x64xbf16>, vector<64x32xbf16>, vector<9x32xf32> -> vector<9x32xf32>
    %70 = arith.truncf %69 : vector<9x32xf32> to vector<9x32xbf16>
    %c7_61 = arith.constant 7 : index
    %c0_62 = arith.constant 0 : index
    %c0_63 = arith.constant 0 : index
    %71 = vector.load %arg5[%c7_61, %c0_62, %c0_63] : memref<16x32x64xbf16, #tpu.memory_space<vmem>>, vector<1x32x64xbf16>
    %72 = vector.shape_cast %71 : vector<1x32x64xbf16> to vector<32x64xbf16>
    %cst_64 = arith.constant dense<0.000000e+00> : vector<9x64xf32>
    %73 = tpu.matmul %70, %72, %cst_64 {dimension_numbers = #tpu.dot_dimension_numbers<[1], [0], [0], [1], [0, 0, 1, 1], [], []>} : vector<9x32xbf16>, vector<32x64xbf16>, vector<9x64xf32> -> vector<9x64xf32>
    %74 = arith.addf %66, %73 : vector<9x64xf32>
    %c8 = arith.constant 8 : index
    %c0_65 = arith.constant 0 : index
    %c0_66 = arith.constant 0 : index
    %75 = vector.load %arg4[%c8, %c0_65, %c0_66] : memref<16x9x64xbf16, #tpu.memory_space<vmem>>, vector<1x9x64xbf16>
    %76 = vector.shape_cast %75 : vector<1x9x64xbf16> to vector<9x64xbf16>
    %cst_67 = arith.constant dense<0.000000e+00> : vector<9x32xf32>
    %77 = tpu.matmul %76, %9, %cst_67 {dimension_numbers = #tpu.dot_dimension_numbers<[1], [0], [0], [1], [0, 0, 1, 1], [], []>} : vector<9x64xbf16>, vector<64x32xbf16>, vector<9x32xf32> -> vector<9x32xf32>
    %78 = arith.truncf %77 : vector<9x32xf32> to vector<9x32xbf16>
    %c8_68 = arith.constant 8 : index
    %c0_69 = arith.constant 0 : index
    %c0_70 = arith.constant 0 : index
    %79 = vector.load %arg5[%c8_68, %c0_69, %c0_70] : memref<16x32x64xbf16, #tpu.memory_space<vmem>>, vector<1x32x64xbf16>
    %80 = vector.shape_cast %79 : vector<1x32x64xbf16> to vector<32x64xbf16>
    %cst_71 = arith.constant dense<0.000000e+00> : vector<9x64xf32>
    %81 = tpu.matmul %78, %80, %cst_71 {dimension_numbers = #tpu.dot_dimension_numbers<[1], [0], [0], [1], [0, 0, 1, 1], [], []>} : vector<9x32xbf16>, vector<32x64xbf16>, vector<9x64xf32> -> vector<9x64xf32>
    %82 = arith.addf %74, %81 : vector<9x64xf32>
    %c9 = arith.constant 9 : index
    %c0_72 = arith.constant 0 : index
    %c0_73 = arith.constant 0 : index
    %83 = vector.load %arg4[%c9, %c0_72, %c0_73] : memref<16x9x64xbf16, #tpu.memory_space<vmem>>, vector<1x9x64xbf16>
    %84 = vector.shape_cast %83 : vector<1x9x64xbf16> to vector<9x64xbf16>
    %cst_74 = arith.constant dense<0.000000e+00> : vector<9x32xf32>
    %85 = tpu.matmul %84, %9, %cst_74 {dimension_numbers = #tpu.dot_dimension_numbers<[1], [0], [0], [1], [0, 0, 1, 1], [], []>} : vector<9x64xbf16>, vector<64x32xbf16>, vector<9x32xf32> -> vector<9x32xf32>
    %86 = arith.truncf %85 : vector<9x32xf32> to vector<9x32xbf16>
    %c9_75 = arith.constant 9 : index
    %c0_76 = arith.constant 0 : index
    %c0_77 = arith.constant 0 : index
    %87 = vector.load %arg5[%c9_75, %c0_76, %c0_77] : memref<16x32x64xbf16, #tpu.memory_space<vmem>>, vector<1x32x64xbf16>
    %88 = vector.shape_cast %87 : vector<1x32x64xbf16> to vector<32x64xbf16>
    %cst_78 = arith.constant dense<0.000000e+00> : vector<9x64xf32>
    %89 = tpu.matmul %86, %88, %cst_78 {dimension_numbers = #tpu.dot_dimension_numbers<[1], [0], [0], [1], [0, 0, 1, 1], [], []>} : vector<9x32xbf16>, vector<32x64xbf16>, vector<9x64xf32> -> vector<9x64xf32>
    %90 = arith.addf %82, %89 : vector<9x64xf32>
    %c10 = arith.constant 10 : index
    %c0_79 = arith.constant 0 : index
    %c0_80 = arith.constant 0 : index
    %91 = vector.load %arg4[%c10, %c0_79, %c0_80] : memref<16x9x64xbf16, #tpu.memory_space<vmem>>, vector<1x9x64xbf16>
    %92 = vector.shape_cast %91 : vector<1x9x64xbf16> to vector<9x64xbf16>
    %cst_81 = arith.constant dense<0.000000e+00> : vector<9x32xf32>
    %93 = tpu.matmul %92, %9, %cst_81 {dimension_numbers = #tpu.dot_dimension_numbers<[1], [0], [0], [1], [0, 0, 1, 1], [], []>} : vector<9x64xbf16>, vector<64x32xbf16>, vector<9x32xf32> -> vector<9x32xf32>
    %94 = arith.truncf %93 : vector<9x32xf32> to vector<9x32xbf16>
    %c10_82 = arith.constant 10 : index
    %c0_83 = arith.constant 0 : index
    %c0_84 = arith.constant 0 : index
    %95 = vector.load %arg5[%c10_82, %c0_83, %c0_84] : memref<16x32x64xbf16, #tpu.memory_space<vmem>>, vector<1x32x64xbf16>
    %96 = vector.shape_cast %95 : vector<1x32x64xbf16> to vector<32x64xbf16>
    %cst_85 = arith.constant dense<0.000000e+00> : vector<9x64xf32>
    %97 = tpu.matmul %94, %96, %cst_85 {dimension_numbers = #tpu.dot_dimension_numbers<[1], [0], [0], [1], [0, 0, 1, 1], [], []>} : vector<9x32xbf16>, vector<32x64xbf16>, vector<9x64xf32> -> vector<9x64xf32>
    %98 = arith.addf %90, %97 : vector<9x64xf32>
    %c11 = arith.constant 11 : index
    %c0_86 = arith.constant 0 : index
    %c0_87 = arith.constant 0 : index
    %99 = vector.load %arg4[%c11, %c0_86, %c0_87] : memref<16x9x64xbf16, #tpu.memory_space<vmem>>, vector<1x9x64xbf16>
    %100 = vector.shape_cast %99 : vector<1x9x64xbf16> to vector<9x64xbf16>
    %cst_88 = arith.constant dense<0.000000e+00> : vector<9x32xf32>
    %101 = tpu.matmul %100, %9, %cst_88 {dimension_numbers = #tpu.dot_dimension_numbers<[1], [0], [0], [1], [0, 0, 1, 1], [], []>} : vector<9x64xbf16>, vector<64x32xbf16>, vector<9x32xf32> -> vector<9x32xf32>
    %102 = arith.truncf %101 : vector<9x32xf32> to vector<9x32xbf16>
    %c11_89 = arith.constant 11 : index
    %c0_90 = arith.constant 0 : index
    %c0_91 = arith.constant 0 : index
    %103 = vector.load %arg5[%c11_89, %c0_90, %c0_91] : memref<16x32x64xbf16, #tpu.memory_space<vmem>>, vector<1x32x64xbf16>
    %104 = vector.shape_cast %103 : vector<1x32x64xbf16> to vector<32x64xbf16>
    %cst_92 = arith.constant dense<0.000000e+00> : vector<9x64xf32>
    %105 = tpu.matmul %102, %104, %cst_92 {dimension_numbers = #tpu.dot_dimension_numbers<[1], [0], [0], [1], [0, 0, 1, 1], [], []>} : vector<9x32xbf16>, vector<32x64xbf16>, vector<9x64xf32> -> vector<9x64xf32>
    %106 = arith.addf %98, %105 : vector<9x64xf32>
    %c12 = arith.constant 12 : index
    %c0_93 = arith.constant 0 : index
    %c0_94 = arith.constant 0 : index
    %107 = vector.load %arg4[%c12, %c0_93, %c0_94] : memref<16x9x64xbf16, #tpu.memory_space<vmem>>, vector<1x9x64xbf16>
    %108 = vector.shape_cast %107 : vector<1x9x64xbf16> to vector<9x64xbf16>
    %cst_95 = arith.constant dense<0.000000e+00> : vector<9x32xf32>
    %109 = tpu.matmul %108, %9, %cst_95 {dimension_numbers = #tpu.dot_dimension_numbers<[1], [0], [0], [1], [0, 0, 1, 1], [], []>} : vector<9x64xbf16>, vector<64x32xbf16>, vector<9x32xf32> -> vector<9x32xf32>
    %110 = arith.truncf %109 : vector<9x32xf32> to vector<9x32xbf16>
    %c12_96 = arith.constant 12 : index
    %c0_97 = arith.constant 0 : index
    %c0_98 = arith.constant 0 : index
    %111 = vector.load %arg5[%c12_96, %c0_97, %c0_98] : memref<16x32x64xbf16, #tpu.memory_space<vmem>>, vector<1x32x64xbf16>
    %112 = vector.shape_cast %111 : vector<1x32x64xbf16> to vector<32x64xbf16>
    %cst_99 = arith.constant dense<0.000000e+00> : vector<9x64xf32>
    %113 = tpu.matmul %110, %112, %cst_99 {dimension_numbers = #tpu.dot_dimension_numbers<[1], [0], [0], [1], [0, 0, 1, 1], [], []>} : vector<9x32xbf16>, vector<32x64xbf16>, vector<9x64xf32> -> vector<9x64xf32>
    %114 = arith.addf %106, %113 : vector<9x64xf32>
    %c13 = arith.constant 13 : index
    %c0_100 = arith.constant 0 : index
    %c0_101 = arith.constant 0 : index
    %115 = vector.load %arg4[%c13, %c0_100, %c0_101] : memref<16x9x64xbf16, #tpu.memory_space<vmem>>, vector<1x9x64xbf16>
    %116 = vector.shape_cast %115 : vector<1x9x64xbf16> to vector<9x64xbf16>
    %cst_102 = arith.constant dense<0.000000e+00> : vector<9x32xf32>
    %117 = tpu.matmul %116, %9, %cst_102 {dimension_numbers = #tpu.dot_dimension_numbers<[1], [0], [0], [1], [0, 0, 1, 1], [], []>} : vector<9x64xbf16>, vector<64x32xbf16>, vector<9x32xf32> -> vector<9x32xf32>
    %118 = arith.truncf %117 : vector<9x32xf32> to vector<9x32xbf16>
    %c13_103 = arith.constant 13 : index
    %c0_104 = arith.constant 0 : index
    %c0_105 = arith.constant 0 : index
    %119 = vector.load %arg5[%c13_103, %c0_104, %c0_105] : memref<16x32x64xbf16, #tpu.memory_space<vmem>>, vector<1x32x64xbf16>
    %120 = vector.shape_cast %119 : vector<1x32x64xbf16> to vector<32x64xbf16>
    %cst_106 = arith.constant dense<0.000000e+00> : vector<9x64xf32>
    %121 = tpu.matmul %118, %120, %cst_106 {dimension_numbers = #tpu.dot_dimension_numbers<[1], [0], [0], [1], [0, 0, 1, 1], [], []>} : vector<9x32xbf16>, vector<32x64xbf16>, vector<9x64xf32> -> vector<9x64xf32>
    %122 = arith.addf %114, %121 : vector<9x64xf32>
    %c14 = arith.constant 14 : index
    %c0_107 = arith.constant 0 : index
    %c0_108 = arith.constant 0 : index
    %123 = vector.load %arg4[%c14, %c0_107, %c0_108] : memref<16x9x64xbf16, #tpu.memory_space<vmem>>, vector<1x9x64xbf16>
    %124 = vector.shape_cast %123 : vector<1x9x64xbf16> to vector<9x64xbf16>
    %cst_109 = arith.constant dense<0.000000e+00> : vector<9x32xf32>
    %125 = tpu.matmul %124, %9, %cst_109 {dimension_numbers = #tpu.dot_dimension_numbers<[1], [0], [0], [1], [0, 0, 1, 1], [], []>} : vector<9x64xbf16>, vector<64x32xbf16>, vector<9x32xf32> -> vector<9x32xf32>
    %126 = arith.truncf %125 : vector<9x32xf32> to vector<9x32xbf16>
    %c14_110 = arith.constant 14 : index
    %c0_111 = arith.constant 0 : index
    %c0_112 = arith.constant 0 : index
    %127 = vector.load %arg5[%c14_110, %c0_111, %c0_112] : memref<16x32x64xbf16, #tpu.memory_space<vmem>>, vector<1x32x64xbf16>
    %128 = vector.shape_cast %127 : vector<1x32x64xbf16> to vector<32x64xbf16>
    %cst_113 = arith.constant dense<0.000000e+00> : vector<9x64xf32>
    %129 = tpu.matmul %126, %128, %cst_113 {dimension_numbers = #tpu.dot_dimension_numbers<[1], [0], [0], [1], [0, 0, 1, 1], [], []>} : vector<9x32xbf16>, vector<32x64xbf16>, vector<9x64xf32> -> vector<9x64xf32>
    %130 = arith.addf %122, %129 : vector<9x64xf32>
    %c15 = arith.constant 15 : index
    %c0_114 = arith.constant 0 : index
    %c0_115 = arith.constant 0 : index
    %131 = vector.load %arg4[%c15, %c0_114, %c0_115] : memref<16x9x64xbf16, #tpu.memory_space<vmem>>, vector<1x9x64xbf16>
    %132 = vector.shape_cast %131 : vector<1x9x64xbf16> to vector<9x64xbf16>
    %cst_116 = arith.constant dense<0.000000e+00> : vector<9x32xf32>
    %133 = tpu.matmul %132, %9, %cst_116 {dimension_numbers = #tpu.dot_dimension_numbers<[1], [0], [0], [1], [0, 0, 1, 1], [], []>} : vector<9x64xbf16>, vector<64x32xbf16>, vector<9x32xf32> -> vector<9x32xf32>
    %134 = arith.truncf %133 : vector<9x32xf32> to vector<9x32xbf16>
    %c15_117 = arith.constant 15 : index
    %c0_118 = arith.constant 0 : index
    %c0_119 = arith.constant 0 : index
    %135 = vector.load %arg5[%c15_117, %c0_118, %c0_119] : memref<16x32x64xbf16, #tpu.memory_space<vmem>>, vector<1x32x64xbf16>
    %136 = vector.shape_cast %135 : vector<1x32x64xbf16> to vector<32x64xbf16>
    %cst_120 = arith.constant dense<0.000000e+00> : vector<9x64xf32>
    %137 = tpu.matmul %134, %136, %cst_120 {dimension_numbers = #tpu.dot_dimension_numbers<[1], [0], [0], [1], [0, 0, 1, 1], [], []>} : vector<9x32xbf16>, vector<32x64xbf16>, vector<9x64xf32> -> vector<9x64xf32>
    %138 = arith.addf %130, %137 : vector<9x64xf32>
    %c0_121 = arith.constant 0 : index
    %c0_122 = arith.constant 0 : index
    %139 = vector.load %arg6[%c0_121, %c0_122] : memref<1x64xf32, #tpu.memory_space<vmem>>, vector<1x64xf32>
    %140 = vector.broadcast %139 : vector<1x64xf32> to vector<9x64xf32>
    %141 = arith.addf %138, %140 : vector<9x64xf32>
    %cst_123 = arith.constant 0.000000e+00 : f32
    %142 = vector.broadcast %cst_123 : f32 to vector<9x64xf32>
    %143 = arith.maximumf %141, %142 : vector<9x64xf32>
    %144 = arith.truncf %143 : vector<9x64xf32> to vector<9x64xbf16>
    %cst_124 = arith.constant 0.000000e+00 : f32
    %145 = vector.broadcast %cst_124 : f32 to vector<1x64xf32>
    %c0_125 = arith.constant 0 : index
    %c0_126 = arith.constant 0 : index
    %c0_127 = arith.constant 0 : index
    %146 = vector.load %arg7[%c0_125, %c0_126, %c0_127] : memref<9x1x9xbf16, #tpu.memory_space<vmem>>, vector<1x1x9xbf16>
    %147 = vector.shape_cast %146 : vector<1x1x9xbf16> to vector<1x9xbf16>
    %cst_128 = arith.constant dense<0.000000e+00> : vector<1x64xf32>
    %148 = tpu.matmul %147, %144, %cst_128 {dimension_numbers = #tpu.dot_dimension_numbers<[1], [0], [0], [1], [0, 0, 1, 1], [], []>} : vector<1x9xbf16>, vector<9x64xbf16>, vector<1x64xf32> -> vector<1x64xf32>
    %149 = arith.truncf %148 : vector<1x64xf32> to vector<1x64xbf16>
    %c0_129 = arith.constant 0 : index
    %c0_130 = arith.constant 0 : index
    %c0_131 = arith.constant 0 : index
    %150 = vector.load %arg8[%c0_129, %c0_130, %c0_131] : memref<9x64x64xbf16, #tpu.memory_space<vmem>>, vector<1x64x64xbf16>
    %151 = vector.shape_cast %150 : vector<1x64x64xbf16> to vector<64x64xbf16>
    %cst_132 = arith.constant dense<0.000000e+00> : vector<1x64xf32>
    %152 = tpu.matmul %149, %151, %cst_132 {dimension_numbers = #tpu.dot_dimension_numbers<[1], [0], [0], [1], [0, 0, 1, 1], [], []>} : vector<1x64xbf16>, vector<64x64xbf16>, vector<1x64xf32> -> vector<1x64xf32>
    %153 = arith.addf %145, %152 : vector<1x64xf32>
    %c1_133 = arith.constant 1 : index
    %c0_134 = arith.constant 0 : index
    %c0_135 = arith.constant 0 : index
    %154 = vector.load %arg7[%c1_133, %c0_134, %c0_135] : memref<9x1x9xbf16, #tpu.memory_space<vmem>>, vector<1x1x9xbf16>
    %155 = vector.shape_cast %154 : vector<1x1x9xbf16> to vector<1x9xbf16>
    %cst_136 = arith.constant dense<0.000000e+00> : vector<1x64xf32>
    %156 = tpu.matmul %155, %144, %cst_136 {dimension_numbers = #tpu.dot_dimension_numbers<[1], [0], [0], [1], [0, 0, 1, 1], [], []>} : vector<1x9xbf16>, vector<9x64xbf16>, vector<1x64xf32> -> vector<1x64xf32>
    %157 = arith.truncf %156 : vector<1x64xf32> to vector<1x64xbf16>
    %c1_137 = arith.constant 1 : index
    %c0_138 = arith.constant 0 : index
    %c0_139 = arith.constant 0 : index
    %158 = vector.load %arg8[%c1_137, %c0_138, %c0_139] : memref<9x64x64xbf16, #tpu.memory_space<vmem>>, vector<1x64x64xbf16>
    %159 = vector.shape_cast %158 : vector<1x64x64xbf16> to vector<64x64xbf16>
    %cst_140 = arith.constant dense<0.000000e+00> : vector<1x64xf32>
    %160 = tpu.matmul %157, %159, %cst_140 {dimension_numbers = #tpu.dot_dimension_numbers<[1], [0], [0], [1], [0, 0, 1, 1], [], []>} : vector<1x64xbf16>, vector<64x64xbf16>, vector<1x64xf32> -> vector<1x64xf32>
    %161 = arith.addf %153, %160 : vector<1x64xf32>
    %c2_141 = arith.constant 2 : index
    %c0_142 = arith.constant 0 : index
    %c0_143 = arith.constant 0 : index
    %162 = vector.load %arg7[%c2_141, %c0_142, %c0_143] : memref<9x1x9xbf16, #tpu.memory_space<vmem>>, vector<1x1x9xbf16>
    %163 = vector.shape_cast %162 : vector<1x1x9xbf16> to vector<1x9xbf16>
    %cst_144 = arith.constant dense<0.000000e+00> : vector<1x64xf32>
    %164 = tpu.matmul %163, %144, %cst_144 {dimension_numbers = #tpu.dot_dimension_numbers<[1], [0], [0], [1], [0, 0, 1, 1], [], []>} : vector<1x9xbf16>, vector<9x64xbf16>, vector<1x64xf32> -> vector<1x64xf32>
    %165 = arith.truncf %164 : vector<1x64xf32> to vector<1x64xbf16>
    %c2_145 = arith.constant 2 : index
    %c0_146 = arith.constant 0 : index
    %c0_147 = arith.constant 0 : index
    %166 = vector.load %arg8[%c2_145, %c0_146, %c0_147] : memref<9x64x64xbf16, #tpu.memory_space<vmem>>, vector<1x64x64xbf16>
    %167 = vector.shape_cast %166 : vector<1x64x64xbf16> to vector<64x64xbf16>
    %cst_148 = arith.constant dense<0.000000e+00> : vector<1x64xf32>
    %168 = tpu.matmul %165, %167, %cst_148 {dimension_numbers = #tpu.dot_dimension_numbers<[1], [0], [0], [1], [0, 0, 1, 1], [], []>} : vector<1x64xbf16>, vector<64x64xbf16>, vector<1x64xf32> -> vector<1x64xf32>
    %169 = arith.addf %161, %168 : vector<1x64xf32>
    %c3_149 = arith.constant 3 : index
    %c0_150 = arith.constant 0 : index
    %c0_151 = arith.constant 0 : index
    %170 = vector.load %arg7[%c3_149, %c0_150, %c0_151] : memref<9x1x9xbf16, #tpu.memory_space<vmem>>, vector<1x1x9xbf16>
    %171 = vector.shape_cast %170 : vector<1x1x9xbf16> to vector<1x9xbf16>
    %cst_152 = arith.constant dense<0.000000e+00> : vector<1x64xf32>
    %172 = tpu.matmul %171, %144, %cst_152 {dimension_numbers = #tpu.dot_dimension_numbers<[1], [0], [0], [1], [0, 0, 1, 1], [], []>} : vector<1x9xbf16>, vector<9x64xbf16>, vector<1x64xf32> -> vector<1x64xf32>
    %173 = arith.truncf %172 : vector<1x64xf32> to vector<1x64xbf16>
    %c3_153 = arith.constant 3 : index
    %c0_154 = arith.constant 0 : index
    %c0_155 = arith.constant 0 : index
    %174 = vector.load %arg8[%c3_153, %c0_154, %c0_155] : memref<9x64x64xbf16, #tpu.memory_space<vmem>>, vector<1x64x64xbf16>
    %175 = vector.shape_cast %174 : vector<1x64x64xbf16> to vector<64x64xbf16>
    %cst_156 = arith.constant dense<0.000000e+00> : vector<1x64xf32>
    %176 = tpu.matmul %173, %175, %cst_156 {dimension_numbers = #tpu.dot_dimension_numbers<[1], [0], [0], [1], [0, 0, 1, 1], [], []>} : vector<1x64xbf16>, vector<64x64xbf16>, vector<1x64xf32> -> vector<1x64xf32>
    %177 = arith.addf %169, %176 : vector<1x64xf32>
    %c4_157 = arith.constant 4 : index
    %c0_158 = arith.constant 0 : index
    %c0_159 = arith.constant 0 : index
    %178 = vector.load %arg7[%c4_157, %c0_158, %c0_159] : memref<9x1x9xbf16, #tpu.memory_space<vmem>>, vector<1x1x9xbf16>
    %179 = vector.shape_cast %178 : vector<1x1x9xbf16> to vector<1x9xbf16>
    %cst_160 = arith.constant dense<0.000000e+00> : vector<1x64xf32>
    %180 = tpu.matmul %179, %144, %cst_160 {dimension_numbers = #tpu.dot_dimension_numbers<[1], [0], [0], [1], [0, 0, 1, 1], [], []>} : vector<1x9xbf16>, vector<9x64xbf16>, vector<1x64xf32> -> vector<1x64xf32>
    %181 = arith.truncf %180 : vector<1x64xf32> to vector<1x64xbf16>
    %c4_161 = arith.constant 4 : index
    %c0_162 = arith.constant 0 : index
    %c0_163 = arith.constant 0 : index
    %182 = vector.load %arg8[%c4_161, %c0_162, %c0_163] : memref<9x64x64xbf16, #tpu.memory_space<vmem>>, vector<1x64x64xbf16>
    %183 = vector.shape_cast %182 : vector<1x64x64xbf16> to vector<64x64xbf16>
    %cst_164 = arith.constant dense<0.000000e+00> : vector<1x64xf32>
    %184 = tpu.matmul %181, %183, %cst_164 {dimension_numbers = #tpu.dot_dimension_numbers<[1], [0], [0], [1], [0, 0, 1, 1], [], []>} : vector<1x64xbf16>, vector<64x64xbf16>, vector<1x64xf32> -> vector<1x64xf32>
    %185 = arith.addf %177, %184 : vector<1x64xf32>
    %c5_165 = arith.constant 5 : index
    %c0_166 = arith.constant 0 : index
    %c0_167 = arith.constant 0 : index
    %186 = vector.load %arg7[%c5_165, %c0_166, %c0_167] : memref<9x1x9xbf16, #tpu.memory_space<vmem>>, vector<1x1x9xbf16>
    %187 = vector.shape_cast %186 : vector<1x1x9xbf16> to vector<1x9xbf16>
    %cst_168 = arith.constant dense<0.000000e+00> : vector<1x64xf32>
    %188 = tpu.matmul %187, %144, %cst_168 {dimension_numbers = #tpu.dot_dimension_numbers<[1], [0], [0], [1], [0, 0, 1, 1], [], []>} : vector<1x9xbf16>, vector<9x64xbf16>, vector<1x64xf32> -> vector<1x64xf32>
    %189 = arith.truncf %188 : vector<1x64xf32> to vector<1x64xbf16>
    %c5_169 = arith.constant 5 : index
    %c0_170 = arith.constant 0 : index
    %c0_171 = arith.constant 0 : index
    %190 = vector.load %arg8[%c5_169, %c0_170, %c0_171] : memref<9x64x64xbf16, #tpu.memory_space<vmem>>, vector<1x64x64xbf16>
    %191 = vector.shape_cast %190 : vector<1x64x64xbf16> to vector<64x64xbf16>
    %cst_172 = arith.constant dense<0.000000e+00> : vector<1x64xf32>
    %192 = tpu.matmul %189, %191, %cst_172 {dimension_numbers = #tpu.dot_dimension_numbers<[1], [0], [0], [1], [0, 0, 1, 1], [], []>} : vector<1x64xbf16>, vector<64x64xbf16>, vector<1x64xf32> -> vector<1x64xf32>
    %193 = arith.addf %185, %192 : vector<1x64xf32>
    %c6_173 = arith.constant 6 : index
    %c0_174 = arith.constant 0 : index
    %c0_175 = arith.constant 0 : index
    %194 = vector.load %arg7[%c6_173, %c0_174, %c0_175] : memref<9x1x9xbf16, #tpu.memory_space<vmem>>, vector<1x1x9xbf16>
    %195 = vector.shape_cast %194 : vector<1x1x9xbf16> to vector<1x9xbf16>
    %cst_176 = arith.constant dense<0.000000e+00> : vector<1x64xf32>
    %196 = tpu.matmul %195, %144, %cst_176 {dimension_numbers = #tpu.dot_dimension_numbers<[1], [0], [0], [1], [0, 0, 1, 1], [], []>} : vector<1x9xbf16>, vector<9x64xbf16>, vector<1x64xf32> -> vector<1x64xf32>
    %197 = arith.truncf %196 : vector<1x64xf32> to vector<1x64xbf16>
    %c6_177 = arith.constant 6 : index
    %c0_178 = arith.constant 0 : index
    %c0_179 = arith.constant 0 : index
    %198 = vector.load %arg8[%c6_177, %c0_178, %c0_179] : memref<9x64x64xbf16, #tpu.memory_space<vmem>>, vector<1x64x64xbf16>
    %199 = vector.shape_cast %198 : vector<1x64x64xbf16> to vector<64x64xbf16>
    %cst_180 = arith.constant dense<0.000000e+00> : vector<1x64xf32>
    %200 = tpu.matmul %197, %199, %cst_180 {dimension_numbers = #tpu.dot_dimension_numbers<[1], [0], [0], [1], [0, 0, 1, 1], [], []>} : vector<1x64xbf16>, vector<64x64xbf16>, vector<1x64xf32> -> vector<1x64xf32>
    %201 = arith.addf %193, %200 : vector<1x64xf32>
    %c7_181 = arith.constant 7 : index
    %c0_182 = arith.constant 0 : index
    %c0_183 = arith.constant 0 : index
    %202 = vector.load %arg7[%c7_181, %c0_182, %c0_183] : memref<9x1x9xbf16, #tpu.memory_space<vmem>>, vector<1x1x9xbf16>
    %203 = vector.shape_cast %202 : vector<1x1x9xbf16> to vector<1x9xbf16>
    %cst_184 = arith.constant dense<0.000000e+00> : vector<1x64xf32>
    %204 = tpu.matmul %203, %144, %cst_184 {dimension_numbers = #tpu.dot_dimension_numbers<[1], [0], [0], [1], [0, 0, 1, 1], [], []>} : vector<1x9xbf16>, vector<9x64xbf16>, vector<1x64xf32> -> vector<1x64xf32>
    %205 = arith.truncf %204 : vector<1x64xf32> to vector<1x64xbf16>
    %c7_185 = arith.constant 7 : index
    %c0_186 = arith.constant 0 : index
    %c0_187 = arith.constant 0 : index
    %206 = vector.load %arg8[%c7_185, %c0_186, %c0_187] : memref<9x64x64xbf16, #tpu.memory_space<vmem>>, vector<1x64x64xbf16>
    %207 = vector.shape_cast %206 : vector<1x64x64xbf16> to vector<64x64xbf16>
    %cst_188 = arith.constant dense<0.000000e+00> : vector<1x64xf32>
    %208 = tpu.matmul %205, %207, %cst_188 {dimension_numbers = #tpu.dot_dimension_numbers<[1], [0], [0], [1], [0, 0, 1, 1], [], []>} : vector<1x64xbf16>, vector<64x64xbf16>, vector<1x64xf32> -> vector<1x64xf32>
    %209 = arith.addf %201, %208 : vector<1x64xf32>
    %c8_189 = arith.constant 8 : index
    %c0_190 = arith.constant 0 : index
    %c0_191 = arith.constant 0 : index
    %210 = vector.load %arg7[%c8_189, %c0_190, %c0_191] : memref<9x1x9xbf16, #tpu.memory_space<vmem>>, vector<1x1x9xbf16>
    %211 = vector.shape_cast %210 : vector<1x1x9xbf16> to vector<1x9xbf16>
    %cst_192 = arith.constant dense<0.000000e+00> : vector<1x64xf32>
    %212 = tpu.matmul %211, %144, %cst_192 {dimension_numbers = #tpu.dot_dimension_numbers<[1], [0], [0], [1], [0, 0, 1, 1], [], []>} : vector<1x9xbf16>, vector<9x64xbf16>, vector<1x64xf32> -> vector<1x64xf32>
    %213 = arith.truncf %212 : vector<1x64xf32> to vector<1x64xbf16>
    %c8_193 = arith.constant 8 : index
    %c0_194 = arith.constant 0 : index
    %c0_195 = arith.constant 0 : index
    %214 = vector.load %arg8[%c8_193, %c0_194, %c0_195] : memref<9x64x64xbf16, #tpu.memory_space<vmem>>, vector<1x64x64xbf16>
    %215 = vector.shape_cast %214 : vector<1x64x64xbf16> to vector<64x64xbf16>
    %cst_196 = arith.constant dense<0.000000e+00> : vector<1x64xf32>
    %216 = tpu.matmul %213, %215, %cst_196 {dimension_numbers = #tpu.dot_dimension_numbers<[1], [0], [0], [1], [0, 0, 1, 1], [], []>} : vector<1x64xbf16>, vector<64x64xbf16>, vector<1x64xf32> -> vector<1x64xf32>
    %217 = arith.addf %209, %216 : vector<1x64xf32>
    %c0_197 = arith.constant 0 : index
    %c0_198 = arith.constant 0 : index
    %218 = vector.load %arg9[%c0_197, %c0_198] : memref<1x64xf32, #tpu.memory_space<vmem>>, vector<1x64xf32>
    %219 = arith.addf %217, %218 : vector<1x64xf32>
    %cst_199 = arith.constant 0.000000e+00 : f32
    %220 = vector.broadcast %cst_199 : f32 to vector<1x64xf32>
    %221 = arith.maximumf %219, %220 : vector<1x64xf32>
    %222 = arith.truncf %221 : vector<1x64xf32> to vector<1x64xbf16>
    %cst_200 = arith.constant 0.000000e+00 : f32
    %223 = vector.broadcast %cst_200 : f32 to vector<1x512xf32>
    %c0_201 = arith.constant 0 : index
    %c0_202 = arith.constant 0 : index
    %c0_203 = arith.constant 0 : index
    %224 = vector.load %arg10[%c0_201, %c0_202, %c0_203] : memref<1x64x512xbf16, #tpu.memory_space<vmem>>, vector<1x64x512xbf16>
    %225 = vector.shape_cast %224 : vector<1x64x512xbf16> to vector<64x512xbf16>
    %cst_204 = arith.constant dense<0.000000e+00> : vector<1x512xf32>
    %226 = tpu.matmul %222, %225, %cst_204 {dimension_numbers = #tpu.dot_dimension_numbers<[1], [0], [0], [1], [0, 0, 1, 1], [], []>} : vector<1x64xbf16>, vector<64x512xbf16>, vector<1x512xf32> -> vector<1x512xf32>
    %227 = arith.addf %223, %226 : vector<1x512xf32>
    %c0_205 = arith.constant 0 : index
    %c0_206 = arith.constant 0 : index
    %228 = vector.load %arg11[%c0_205, %c0_206] : memref<1x512xf32, #tpu.memory_space<vmem>>, vector<1x512xf32>
    %229 = arith.addf %227, %228 : vector<1x512xf32>
    %cst_207 = arith.constant 0.000000e+00 : f32
    %230 = vector.broadcast %cst_207 : f32 to vector<1x512xf32>
    %231 = arith.maximumf %229, %230 : vector<1x512xf32>
    %232 = arith.truncf %231 : vector<1x512xf32> to vector<1x512xbf16>
    %c0_208 = arith.constant 0 : index
    %c0_209 = arith.constant 0 : index
    %233 = vector.load %arg12[%c0_208, %c0_209] : memref<512x128xbf16, #tpu.memory_space<vmem>>, vector<512x128xbf16>
    %cst_210 = arith.constant dense<0.000000e+00> : vector<1x128xf32>
    %234 = tpu.matmul %232, %233, %cst_210 {dimension_numbers = #tpu.dot_dimension_numbers<[1], [0], [0], [1], [0, 0, 1, 1], [], []>} : vector<1x512xbf16>, vector<512x128xbf16>, vector<1x128xf32> -> vector<1x128xf32>
    %c0_211 = arith.constant 0 : index
    %c0_212 = arith.constant 0 : index
    %235 = vector.load %arg13[%c0_211, %c0_212] : memref<1x128xf32, #tpu.memory_space<vmem>>, vector<1x128xf32>
    %236 = arith.addf %234, %235 : vector<1x128xf32>
    %237 = vector.shape_cast %236 : vector<1x128xf32> to vector<1x128xf32>
    %238 = vector.broadcast %237 : vector<1x128xf32> to vector<8x128xf32>
    %c0_213 = arith.constant 0 : index
    %c0_214 = arith.constant 0 : index
    %c0_215 = arith.constant 0 : index
    %239 = vector.load %arg14[%c0_213, %c0_214, %c0_215] : memref<1x8x128xf32, #tpu.memory_space<vmem>>, vector<1x8x128xf32>
    %240 = vector.shape_cast %239 : vector<1x8x128xf32> to vector<8x128xf32>
    %241 = vector.shape_cast %238 : vector<8x128xf32> to vector<1x8x128xf32>
    tpu.vector_store %arg14[%c0_213, %c0_214, %c0_215], %241 {strides = array<i32>} : memref<1x8x128xf32, #tpu.memory_space<vmem>>, vector<1x8x128xf32>,
    return
  }
  func.func @transform_0(%arg0: i32) -> (i32, i32, i32) {
    %c0_i32 = arith.constant 0 : i32
    %c0_i32_0 = arith.constant 0 : i32
    %c0_i32_1 = arith.constant 0 : i32
    return %arg0, %c0_i32, %c0_i32_0 : i32, i32, i32
  }
  func.func @transform_1(%arg0: i32) -> (i32, i32) {
    %c0_i32 = arith.constant 0 : i32
    %c0_i32_0 = arith.constant 0 : i32
    %c0_i32_1 = arith.constant 0 : i32
    return %c0_i32, %c0_i32_0 : i32, i32
  }
  func.func @transform_2(%arg0: i32) -> (i32, i32) {
    %c0_i32 = arith.constant 0 : i32
    %c0_i32_0 = arith.constant 0 : i32
    %c0_i32_1 = arith.constant 0 : i32
    return %c0_i32, %c0_i32_0 : i32, i32
  }
  func.func @transform_3(%arg0: i32) -> (i32, i32, i32) {
    %c0_i32 = arith.constant 0 : i32
    %c0_i32_0 = arith.constant 0 : i32
    %c0_i32_1 = arith.constant 0 : i32
    %c0_i32_2 = arith.constant 0 : i32
    return %c0_i32, %c0_i32_0, %c0_i32_1 : i32, i32, i32
  }
  func.func @transform_4(%arg0: i32) -> (i32, i32, i32) {
    %c0_i32 = arith.constant 0 : i32
    %c0_i32_0 = arith.constant 0 : i32
    %c0_i32_1 = arith.constant 0 : i32
    %c0_i32_2 = arith.constant 0 : i32
    return %c0_i32, %c0_i32_0, %c0_i32_1 : i32, i32, i32
  }
  func.func @transform_5(%arg0: i32) -> (i32, i32) {
    %c0_i32 = arith.constant 0 : i32
    %c0_i32_0 = arith.constant 0 : i32
    %c0_i32_1 = arith.constant 0 : i32
    return %c0_i32, %c0_i32_0 : i32, i32
  }
  func.func @transform_6(%arg0: i32) -> (i32, i32, i32) {
    %c0_i32 = arith.constant 0 : i32
    %c0_i32_0 = arith.constant 0 : i32
    %c0_i32_1 = arith.constant 0 : i32
    %c0_i32_2 = arith.constant 0 : i32
    return %c0_i32, %c0_i32_0, %c0_i32_1 : i32, i32, i32
  }
  func.func @transform_7(%arg0: i32) -> (i32, i32, i32) {
    %c0_i32 = arith.constant 0 : i32
    %c0_i32_0 = arith.constant 0 : i32
    %c0_i32_1 = arith.constant 0 : i32
    %c0_i32_2 = arith.constant 0 : i32
    return %c0_i32, %c0_i32_0, %c0_i32_1 : i32, i32, i32
  }
  func.func @transform_8(%arg0: i32) -> (i32, i32) {
    %c0_i32 = arith.constant 0 : i32
    %c0_i32_0 = arith.constant 0 : i32
    %c0_i32_1 = arith.constant 0 : i32
    return %c0_i32, %c0_i32_0 : i32, i32
  }
  func.func @transform_9(%arg0: i32) -> (i32, i32, i32) {
    %c0_i32 = arith.constant 0 : i32
    %c0_i32_0 = arith.constant 0 : i32
    %c0_i32_1 = arith.constant 0 : i32
    %c0_i32_2 = arith.constant 0 : i32
    return %c0_i32, %c0_i32_0, %c0_i32_1 : i32, i32, i32
  }
  func.func @transform_10(%arg0: i32) -> (i32, i32) {
    %c0_i32 = arith.constant 0 : i32
    %c0_i32_0 = arith.constant 0 : i32
    %c0_i32_1 = arith.constant 0 : i32
    return %c0_i32, %c0_i32_0 : i32, i32
  }
  func.func @transform_11(%arg0: i32) -> (i32, i32) {
    %c0_i32 = arith.constant 0 : i32
    %c0_i32_0 = arith.constant 0 : i32
    %c0_i32_1 = arith.constant 0 : i32
    return %c0_i32, %c0_i32_0 : i32, i32
  }
  func.func @transform_12(%arg0: i32) -> (i32, i32) {
    %c0_i32 = arith.constant 0 : i32
    %c0_i32_0 = arith.constant 0 : i32
    %c0_i32_1 = arith.constant 0 : i32
    return %c0_i32, %c0_i32_0 : i32, i32
  }
  func.func @transform_13(%arg0: i32) -> (i32, i32, i32) {
    %c0_i32 = arith.constant 0 : i32
    %c0_i32_0 = arith.constant 0 : i32
    %c0_i32_1 = arith.constant 0 : i32
    return %arg0, %c0_i32, %c0_i32_0 : i32, i32, i32
  }
}

</mosaic_0001>

<llo_original>
// kernel: dqnbn_forward.1
$region0: #{dqnbn_forward.1}
  #allocation0 [shape = 'u32[]', space=smem, size = 0x4, offset = 0x4, fixed_abs, tag = 'smem constant byte address 0x4 - core index']
  #allocation1 [shape = 'u32[72,128]{1,0:T(1,128)}', space=vmem, size = 0x9000, scoped, tag = 'internal scratch']
  %s0 = inlined_call_operand.vmem [shape: bf16[2,64,256], index: 0, kind: input, shape index: {}]
  %s1 = inlined_call_operand.vmem [shape: bf16[256,32], index: 1, kind: input, shape index: {}]
  %s2 = inlined_call_operand.vmem [shape: f32[1,32], index: 2, kind: input, shape index: {}]
  %s3 = inlined_call_operand.vmem [shape: bf16[16,9,64], index: 3, kind: input, shape index: {}]
  %s4 = inlined_call_operand.vmem [shape: bf16[16,32,64], index: 4, kind: input, shape index: {}]
  %s5 = inlined_call_operand.vmem [shape: f32[1,64], index: 5, kind: input, shape index: {}]
  %s6 = inlined_call_operand.vmem [shape: bf16[9,1,9], index: 6, kind: input, shape index: {}]
  %s7 = inlined_call_operand.vmem [shape: bf16[9,64,64], index: 7, kind: input, shape index: {}]
  %s8 = inlined_call_operand.vmem [shape: f32[1,64], index: 8, kind: input, shape index: {}]
  %s9 = inlined_call_operand.vmem [shape: bf16[1,64,512], index: 9, kind: input, shape index: {}]
  %s10 = inlined_call_operand.vmem [shape: f32[1,512], index: 10, kind: input, shape index: {}]
  %s11 = inlined_call_operand.vmem [shape: bf16[512,128], index: 11, kind: input, shape index: {}]
  %s12 = inlined_call_operand.vmem [shape: f32[1,128], index: 12, kind: input, shape index: {}]
  %s13 = inlined_call_operand.vmem [shape: f32[2,8,128], index: 13, kind: output, shape index: {}]
  %s14 = sld [smem:[#allocation0]]
  $region85: #{dqnbn_forward.1} parent=0
    _
  %s16 = ssub.s32 1, %s14
  %s17 = scalar_select 0, %s16, %s14
  loop: start=0, step=1, limit=4
  $region2: #{dqnbn_forward.1} parent=0 // loop_pre_header
    _
  $region3: #{dqnbn_forward.1} parent=0 // loop_header
    %s19 = sphi 0, %s23
    %p20 = scmp.ge.s32.totalorder %s19, 4
    %s29 = sphi 0, %s31
    %s32 = sphi 0, %s29
    %s33 = sphi 0, %s32
    %s49 = sphi 0, %s33
    %s53 = sphi 0, %s53
    %s55 = sphi 0, %s53
    %s56 = sphi 0, %s55
    %s70 = sphi 0, %s56
    %s74 = sphi 0, %s74
    %s76 = sphi 0, %s74
    %s77 = sphi 0, %s76
    %s91 = sphi 0, %s77
    %s95 = sphi 0, %s95
    %s97 = sphi 0, %s95
    %s98 = sphi 0, %s97
    %s112 = sphi 0, %s98
    %s116 = sphi 0, %s116
    %s118 = sphi 0, %s116
    %s119 = sphi 0, %s118
    %s133 = sphi 0, %s119
    %s137 = sphi 0, %s137
    %s139 = sphi 0, %s137
    %s140 = sphi 0, %s139
    %s154 = sphi 0, %s140
    %s158 = sphi 0, %s158
    %s160 = sphi 0, %s158
    %s161 = sphi 0, %s160
    %s175 = sphi 0, %s161
    %s179 = sphi 0, %s179
    %s181 = sphi 0, %s179
    %s182 = sphi 0, %s181
    %s196 = sphi 0, %s182
    %s200 = sphi 0, %s200
    %s202 = sphi 0, %s200
    %s203 = sphi 0, %s202
    %s217 = sphi 0, %s203
    %s221 = sphi 0, %s221
    %s223 = sphi 0, %s221
    %s224 = sphi 0, %s223
    %s238 = sphi 0, %s224
    %s242 = sphi 0, %s242
    %s244 = sphi 0, %s242
    %s245 = sphi 0, %s244
    %s259 = sphi 0, %s245
    %s263 = sphi 0, %s263
    %s265 = sphi 0, %s263
    %s266 = sphi 0, %s265
    %s280 = sphi 0, %s266
    %s284 = sphi 0, %s284
    %s286 = sphi 0, %s284
    %s287 = sphi 0, %s286
    %s301 = sphi 0, %s287
    %s307 = sphi 0, %s309
    %s310 = sphi 0, %s307
    %s311 = sphi 0, %s310
    %s327 = sphi 0, %s311
  $region4: #{dqnbn_forward.1} parent=0 // loop_header_branch
    %22 = sbr.rel (%p20) target = $region8
  $region5: #{dqnbn_forward.1} parent=0 // loop_body
    %s24 = ssub.s32 %s19, 1
    %s25 = ssub.s32 %s19, 2
    %s26 = sadd.s32 %s19, 1
    %s27 = ssub.s32 %s19, %s26
    %p28 = scmp.eq.s32.totalorder %s27, 0
    %s30 = sadd.s32 %s29, 1
    %s31 = scalar_select %p28, %s29, %s30
    %p34 = pneg %p28
    %p35 = scmp.eq.s32.totalorder %s19, 1
    %p36 = por %p34, %p35
    %p37 = scmp.ne.s32.totalorder %s29, %s32
    %p38 = scmp.eq.s32.totalorder %s19, 0
    %p39 = por %p37, %p38
    %p40 = scmp.ne.s32.totalorder %s29, %s32
    %p41 = scmp.eq.s32.totalorder %s24, 1
    %p42 = por %p40, %p41
    %p43 = scmp.ne.s32.totalorder %s32, %s33
    %p44 = scmp.eq.s32.totalorder %s24, 0
    %p45 = por %p43, %p44
    %p46 = scmp.ne.s32.totalorder %s32, %s33
    %p47 = scmp.eq.s32.totalorder %s25, 1
    %p48 = por %p46, %p47
    %p50 = scmp.ne.s32.totalorder %s33, %s49
    %p51 = scmp.eq.s32.totalorder %s25, 0
    %p52 = por %p50, %p51
    %s54 = sadd.s32 %s53, 1
    %p57 = scmp.eq.s32.totalorder %s19, 1
    %p58 = scmp.ne.s32.totalorder %s53, %s55
    %p59 = scmp.eq.s32.totalorder %s19, 0
    %p60 = por %p58, %p59
    %p61 = scmp.ne.s32.totalorder %s53, %s55
    %p62 = scmp.eq.s32.totalorder %s24, 1
    %p63 = por %p61, %p62
    %p64 = scmp.ne.s32.totalorder %s55, %s56
    %p65 = scmp.eq.s32.totalorder %s24, 0
    %p66 = por %p64, %p65
    %p67 = scmp.ne.s32.totalorder %s55, %s56
    %p68 = scmp.eq.s32.totalorder %s25, 1
    %p69 = por %p67, %p68
    %p71 = scmp.ne.s32.totalorder %s56, %s70
    %p72 = scmp.eq.s32.totalorder %s25, 0
    %p73 = por %p71, %p72
    %s75 = sadd.s32 %s74, 1
    %p78 = scmp.eq.s32.totalorder %s19, 1
    %p79 = scmp.ne.s32.totalorder %s74, %s76
    %p80 = scmp.eq.s32.totalorder %s19, 0
    %p81 = por %p79, %p80
    %p82 = scmp.ne.s32.totalorder %s74, %s76
    %p83 = scmp.eq.s32.totalorder %s24, 1
    %p84 = por %p82, %p83
    %p85 = scmp.ne.s32.totalorder %s76, %s77
    %p86 = scmp.eq.s32.totalorder %s24, 0
    %p87 = por %p85, %p86
    %p88 = scmp.ne.s32.totalorder %s76, %s77
    %p89 = scmp.eq.s32.totalorder %s25, 1
    %p90 = por %p88, %p89
    %p92 = scmp.ne.s32.totalorder %s77, %s91
    %p93 = scmp.eq.s32.totalorder %s25, 0
    %p94 = por %p92, %p93
    %s96 = sadd.s32 %s95, 1
    %p99 = scmp.eq.s32.totalorder %s19, 1
    %p100 = scmp.ne.s32.totalorder %s95, %s97
    %p101 = scmp.eq.s32.totalorder %s19, 0
    %p102 = por %p100, %p101
    %p103 = scmp.ne.s32.totalorder %s95, %s97
    %p104 = scmp.eq.s32.totalorder %s24, 1
    %p105 = por %p103, %p104
    %p106 = scmp.ne.s32.totalorder %s97, %s98
    %p107 = scmp.eq.s32.totalorder %s24, 0
    %p108 = por %p106, %p107
    %p109 = scmp.ne.s32.totalorder %s97, %s98
    %p110 = scmp.eq.s32.totalorder %s25, 1
    %p111 = por %p109, %p110
    %p113 = scmp.ne.s32.totalorder %s98, %s112
    %p114 = scmp.eq.s32.totalorder %s25, 0
    %p115 = por %p113, %p114
    %s117 = sadd.s32 %s116, 1
    %p120 = scmp.eq.s32.totalorder %s19, 1
    %p121 = scmp.ne.s32.totalorder %s116, %s118
    %p122 = scmp.eq.s32.totalorder %s19, 0
    %p123 = por %p121, %p122
    %p124 = scmp.ne.s32.totalorder %s116, %s118
    %p125 = scmp.eq.s32.totalorder %s24, 1
    %p126 = por %p124, %p125
    %p127 = scmp.ne.s32.totalorder %s118, %s119
    %p128 = scmp.eq.s32.totalorder %s24, 0
    %p129 = por %p127, %p128
    %p130 = scmp.ne.s32.totalorder %s118, %s119
    %p131 = scmp.eq.s32.totalorder %s25, 1
    %p132 = por %p130, %p131
    %p134 = scmp.ne.s32.totalorder %s119, %s133
    %p135 = scmp.eq.s32.totalorder %s25, 0
    %p136 = por %p134, %p135
    %s138 = sadd.s32 %s137, 1
    %p141 = scmp.eq.s32.totalorder %s19, 1
    %p142 = scmp.ne.s32.totalorder %s137, %s139
    %p143 = scmp.eq.s32.totalorder %s19, 0
    %p144 = por %p142, %p143
    %p145 = scmp.ne.s32.totalorder %s137, %s139
    %p146 = scmp.eq.s32.totalorder %s24, 1
    %p147 = por %p145, %p146
    %p148 = scmp.ne.s32.totalorder %s139, %s140
    %p149 = scmp.eq.s32.totalorder %s24, 0
    %p150 = por %p148, %p149
    %p151 = scmp.ne.s32.totalorder %s139, %s140
    %p152 = scmp.eq.s32.totalorder %s25, 1
    %p153 = por %p151, %p152
    %p155 = scmp.ne.s32.totalorder %s140, %s154
    %p156 = scmp.eq.s32.totalorder %s25, 0
    %p157 = por %p155, %p156
    %s159 = sadd.s32 %s158, 1
    %p162 = scmp.eq.s32.totalorder %s19, 1
    %p163 = scmp.ne.s32.totalorder %s158, %s160
    %p164 = scmp.eq.s32.totalorder %s19, 0
    %p165 = por %p163, %p164
    %p166 = scmp.ne.s32.totalorder %s158, %s160
    %p167 = scmp.eq.s32.totalorder %s24, 1
    %p168 = por %p166, %p167
    %p169 = scmp.ne.s32.totalorder %s160, %s161
    %p170 = scmp.eq.s32.totalorder %s24, 0
    %p171 = por %p169, %p170
    %p172 = scmp.ne.s32.totalorder %s160, %s161
    %p173 = scmp.eq.s32.totalorder %s25, 1
    %p174 = por %p172, %p173
    %p176 = scmp.ne.s32.totalorder %s161, %s175
    %p177 = scmp.eq.s32.totalorder %s25, 0
    %p178 = por %p176, %p177
    %s180 = sadd.s32 %s179, 1
    %p183 = scmp.eq.s32.totalorder %s19, 1
    %p184 = scmp.ne.s32.totalorder %s179, %s181
    %p185 = scmp.eq.s32.totalorder %s19, 0
    %p186 = por %p184, %p185
    %p187 = scmp.ne.s32.totalorder %s179, %s181
    %p188 = scmp.eq.s32.totalorder %s24, 1
    %p189 = por %p187, %p188
    %p190 = scmp.ne.s32.totalorder %s181, %s182
    %p191 = scmp.eq.s32.totalorder %s24, 0
    %p192 = por %p190, %p191
    %p193 = scmp.ne.s32.totalorder %s181, %s182
    %p194 = scmp.eq.s32.totalorder %s25, 1
    %p195 = por %p193, %p194
    %p197 = scmp.ne.s32.totalorder %s182, %s196
    %p198 = scmp.eq.s32.totalorder %s25, 0
    %p199 = por %p197, %p198
    %s201 = sadd.s32 %s200, 1
    %p204 = scmp.eq.s32.totalorder %s19, 1
    %p205 = scmp.ne.s32.totalorder %s200, %s202
    %p206 = scmp.eq.s32.totalorder %s19, 0
    %p207 = por %p205, %p206
    %p208 = scmp.ne.s32.totalorder %s200, %s202
    %p209 = scmp.eq.s32.totalorder %s24, 1
    %p210 = por %p208, %p209
    %p211 = scmp.ne.s32.totalorder %s202, %s203
    %p212 = scmp.eq.s32.totalorder %s24, 0
    %p213 = por %p211, %p212
    %p214 = scmp.ne.s32.totalorder %s202, %s203
    %p215 = scmp.eq.s32.totalorder %s25, 1
    %p216 = por %p214, %p215
    %p218 = scmp.ne.s32.totalorder %s203, %s217
    %p219 = scmp.eq.s32.totalorder %s25, 0
    %p220 = por %p218, %p219
    %s222 = sadd.s32 %s221, 1
    %p225 = scmp.eq.s32.totalorder %s19, 1
    %p226 = scmp.ne.s32.totalorder %s221, %s223
    %p227 = scmp.eq.s32.totalorder %s19, 0
    %p228 = por %p226, %p227
    %p229 = scmp.ne.s32.totalorder %s221, %s223
    %p230 = scmp.eq.s32.totalorder %s24, 1
    %p231 = por %p229, %p230
    %p232 = scmp.ne.s32.totalorder %s223, %s224
    %p233 = scmp.eq.s32.totalorder %s24, 0
    %p234 = por %p232, %p233
    %p235 = scmp.ne.s32.totalorder %s223, %s224
    %p236 = scmp.eq.s32.totalorder %s25, 1
    %p237 = por %p235, %p236
    %p239 = scmp.ne.s32.totalorder %s224, %s238
    %p240 = scmp.eq.s32.totalorder %s25, 0
    %p241 = por %p239, %p240
    %s243 = sadd.s32 %s242, 1
    %p246 = scmp.eq.s32.totalorder %s19, 1
    %p247 = scmp.ne.s32.totalorder %s242, %s244
    %p248 = scmp.eq.s32.totalorder %s19, 0
    %p249 = por %p247, %p248
    %p250 = scmp.ne.s32.totalorder %s242, %s244
    %p251 = scmp.eq.s32.totalorder %s24, 1
    %p252 = por %p250, %p251
    %p253 = scmp.ne.s32.totalorder %s244, %s245
    %p254 = scmp.eq.s32.totalorder %s24, 0
    %p255 = por %p253, %p254
    %p256 = scmp.ne.s32.totalorder %s244, %s245
    %p257 = scmp.eq.s32.totalorder %s25, 1
    %p258 = por %p256, %p257
    %p260 = scmp.ne.s32.totalorder %s245, %s259
    %p261 = scmp.eq.s32.totalorder %s25, 0
    %p262 = por %p260, %p261
    %s264 = sadd.s32 %s263, 1
    %p267 = scmp.eq.s32.totalorder %s19, 1
    %p268 = scmp.ne.s32.totalorder %s263, %s265
    %p269 = scmp.eq.s32.totalorder %s19, 0
    %p270 = por %p268, %p269
    %p271 = scmp.ne.s32.totalorder %s263, %s265
    %p272 = scmp.eq.s32.totalorder %s24, 1
    %p273 = por %p271, %p272
    %p274 = scmp.ne.s32.totalorder %s265, %s266
    %p275 = scmp.eq.s32.totalorder %s24, 0
    %p276 = por %p274, %p275
    %p277 = scmp.ne.s32.totalorder %s265, %s266
    %p278 = scmp.eq.s32.totalorder %s25, 1
    %p279 = por %p277, %p278
    %p281 = scmp.ne.s32.totalorder %s266, %s280
    %p282 = scmp.eq.s32.totalorder %s25, 0
    %p283 = por %p281, %p282
    %s285 = sadd.s32 %s284, 1
    %p288 = scmp.eq.s32.totalorder %s19, 1
    %p289 = scmp.ne.s32.totalorder %s284, %s286
    %p290 = scmp.eq.s32.totalorder %s19, 0
    %p291 = por %p289, %p290
    %p292 = scmp.ne.s32.totalorder %s284, %s286
    %p293 = scmp.eq.s32.totalorder %s24, 1
    %p294 = por %p292, %p293
    %p295 = scmp.ne.s32.totalorder %s286, %s287
    %p296 = scmp.eq.s32.totalorder %s24, 0
    %p297 = por %p295, %p296
    %p298 = scmp.ne.s32.totalorder %s286, %s287
    %p299 = scmp.eq.s32.totalorder %s25, 1
    %p300 = por %p298, %p299
    %p302 = scmp.ne.s32.totalorder %s287, %s301
    %p303 = scmp.eq.s32.totalorder %s25, 0
    %p304 = por %p302, %p303
    %s305 = ssub.s32 %s19, %s26
    %p306 = scmp.eq.s32.totalorder %s305, 0
    %s308 = sadd.s32 %s307, 1
    %s309 = scalar_select %p306, %s307, %s308
    %p312 = pneg %p306
    %p313 = scmp.eq.s32.totalorder %s19, 1
    %p314 = por %p312, %p313
    %p315 = scmp.ne.s32.totalorder %s307, %s310
    %p316 = scmp.eq.s32.totalorder %s19, 0
    %p317 = por %p315, %p316
    %p318 = scmp.ne.s32.totalorder %s307, %s310
    %p319 = scmp.eq.s32.totalorder %s24, 1
    %p320 = por %p318, %p319
    %p321 = scmp.ne.s32.totalorder %s310, %s311
    %p322 = scmp.eq.s32.totalorder %s24, 0
    %p323 = por %p321, %p322
    %p324 = scmp.ne.s32.totalorder %s310, %s311
    %p325 = scmp.eq.s32.totalorder %s25, 1
    %p326 = por %p324, %p325
    %p328 = scmp.ne.s32.totalorder %s311, %s327
    %p329 = scmp.eq.s32.totalorder %s25, 0
    %p330 = por %p328, %p329
    %p331 = scmp.le.s32.totalorder 1, %s19
    %p332 = scmp.lt.s32.totalorder %s19, 3
    %p333 = pnand %p331, %p332
    %p334 = pneg %p333
    // Predicated region
    $region9: #{dqnbn_forward.1} parent=5 // pred_check
      _
    $region10: #{dqnbn_forward.1} parent=5 // pred_check_branch
      %336 = sbr.rel (%p333) target = $region12
    $region11: #{dqnbn_forward.1} parent=5 // pred_region
      %s337 = ssub.s32 %s19, 1
      // Predicated region
      $region13: #{dqnbn_forward.1} parent=11 // pred_check
        %p338 = pneg %p66
      $region14: #{dqnbn_forward.1} parent=11 // pred_check_branch
        %340 = sbr.rel (%p338) target = $region16
      $region15: #{dqnbn_forward.1} parent=11 // pred_region
        _
      $region16: #{dqnbn_forward.1} parent=11 // pred_fallthru
        _
      // Predicated region
      $region17: #{dqnbn_forward.1} parent=11 // pred_check
        %p341 = pneg %p87
      $region18: #{dqnbn_forward.1} parent=11 // pred_check_branch
        %343 = sbr.rel (%p341) target = $region20
      $region19: #{dqnbn_forward.1} parent=11 // pred_region
        _
      $region20: #{dqnbn_forward.1} parent=11 // pred_fallthru
        _
      // Predicated region
      $region21: #{dqnbn_forward.1} parent=11 // pred_check
        %p344 = pneg %p108
      $region22: #{dqnbn_forward.1} parent=11 // pred_check_branch
        %346 = sbr.rel (%p344) target = $region24
      $region23: #{dqnbn_forward.1} parent=11 // pred_region
        _
      $region24: #{dqnbn_forward.1} parent=11 // pred_fallthru
        _
      // Predicated region
      $region25: #{dqnbn_forward.1} parent=11 // pred_check
        %p347 = pneg %p129
      $region26: #{dqnbn_forward.1} parent=11 // pred_check_branch
        %349 = sbr.rel (%p347) target = $region28
      $region27: #{dqnbn_forward.1} parent=11 // pred_region
        _
      $region28: #{dqnbn_forward.1} parent=11 // pred_fallthru
        _
      // Predicated region
      $region29: #{dqnbn_forward.1} parent=11 // pred_check
        %p350 = pneg %p150
      $region30: #{dqnbn_forward.1} parent=11 // pred_check_branch
        %352 = sbr.rel (%p350) target = $region32
      $region31: #{dqnbn_forward.1} parent=11 // pred_region
        _
      $region32: #{dqnbn_forward.1} parent=11 // pred_fallthru
        _
      // Predicated region
      $region33: #{dqnbn_forward.1} parent=11 // pred_check
        %p353 = pneg %p171
      $region34: #{dqnbn_forward.1} parent=11 // pred_check_branch
        %355 = sbr.rel (%p353) target = $region36
      $region35: #{dqnbn_forward.1} parent=11 // pred_region
        _
      $region36: #{dqnbn_forward.1} parent=11 // pred_fallthru
        _
      // Predicated region
      $region37: #{dqnbn_forward.1} parent=11 // pred_check
        %p356 = pneg %p192
      $region38: #{dqnbn_forward.1} parent=11 // pred_check_branch
        %358 = sbr.rel (%p356) target = $region40
      $region39: #{dqnbn_forward.1} parent=11 // pred_region
        _
      $region40: #{dqnbn_forward.1} parent=11 // pred_fallthru
        _
      // Predicated region
      $region41: #{dqnbn_forward.1} parent=11 // pred_check
        %p359 = pneg %p213
      $region42: #{dqnbn_forward.1} parent=11 // pred_check_branch
        %361 = sbr.rel (%p359) target = $region44
      $region43: #{dqnbn_forward.1} parent=11 // pred_region
        _
      $region44: #{dqnbn_forward.1} parent=11 // pred_fallthru
        _
      // Predicated region
      $region45: #{dqnbn_forward.1} parent=11 // pred_check
        %p362 = pneg %p234
      $region46: #{dqnbn_forward.1} parent=11 // pred_check_branch
        %364 = sbr.rel (%p362) target = $region48
      $region47: #{dqnbn_forward.1} parent=11 // pred_region
        _
      $region48: #{dqnbn_forward.1} parent=11 // pred_fallthru
        _
      // Predicated region
      $region49: #{dqnbn_forward.1} parent=11 // pred_check
        %p365 = pneg %p255
      $region50: #{dqnbn_forward.1} parent=11 // pred_check_branch
        %367 = sbr.rel (%p365) target = $region52
      $region51: #{dqnbn_forward.1} parent=11 // pred_region
        _
      $region52: #{dqnbn_forward.1} parent=11 // pred_fallthru
        _
      // Predicated region
      $region53: #{dqnbn_forward.1} parent=11 // pred_check
        %p368 = pneg %p276
      $region54: #{dqnbn_forward.1} parent=11 // pred_check_branch
        %370 = sbr.rel (%p368) target = $region56
      $region55: #{dqnbn_forward.1} parent=11 // pred_region
        _
      $region56: #{dqnbn_forward.1} parent=11 // pred_fallthru
        _
      // Predicated region
      $region57: #{dqnbn_forward.1} parent=11 // pred_check
        %p371 = pneg %p297
      $region58: #{dqnbn_forward.1} parent=11 // pred_check_branch
        %373 = sbr.rel (%p371) target = $region60
      $region59: #{dqnbn_forward.1} parent=11 // pred_region
        _
      $region60: #{dqnbn_forward.1} parent=11 // pred_fallthru
        _
    $region12: #{dqnbn_forward.1} parent=5 // pred_fallthru
      _
    %p374 = scmp.lt.s32.totalorder %s19, 2
    // Predicated region
    $region61: #{dqnbn_forward.1} parent=5 // pred_check
      %p375 = pneg %p374
    $region62: #{dqnbn_forward.1} parent=5 // pred_check_branch
      %377 = sbr.rel (%p375) target = $region64
    $region63: #{dqnbn_forward.1} parent=5 // pred_region
      // Predicated region
      $region65: #{dqnbn_forward.1} parent=63 // pred_check
        %p378 = pneg %p39
      $region66: #{dqnbn_forward.1} parent=63 // pred_check_branch
        %380 = sbr.rel (%p378) target = $region68
      $region67: #{dqnbn_forward.1} parent=63 // pred_region
        %p381 = scmp.lt.s32.totalorder %s19, 1
        %s382 = scalar_select %p381, %s19, 1
        %s383 = smul.addr %s382, 16
        %s384 = smul.addr %s383, 4
        %s385 = scalar_lea.vmem %s0, %s384
      $region68: #{dqnbn_forward.1} parent=63 // pred_fallthru
        _
    $region64: #{dqnbn_forward.1} parent=5 // pred_fallthru
      _
    %p386 = scmp.le.s32.totalorder 1, %s19
    %p387 = scmp.lt.s32.totalorder %s19, 3
    %p388 = pnand %p386, %p387
    %p389 = pneg %p388
    // Predicated region
    $region69: #{dqnbn_forward.1} parent=5 // pred_check
      _
    $region70: #{dqnbn_forward.1} parent=5 // pred_check_branch
      %391 = sbr.rel (%p388) target = $region72
    $region71: #{dqnbn_forward.1} parent=5 // pred_region
      %s392 = ssub.s32 %s19, 1
      %p393 = scmp.lt.s32.totalorder %s24, 1
      %s394 = scalar_select %p393, %s24, 1
      %s395 = smul.addr %s394, 16
      %s396 = smul.addr %s395, 4
      %s397 = scalar_lea.vmem %s0, %s396
      %p398 = pneg %p45
      %p399 = pneg %p42
      %p400 = pneg %p66
      %p401 = pneg %p63
      %p402 = pneg %p87
      %p403 = pneg %p84
      %p404 = pneg %p108
      %p405 = pneg %p105
      %p406 = pneg %p129
      %p407 = pneg %p126
      %p408 = pneg %p150
      %p409 = pneg %p147
      %p410 = pneg %p171
      %p411 = pneg %p168
      %p412 = pneg %p192
      %p413 = pneg %p189
      %p414 = pneg %p213
      %p415 = pneg %p210
      %p416 = pneg %p234
      %p417 = pneg %p231
      %p418 = pneg %p255
      %p419 = pneg %p252
      %p420 = pneg %p276
      %p421 = pneg %p273
      %p422 = pneg %p297
      %p423 = pneg %p294
      %p424 = pneg %p323
      %p425 = pneg %p320
      %p426 = scmp.lt.s32.totalorder %s24, 1
      %s427 = scalar_select %p426, %s24, 1
      %s428 = smul.addr %s427, 8
      %s429 = scalar_lea.vmem %s13, %s428
      %p430 = scmp.lt.s32.totalorder %s24, 1
      %s431 = scalar_select %p430, %s24, 1
      %s432 = smul.addr %s431, 16
      %s433 = smul.addr %s432, 4
      %s434 = scalar_lea.vmem %s0, %s433
      %p435 = scmp.lt.s32.totalorder %s24, 1
      %s436 = scalar_select %p435, %s24, 1
      %s437 = smul.addr %s436, 8
      %s438 = scalar_lea.vmem %s13, %s437
      %v440 = vld [vmem:[%s434] sm:$0xff]
      %v441 = vld [vmem:[%s434 + $0x8] sm:$0xff]
      %v442 = vld [vmem:[%s434 + $0x10] sm:$0xff]
      %v443 = vld [vmem:[%s434 + $0x18] sm:$0xff]
      %v444 = vld [vmem:[%s434 + $0x20] sm:$0xff]
      %v445 = vld [vmem:[%s434 + $0x28] sm:$0xff]
      %v446 = vld [vmem:[%s434 + $0x30] sm:$0xff]
      %v447 = vld [vmem:[%s434 + $0x38] sm:$0xff]
      %v448 = vld [vmem:[%s1] sm:$0xf]
      %v449 = vld [vmem:[%s1 + $0x4] sm:$0xf]
      %v450 = vld [vmem:[%s1 + $0x8] sm:$0xf]
      %v451 = vld [vmem:[%s1 + $0xc] sm:$0xf]
      %v452 = vld [vmem:[%s1 + $0x10] sm:$0xf]
      %v453 = vld [vmem:[%s1 + $0x14] sm:$0xf]
      %v454 = vld [vmem:[%s1 + $0x18] sm:$0xf]
      %v455 = vld [vmem:[%s1 + $0x1c] sm:$0xf]
      %v456 = vld [vmem:[%s1 + $0x20] sm:$0xf]
      %v457 = vld [vmem:[%s1 + $0x24] sm:$0xf]
      %v458 = vld [vmem:[%s1 + $0x28] sm:$0xf]
      %v459 = vld [vmem:[%s1 + $0x2c] sm:$0xf]
      %v460 = vld [vmem:[%s1 + $0x30] sm:$0xf]
      %v461 = vld [vmem:[%s1 + $0x34] sm:$0xf]
      %v462 = vld [vmem:[%s1 + $0x38] sm:$0xf]
      %v463 = vld [vmem:[%s1 + $0x3c] sm:$0xf]
      %v464 = vld [vmem:[%s1 + $0x40] sm:$0xf]
      %v465 = vld [vmem:[%s1 + $0x44] sm:$0xf]
      %v466 = vld [vmem:[%s1 + $0x48] sm:$0xf]
      %v467 = vld [vmem:[%s1 + $0x4c] sm:$0xf]
      %v468 = vld [vmem:[%s1 + $0x50] sm:$0xf]
      %v469 = vld [vmem:[%s1 + $0x54] sm:$0xf]
      %v470 = vld [vmem:[%s1 + $0x58] sm:$0xf]
      %v471 = vld [vmem:[%s1 + $0x5c] sm:$0xf]
      %v472 = vld [vmem:[%s1 + $0x60] sm:$0xf]
      %v473 = vld [vmem:[%s1 + $0x64] sm:$0xf]
      %v474 = vld [vmem:[%s1 + $0x68] sm:$0xf]
      %v475 = vld [vmem:[%s1 + $0x6c] sm:$0xf]
      %v476 = vld [vmem:[%s1 + $0x70] sm:$0xf]
      %v477 = vld [vmem:[%s1 + $0x74] sm:$0xf]
      %v478 = vld [vmem:[%s1 + $0x78] sm:$0xf]
      %v479 = vld [vmem:[%s1 + $0x7c] sm:$0xf]
      %v480 = vld [vmem:[%s2] sm:$0x1]
      %v482 = vperm.slane %v480, 0
      %v492 = vunpack.c.l.b16 %v440
      %v493 = vunpack.c.h.b16 %v440
      %v494 = vunpack.c.l.b16 %v441
      %v495 = vunpack.c.h.b16 %v441
      %v496 = vunpack.c.l.b16 %v442
      %v497 = vunpack.c.h.b16 %v442
      %v498 = vunpack.c.l.b16 %v443
      %v499 = vunpack.c.h.b16 %v443
      %v500 = vunpack.c.l.b16 %v444
      %v501 = vunpack.c.h.b16 %v444
      %v502 = vunpack.c.l.b16 %v445
      %v503 = vunpack.c.h.b16 %v445
      %v504 = vunpack.c.l.b16 %v446
      %v505 = vunpack.c.h.b16 %v446
      %v506 = vunpack.c.l.b16 %v447
      %v507 = vunpack.c.h.b16 %v447
      %v508 = vpack.c.b16 %v494, %v492
      %v509 = vpack.c.b16 %v495, %v493
      %v510 = vpack.c.b16 %v498, %v496
      %v511 = vpack.c.b16 %v499, %v497
      %v512 = vpack.c.b16 %v502, %v500
      %v513 = vpack.c.b16 %v503, %v501
      %v514 = vpack.c.b16 %v506, %v504
      %v515 = vpack.c.b16 %v507, %v505
      %v556 = vunpack.c.l.b16 %v448
      %v557 = vunpack.c.l.b16 %v449
      %v558 = vunpack.c.l.b16 %v450
      %v559 = vunpack.c.l.b16 %v451
      %v560 = vunpack.c.l.b16 %v452
      %v561 = vunpack.c.l.b16 %v453
      %v562 = vunpack.c.l.b16 %v454
      %v563 = vunpack.c.l.b16 %v455
      %v564 = vunpack.c.l.b16 %v456
      %v565 = vunpack.c.l.b16 %v457
      %v566 = vunpack.c.l.b16 %v458
      %v567 = vunpack.c.l.b16 %v459
      %v568 = vunpack.c.l.b16 %v460
      %v569 = vunpack.c.l.b16 %v461
      %v570 = vunpack.c.l.b16 %v462
      %v571 = vunpack.c.l.b16 %v463
      %v572 = vunpack.c.l.b16 %v464
      %v573 = vunpack.c.l.b16 %v465
      %v574 = vunpack.c.l.b16 %v466
      %v575 = vunpack.c.l.b16 %v467
      %v576 = vunpack.c.l.b16 %v468
      %v577 = vunpack.c.l.b16 %v469
      %v578 = vunpack.c.l.b16 %v470
      %v579 = vunpack.c.l.b16 %v471
      %v580 = vunpack.c.l.b16 %v472
      %v581 = vunpack.c.l.b16 %v473
      %v582 = vunpack.c.l.b16 %v474
      %v583 = vunpack.c.l.b16 %v475
      %v584 = vunpack.c.l.b16 %v476
      %v585 = vunpack.c.l.b16 %v477
      %v586 = vunpack.c.l.b16 %v478
      %v587 = vunpack.c.l.b16 %v479
      %v588 = vpack.c.b16 %v557, %v556
      %v589 = vpack.c.b16 %v559, %v558
      %v590 = vpack.c.b16 %v561, %v560
      %v591 = vpack.c.b16 %v563, %v562
      %v592 = vpack.c.b16 %v565, %v564
      %v593 = vpack.c.b16 %v567, %v566
      %v594 = vpack.c.b16 %v569, %v568
      %v595 = vpack.c.b16 %v571, %v570
      %v596 = vpack.c.b16 %v573, %v572
      %v597 = vpack.c.b16 %v575, %v574
      %v598 = vpack.c.b16 %v577, %v576
      %v599 = vpack.c.b16 %v579, %v578
      %v600 = vpack.c.b16 %v581, %v580
      %v601 = vpack.c.b16 %v583, %v582
      %v602 = vpack.c.b16 %v585, %v584
      %v603 = vpack.c.b16 %v587, %v586
      %620 = vmatpush.bf16.msra.mxu0 %v595
      %621 = vmatpush.bf16.msra.mxu0 %v594
      %622 = vmatpush.bf16.msra.mxu0 %v593
      %623 = vmatpush.bf16.msra.mxu0 %v592
      %624 = vmatpush.bf16.msra.mxu0 %v591
      %625 = vmatpush.bf16.msra.mxu0 %v590
      %626 = vmatpush.bf16.msra.mxu0 %v589
      %627 = vmatpush.bf16.msra.mxu0 %v588
      %628 = vmatmul.bf16.gmra.mxu0 %v508
      %v629 = vpop.f32.mrf.mxu0
      %v630 = vadd.f32 %v482, %v629
      %v631 = vpop.f32.mrf.mxu0
      %v632 = vadd.f32 %v482, %v631
      %633 = vmatmul.bf16.gmra.mxu0 %v510
      %v634 = vpop.f32.mrf.mxu0
      %v635 = vadd.f32 %v482, %v634
      %v636 = vpop.f32.mrf.mxu0
      %v637 = vadd.f32 %v482, %v636
      %638 = vmatmul.bf16.gmra.mxu0 %v512
      %v639 = vpop.f32.mrf.mxu0
      %v640 = vadd.f32 %v482, %v639
      %v641 = vpop.f32.mrf.mxu0
      %v642 = vadd.f32 %v482, %v641
      %643 = vmatmul.bf16.gmra.mxu0 %v514
      %v644 = vpop.f32.mrf.mxu0
      %v645 = vadd.f32 %v482, %v644
      %v646 = vpop.f32.mrf.mxu0
      %v647 = vadd.f32 %v482, %v646
      %648 = vdwg.mxu0
      %649 = vmatpush.bf16.msra.mxu0 %v603
      %650 = vmatpush.bf16.msra.mxu0 %v602
      %651 = vmatpush.bf16.msra.mxu0 %v601
      %652 = vmatpush.bf16.msra.mxu0 %v600
      %653 = vmatpush.bf16.msra.mxu0 %v599
      %654 = vmatpush.bf16.msra.mxu0 %v598
      %655 = vmatpush.bf16.msra.mxu0 %v597
      %656 = vmatpush.bf16.msra.mxu0 %v596
      %657 = vmatmul.bf16.gmra.mxu0 %v509
      %v658 = vpop.f32.mrf.mxu0
      %v659 = vadd.f32 %v630, %v658
      %v660 = vpop.f32.mrf.mxu0
      %v661 = vadd.f32 %v632, %v660
      %662 = vmatmul.bf16.gmra.mxu0 %v511
      %v663 = vpop.f32.mrf.mxu0
      %v664 = vadd.f32 %v635, %v663
      %v665 = vpop.f32.mrf.mxu0
      %v666 = vadd.f32 %v637, %v665
      %667 = vmatmul.bf16.gmra.mxu0 %v513
      %v668 = vpop.f32.mrf.mxu0
      %v669 = vadd.f32 %v640, %v668
      %v670 = vpop.f32.mrf.mxu0
      %v671 = vadd.f32 %v642, %v670
      %672 = vmatmul.bf16.gmra.mxu0 %v515
      %v673 = vpop.f32.mrf.mxu0
      %v674 = vadd.f32 %v645, %v673
      %v675 = vpop.f32.mrf.mxu0
      %v676 = vadd.f32 %v647, %v675
      %677 = vdwg.mxu0
      %v678 = vmax.f32 %v659, 0.0
      %v679 = vmax.f32 %v661, 0.0
      %v680 = vmax.f32 %v664, 0.0
      %v681 = vmax.f32 %v666, 0.0
      %v682 = vmax.f32 %v669, 0.0
      %v683 = vmax.f32 %v671, 0.0
      %v684 = vmax.f32 %v674, 0.0
      %v685 = vmax.f32 %v676, 0.0
      %v686 = vpack.c.bf16 %v679, %v678
      %v687 = vpack.c.bf16 %v681, %v680
      %v688 = vpack.c.bf16 %v683, %v682
      %v689 = vpack.c.bf16 %v685, %v684
      %v690 = vld [vmem:[%s3] sm:$0xf]
      %v691 = vld [vmem:[%s3 + $0x4] sm:$0x1]
      %v694 = vunpack.c.l.b16 %v690
      %v695 = vunpack.c.l.b16 %v691
      %v696 = vpack.c.b16 %v695, %v694
      %vm697 = vcmask 523264
      %v699 = vsel %vm697, %v696, 0
      %701 = vmatpush.bf16.msra.mxu0 0
      %702 = vmatpush.bf16.msra.mxu0 0
      %703 = vmatpush.bf16.msra.mxu0 0
      %704 = vmatpush.bf16.msra.mxu0 0
      %705 = vmatpush.bf16.msra.mxu0 %v689
      %706 = vmatpush.bf16.msra.mxu0 %v688
      %707 = vmatpush.bf16.msra.mxu0 %v687
      %708 = vmatpush.bf16.msra.mxu0 %v686
      %709 = vmatmul.bf16.gmra.mxu0 %v699
      %v710 = vpop.f32.mrf.mxu0
      %v711 = vadd.f32 0.0, %v710
      %v712 = vpop.f32.mrf.mxu0
      %v713 = vadd.f32 0.0, %v712
      %714 = vdwg.mxu0
      %v715 = vpack.c.bf16 %v713, %v711
      %v716 = vld [vmem:[%s4] sm:$0xf]
      %v717 = vld [vmem:[%s4 + $0x4] sm:$0xf]
      %v718 = vld [vmem:[%s4 + $0x8] sm:$0xf]
      %v719 = vld [vmem:[%s4 + $0xc] sm:$0xf]
      %s720 = scalar_lea.vmem %s3, 8
      %v721 = vld [vmem:[%s720] sm:$0xf]
      %v722 = vld [vmem:[%s720 + $0x4] sm:$0x1]
      %v725 = vunpack.c.l.b16 %v721
      %v726 = vunpack.c.l.b16 %v722
      %v727 = vpack.c.b16 %v726, %v725
      %v729 = vsel %vm697, %v727, 0
      %731 = vmatpush.bf16.msra.mxu0 0
      %732 = vmatpush.bf16.msra.mxu0 0
      %733 = vmatpush.bf16.msra.mxu0 0
      %734 = vmatpush.bf16.msra.mxu0 0
      %735 = vmatpush.bf16.msra.mxu0 %v689
      %736 = vmatpush.bf16.msra.mxu0 %v688
      %737 = vmatpush.bf16.msra.mxu0 %v687
      %738 = vmatpush.bf16.msra.mxu0 %v686
      %739 = vmatmul.bf16.gmra.mxu0 %v729
      %v740 = vpop.f32.mrf.mxu0
      %v741 = vadd.f32 0.0, %v740
      %v742 = vpop.f32.mrf.mxu0
      %v743 = vadd.f32 0.0, %v742
      %744 = vdwg.mxu0
      %v745 = vpack.c.bf16 %v743, %v741
      %s746 = scalar_lea.vmem %s4, 16
      %v747 = vld [vmem:[%s746] sm:$0xf]
      %v748 = vld [vmem:[%s746 + $0x4] sm:$0xf]
      %v749 = vld [vmem:[%s746 + $0x8] sm:$0xf]
      %v750 = vld [vmem:[%s746 + $0xc] sm:$0xf]
      %v755 = vunpack.c.l.b16 %v747
      %v756 = vunpack.c.l.b16 %v748
      %v757 = vunpack.c.l.b16 %v749
      %v758 = vunpack.c.l.b16 %v750
      %v759 = vpack.c.b16 %v756, %v755
      %v760 = vpack.c.b16 %v758, %v757
      %vm763 = vcmask 261120
      %v765 = vsel %vm763, %v745, 0
      %767 = vmatpush.bf16.msra.mxu0 0
      %768 = vmatpush.bf16.msra.mxu0 0
      %769 = vmatpush.bf16.msra.mxu0 0
      %770 = vmatpush.bf16.msra.mxu0 0
      %771 = vmatpush.bf16.msra.mxu0 0
      %772 = vmatpush.bf16.msra.mxu0 0
      %773 = vmatpush.bf16.msra.mxu0 %v760
      %774 = vmatpush.bf16.msra.mxu0 %v759
      %775 = vmatmul.bf16.gmra.mxu0 %v765
      %v776 = vpop.f32.mrf.mxu0
      %v777 = vadd.f32 0.0, %v776
      %v778 = vpop.f32.mrf.mxu0
      %v779 = vadd.f32 0.0, %v778
      %780 = vdwg.mxu0
      %v785 = vunpack.c.l.b16 %v716
      %v786 = vunpack.c.l.b16 %v717
      %v787 = vunpack.c.l.b16 %v718
      %v788 = vunpack.c.l.b16 %v719
      %v789 = vpack.c.b16 %v786, %v785
      %v790 = vpack.c.b16 %v788, %v787
      %v794 = vsel %vm763, %v715, 0
      %796 = vmatpush.bf16.msra.mxu0 0
      %797 = vmatpush.bf16.msra.mxu0 0
      %798 = vmatpush.bf16.msra.mxu0 0
      %799 = vmatpush.bf16.msra.mxu0 0
      %800 = vmatpush.bf16.msra.mxu0 0
      %801 = vmatpush.bf16.msra.mxu0 0
      %802 = vmatpush.bf16.msra.mxu0 %v790
      %803 = vmatpush.bf16.msra.mxu0 %v789
      %804 = vmatmul.bf16.gmra.mxu0 %v794
      %v805 = vpop.f32.mrf.mxu0
      %v806 = vadd.f32 %v777, %v805
      %v807 = vpop.f32.mrf.mxu0
      %v808 = vadd.f32 %v779, %v807
      %809 = vdwg.mxu0
      %s810 = scalar_lea.vmem %s3, 16
      %v811 = vld [vmem:[%s810] sm:$0xf]
      %v812 = vld [vmem:[%s810 + $0x4] sm:$0x1]
      %v815 = vunpack.c.l.b16 %v811
      %v816 = vunpack.c.l.b16 %v812
      %v817 = vpack.c.b16 %v816, %v815
      %v819 = vsel %vm697, %v817, 0
      %821 = vmatpush.bf16.msra.mxu0 0
      %822 = vmatpush.bf16.msra.mxu0 0
      %823 = vmatpush.bf16.msra.mxu0 0
      %824 = vmatpush.bf16.msra.mxu0 0
      %825 = vmatpush.bf16.msra.mxu0 %v689
      %826 = vmatpush.bf16.msra.mxu0 %v688
      %827 = vmatpush.bf16.msra.mxu0 %v687
      %828 = vmatpush.bf16.msra.mxu0 %v686
      %829 = vmatmul.bf16.gmra.mxu0 %v819
      %v830 = vpop.f32.mrf.mxu0
      %v831 = vadd.f32 0.0, %v830
      %v832 = vpop.f32.mrf.mxu0
      %v833 = vadd.f32 0.0, %v832
      %834 = vdwg.mxu0
      %v835 = vpack.c.bf16 %v833, %v831
      %s836 = scalar_lea.vmem %s4, 32
      %v837 = vld [vmem:[%s836] sm:$0xf]
      %v838 = vld [vmem:[%s836 + $0x4] sm:$0xf]
      %v839 = vld [vmem:[%s836 + $0x8] sm:$0xf]
      %v840 = vld [vmem:[%s836 + $0xc] sm:$0xf]
      %v845 = vunpack.c.l.b16 %v837
      %v846 = vunpack.c.l.b16 %v838
      %v847 = vunpack.c.l.b16 %v839
      %v848 = vunpack.c.l.b16 %v840
      %v849 = vpack.c.b16 %v846, %v845
      %v850 = vpack.c.b16 %v848, %v847
      %v854 = vsel %vm763, %v835, 0
      %856 = vmatpush.bf16.msra.mxu0 0
      %857 = vmatpush.bf16.msra.mxu0 0
      %858 = vmatpush.bf16.msra.mxu0 0
      %859 = vmatpush.bf16.msra.mxu0 0
      %860 = vmatpush.bf16.msra.mxu0 0
      %861 = vmatpush.bf16.msra.mxu0 0
      %862 = vmatpush.bf16.msra.mxu0 %v850
      %863 = vmatpush.bf16.msra.mxu0 %v849
      %864 = vmatmul.bf16.gmra.mxu0 %v854
      %v865 = vpop.f32.mrf.mxu0
      %v866 = vadd.f32 0.0, %v865
      %v867 = vpop.f32.mrf.mxu0
      %v868 = vadd.f32 0.0, %v867
      %869 = vdwg.mxu0
      %v870 = vadd.f32 %v806, %v866
      %v871 = vadd.f32 %v808, %v868
      %s872 = scalar_lea.vmem %s3, 24
      %v873 = vld [vmem:[%s872] sm:$0xf]
      %v874 = vld [vmem:[%s872 + $0x4] sm:$0x1]
      %v877 = vunpack.c.l.b16 %v873
      %v878 = vunpack.c.l.b16 %v874
      %v879 = vpack.c.b16 %v878, %v877
      %v881 = vsel %vm697, %v879, 0
      %883 = vmatpush.bf16.msra.mxu0 0
      %884 = vmatpush.bf16.msra.mxu0 0
      %885 = vmatpush.bf16.msra.mxu0 0
      %886 = vmatpush.bf16.msra.mxu0 0
      %887 = vmatpush.bf16.msra.mxu0 %v689
      %888 = vmatpush.bf16.msra.mxu0 %v688
      %889 = vmatpush.bf16.msra.mxu0 %v687
      %890 = vmatpush.bf16.msra.mxu0 %v686
      %891 = vmatmul.bf16.gmra.mxu0 %v881
      %v892 = vpop.f32.mrf.mxu0
      %v893 = vadd.f32 0.0, %v892
      %v894 = vpop.f32.mrf.mxu0
      %v895 = vadd.f32 0.0, %v894
      %896 = vdwg.mxu0
      %v897 = vpack.c.bf16 %v895, %v893
      %s898 = scalar_lea.vmem %s4, 48
      %v899 = vld [vmem:[%s898] sm:$0xf]
      %v900 = vld [vmem:[%s898 + $0x4] sm:$0xf]
      %v901 = vld [vmem:[%s898 + $0x8] sm:$0xf]
      %v902 = vld [vmem:[%s898 + $0xc] sm:$0xf]
      %v907 = vunpack.c.l.b16 %v899
      %v908 = vunpack.c.l.b16 %v900
      %v909 = vunpack.c.l.b16 %v901
      %v910 = vunpack.c.l.b16 %v902
      %v911 = vpack.c.b16 %v908, %v907
      %v912 = vpack.c.b16 %v910, %v909
      %v916 = vsel %vm763, %v897, 0
      %918 = vmatpush.bf16.msra.mxu0 0
      %919 = vmatpush.bf16.msra.mxu0 0
      %920 = vmatpush.bf16.msra.mxu0 0
      %921 = vmatpush.bf16.msra.mxu0 0
      %922 = vmatpush.bf16.msra.mxu0 0
      %923 = vmatpush.bf16.msra.mxu0 0
      %924 = vmatpush.bf16.msra.mxu0 %v912
      %925 = vmatpush.bf16.msra.mxu0 %v911
      %926 = vmatmul.bf16.gmra.mxu0 %v916
      %v927 = vpop.f32.mrf.mxu0
      %v928 = vadd.f32 0.0, %v927
      %v929 = vpop.f32.mrf.mxu0
      %v930 = vadd.f32 0.0, %v929
      %931 = vdwg.mxu0
      %v932 = vadd.f32 %v870, %v928
      %v933 = vadd.f32 %v871, %v930
      %s934 = scalar_lea.vmem %s3, 32
      %v935 = vld [vmem:[%s934] sm:$0xf]
      %v936 = vld [vmem:[%s934 + $0x4] sm:$0x1]
      %v939 = vunpack.c.l.b16 %v935
      %v940 = vunpack.c.l.b16 %v936
      %v941 = vpack.c.b16 %v940, %v939
      %v943 = vsel %vm697, %v941, 0
      %945 = vmatpush.bf16.msra.mxu0 0
      %946 = vmatpush.bf16.msra.mxu0 0
      %947 = vmatpush.bf16.msra.mxu0 0
      %948 = vmatpush.bf16.msra.mxu0 0
      %949 = vmatpush.bf16.msra.mxu0 %v689
      %950 = vmatpush.bf16.msra.mxu0 %v688
      %951 = vmatpush.bf16.msra.mxu0 %v687
      %952 = vmatpush.bf16.msra.mxu0 %v686
      %953 = vmatmul.bf16.gmra.mxu0 %v943
      %v954 = vpop.f32.mrf.mxu0
      %v955 = vadd.f32 0.0, %v954
      %v956 = vpop.f32.mrf.mxu0
      %v957 = vadd.f32 0.0, %v956
      %958 = vdwg.mxu0
      %v959 = vpack.c.bf16 %v957, %v955
      %s960 = scalar_lea.vmem %s4, 64
      %v961 = vld [vmem:[%s960] sm:$0xf]
      %v962 = vld [vmem:[%s960 + $0x4] sm:$0xf]
      %v963 = vld [vmem:[%s960 + $0x8] sm:$0xf]
      %v964 = vld [vmem:[%s960 + $0xc] sm:$0xf]
      %v969 = vunpack.c.l.b16 %v961
      %v970 = vunpack.c.l.b16 %v962
      %v971 = vunpack.c.l.b16 %v963
      %v972 = vunpack.c.l.b16 %v964
      %v973 = vpack.c.b16 %v970, %v969
      %v974 = vpack.c.b16 %v972, %v971
      %v978 = vsel %vm763, %v959, 0
      %980 = vmatpush.bf16.msra.mxu0 0
      %981 = vmatpush.bf16.msra.mxu0 0
      %982 = vmatpush.bf16.msra.mxu0 0
      %983 = vmatpush.bf16.msra.mxu0 0
      %984 = vmatpush.bf16.msra.mxu0 0
      %985 = vmatpush.bf16.msra.mxu0 0
      %986 = vmatpush.bf16.msra.mxu0 %v974
      %987 = vmatpush.bf16.msra.mxu0 %v973
      %988 = vmatmul.bf16.gmra.mxu0 %v978
      %v989 = vpop.f32.mrf.mxu0
      %v990 = vadd.f32 0.0, %v989
      %v991 = vpop.f32.mrf.mxu0
      %v992 = vadd.f32 0.0, %v991
      %993 = vdwg.mxu0
      %v994 = vadd.f32 %v932, %v990
      %v995 = vadd.f32 %v933, %v992
      %s996 = scalar_lea.vmem %s3, 40
      %v997 = vld [vmem:[%s996] sm:$0xf]
      %v998 = vld [vmem:[%s996 + $0x4] sm:$0x1]
      %v1001 = vunpack.c.l.b16 %v997
      %v1002 = vunpack.c.l.b16 %v998
      %v1003 = vpack.c.b16 %v1002, %v1001
      %v1005 = vsel %vm697, %v1003, 0
      %1007 = vmatpush.bf16.msra.mxu0 0
      %1008 = vmatpush.bf16.msra.mxu0 0
      %1009 = vmatpush.bf16.msra.mxu0 0
      %1010 = vmatpush.bf16.msra.mxu0 0
      %1011 = vmatpush.bf16.msra.mxu0 %v689
      %1012 = vmatpush.bf16.msra.mxu0 %v688
      %1013 = vmatpush.bf16.msra.mxu0 %v687
      %1014 = vmatpush.bf16.msra.mxu0 %v686
      %1015 = vmatmul.bf16.gmra.mxu0 %v1005
      %v1016 = vpop.f32.mrf.mxu0
      %v1017 = vadd.f32 0.0, %v1016
      %v1018 = vpop.f32.mrf.mxu0
      %v1019 = vadd.f32 0.0, %v1018
      %1020 = vdwg.mxu0
      %v1021 = vpack.c.bf16 %v1019, %v1017
      %s1022 = scalar_lea.vmem %s4, 80
      %v1023 = vld [vmem:[%s1022] sm:$0xf]
      %v1024 = vld [vmem:[%s1022 + $0x4] sm:$0xf]
      %v1025 = vld [vmem:[%s1022 + $0x8] sm:$0xf]
      %v1026 = vld [vmem:[%s1022 + $0xc] sm:$0xf]
      %v1031 = vunpack.c.l.b16 %v1023
      %v1032 = vunpack.c.l.b16 %v1024
      %v1033 = vunpack.c.l.b16 %v1025
      %v1034 = vunpack.c.l.b16 %v1026
      %v1035 = vpack.c.b16 %v1032, %v1031
      %v1036 = vpack.c.b16 %v1034, %v1033
      %v1040 = vsel %vm763, %v1021, 0
      %1042 = vmatpush.bf16.msra.mxu0 0
      %1043 = vmatpush.bf16.msra.mxu0 0
      %1044 = vmatpush.bf16.msra.mxu0 0
      %1045 = vmatpush.bf16.msra.mxu0 0
      %1046 = vmatpush.bf16.msra.mxu0 0
      %1047 = vmatpush.bf16.msra.mxu0 0
      %1048 = vmatpush.bf16.msra.mxu0 %v1036
      %1049 = vmatpush.bf16.msra.mxu0 %v1035
      %1050 = vmatmul.bf16.gmra.mxu0 %v1040
      %v1051 = vpop.f32.mrf.mxu0
      %v1052 = vadd.f32 0.0, %v1051
      %v1053 = vpop.f32.mrf.mxu0
      %v1054 = vadd.f32 0.0, %v1053
      %1055 = vdwg.mxu0
      %v1056 = vadd.f32 %v994, %v1052
      %v1057 = vadd.f32 %v995, %v1054
      %s1058 = scalar_lea.vmem %s3, 48
      %v1059 = vld [vmem:[%s1058] sm:$0xf]
      %v1060 = vld [vmem:[%s1058 + $0x4] sm:$0x1]
      %v1063 = vunpack.c.l.b16 %v1059
      %v1064 = vunpack.c.l.b16 %v1060
      %v1065 = vpack.c.b16 %v1064, %v1063
      %v1067 = vsel %vm697, %v1065, 0
      %1069 = vmatpush.bf16.msra.mxu0 0
      %1070 = vmatpush.bf16.msra.mxu0 0
      %1071 = vmatpush.bf16.msra.mxu0 0
      %1072 = vmatpush.bf16.msra.mxu0 0
      %1073 = vmatpush.bf16.msra.mxu0 %v689
      %1074 = vmatpush.bf16.msra.mxu0 %v688
      %1075 = vmatpush.bf16.msra.mxu0 %v687
      %1076 = vmatpush.bf16.msra.mxu0 %v686
      %1077 = vmatmul.bf16.gmra.mxu0 %v1067
      %v1078 = vpop.f32.mrf.mxu0
      %v1079 = vadd.f32 0.0, %v1078
      %v1080 = vpop.f32.mrf.mxu0
      %v1081 = vadd.f32 0.0, %v1080
      %1082 = vdwg.mxu0
      %v1083 = vpack.c.bf16 %v1081, %v1079
      %s1084 = scalar_lea.vmem %s4, 96
      %v1085 = vld [vmem:[%s1084] sm:$0xf]
      %v1086 = vld [vmem:[%s1084 + $0x4] sm:$0xf]
      %v1087 = vld [vmem:[%s1084 + $0x8] sm:$0xf]
      %v1088 = vld [vmem:[%s1084 + $0xc] sm:$0xf]
      %v1093 = vunpack.c.l.b16 %v1085
      %v1094 = vunpack.c.l.b16 %v1086
      %v1095 = vunpack.c.l.b16 %v1087
      %v1096 = vunpack.c.l.b16 %v1088
      %v1097 = vpack.c.b16 %v1094, %v1093
      %v1098 = vpack.c.b16 %v1096, %v1095
      %v1102 = vsel %vm763, %v1083, 0
      %1104 = vmatpush.bf16.msra.mxu0 0
      %1105 = vmatpush.bf16.msra.mxu0 0
      %1106 = vmatpush.bf16.msra.mxu0 0
      %1107 = vmatpush.bf16.msra.mxu0 0
      %1108 = vmatpush.bf16.msra.mxu0 0
      %1109 = vmatpush.bf16.msra.mxu0 0
      %1110 = vmatpush.bf16.msra.mxu0 %v1098
      %1111 = vmatpush.bf16.msra.mxu0 %v1097
      %1112 = vmatmul.bf16.gmra.mxu0 %v1102
      %v1113 = vpop.f32.mrf.mxu0
      %v1114 = vadd.f32 0.0, %v1113
      %v1115 = vpop.f32.mrf.mxu0
      %v1116 = vadd.f32 0.0, %v1115
      %1117 = vdwg.mxu0
      %v1118 = vadd.f32 %v1056, %v1114
      %v1119 = vadd.f32 %v1057, %v1116
      %s1120 = scalar_lea.vmem %s3, 56
      %v1121 = vld [vmem:[%s1120] sm:$0xf]
      %v1122 = vld [vmem:[%s1120 + $0x4] sm:$0x1]
      %v1125 = vunpack.c.l.b16 %v1121
      %v1126 = vunpack.c.l.b16 %v1122
      %v1127 = vpack.c.b16 %v1126, %v1125
      %v1129 = vsel %vm697, %v1127, 0
      %1131 = vmatpush.bf16.msra.mxu0 0
      %1132 = vmatpush.bf16.msra.mxu0 0
      %1133 = vmatpush.bf16.msra.mxu0 0
      %1134 = vmatpush.bf16.msra.mxu0 0
      %1135 = vmatpush.bf16.msra.mxu0 %v689
      %1136 = vmatpush.bf16.msra.mxu0 %v688
      %1137 = vmatpush.bf16.msra.mxu0 %v687
      %1138 = vmatpush.bf16.msra.mxu0 %v686
      %1139 = vmatmul.bf16.gmra.mxu0 %v1129
      %v1140 = vpop.f32.mrf.mxu0
      %v1141 = vadd.f32 0.0, %v1140
      %v1142 = vpop.f32.mrf.mxu0
      %v1143 = vadd.f32 0.0, %v1142
      %1144 = vdwg.mxu0
      %v1145 = vpack.c.bf16 %v1143, %v1141
      %s1146 = scalar_lea.vmem %s4, 112
      %v1147 = vld [vmem:[%s1146] sm:$0xf]
      %v1148 = vld [vmem:[%s1146 + $0x4] sm:$0xf]
      %v1149 = vld [vmem:[%s1146 + $0x8] sm:$0xf]
      %v1150 = vld [vmem:[%s1146 + $0xc] sm:$0xf]
      %v1155 = vunpack.c.l.b16 %v1147
      %v1156 = vunpack.c.l.b16 %v1148
      %v1157 = vunpack.c.l.b16 %v1149
      %v1158 = vunpack.c.l.b16 %v1150
      %v1159 = vpack.c.b16 %v1156, %v1155
      %v1160 = vpack.c.b16 %v1158, %v1157
      %v1164 = vsel %vm763, %v1145, 0
      %1166 = vmatpush.bf16.msra.mxu0 0
      %1167 = vmatpush.bf16.msra.mxu0 0
      %1168 = vmatpush.bf16.msra.mxu0 0
      %1169 = vmatpush.bf16.msra.mxu0 0
      %1170 = vmatpush.bf16.msra.mxu0 0
      %1171 = vmatpush.bf16.msra.mxu0 0
      %1172 = vmatpush.bf16.msra.mxu0 %v1160
      %1173 = vmatpush.bf16.msra.mxu0 %v1159
      %1174 = vmatmul.bf16.gmra.mxu0 %v1164
      %v1175 = vpop.f32.mrf.mxu0
      %v1176 = vadd.f32 0.0, %v1175
      %v1177 = vpop.f32.mrf.mxu0
      %v1178 = vadd.f32 0.0, %v1177
      %1179 = vdwg.mxu0
      %v1180 = vadd.f32 %v1118, %v1176
      %v1181 = vadd.f32 %v1119, %v1178
      %s1182 = scalar_lea.vmem %s3, 64
      %v1183 = vld [vmem:[%s1182] sm:$0xf]
      %v1184 = vld [vmem:[%s1182 + $0x4] sm:$0x1]
      %v1187 = vunpack.c.l.b16 %v1183
      %v1188 = vunpack.c.l.b16 %v1184
      %v1189 = vpack.c.b16 %v1188, %v1187
      %v1191 = vsel %vm697, %v1189, 0
      %1193 = vmatpush.bf16.msra.mxu0 0
      %1194 = vmatpush.bf16.msra.mxu0 0
      %1195 = vmatpush.bf16.msra.mxu0 0
      %1196 = vmatpush.bf16.msra.mxu0 0
      %1197 = vmatpush.bf16.msra.mxu0 %v689
      %1198 = vmatpush.bf16.msra.mxu0 %v688
      %1199 = vmatpush.bf16.msra.mxu0 %v687
      %1200 = vmatpush.bf16.msra.mxu0 %v686
      %1201 = vmatmul.bf16.gmra.mxu0 %v1191
      %v1202 = vpop.f32.mrf.mxu0
      %v1203 = vadd.f32 0.0, %v1202
      %v1204 = vpop.f32.mrf.mxu0
      %v1205 = vadd.f32 0.0, %v1204
      %1206 = vdwg.mxu0
      %v1207 = vpack.c.bf16 %v1205, %v1203
      %s1208 = scalar_lea.vmem %s4, 128
      %v1209 = vld [vmem:[%s1208] sm:$0xf]
      %v1210 = vld [vmem:[%s1208 + $0x4] sm:$0xf]
      %v1211 = vld [vmem:[%s1208 + $0x8] sm:$0xf]
      %v1212 = vld [vmem:[%s1208 + $0xc] sm:$0xf]
      %v1217 = vunpack.c.l.b16 %v1209
      %v1218 = vunpack.c.l.b16 %v1210
      %v1219 = vunpack.c.l.b16 %v1211
      %v1220 = vunpack.c.l.b16 %v1212
      %v1221 = vpack.c.b16 %v1218, %v1217
      %v1222 = vpack.c.b16 %v1220, %v1219
      %v1226 = vsel %vm763, %v1207, 0
      %1228 = vmatpush.bf16.msra.mxu0 0
      %1229 = vmatpush.bf16.msra.mxu0 0
      %1230 = vmatpush.bf16.msra.mxu0 0
      %1231 = vmatpush.bf16.msra.mxu0 0
      %1232 = vmatpush.bf16.msra.mxu0 0
      %1233 = vmatpush.bf16.msra.mxu0 0
      %1234 = vmatpush.bf16.msra.mxu0 %v1222
      %1235 = vmatpush.bf16.msra.mxu0 %v1221
      %1236 = vmatmul.bf16.gmra.mxu0 %v1226
      %v1237 = vpop.f32.mrf.mxu0
      %v1238 = vadd.f32 0.0, %v1237
      %v1239 = vpop.f32.mrf.mxu0
      %v1240 = vadd.f32 0.0, %v1239
      %1241 = vdwg.mxu0
      %v1242 = vadd.f32 %v1180, %v1238
      %v1243 = vadd.f32 %v1181, %v1240
      %s1244 = scalar_lea.vmem %s3, 72
      %v1245 = vld [vmem:[%s1244] sm:$0xf]
      %v1246 = vld [vmem:[%s1244 + $0x4] sm:$0x1]
      %v1249 = vunpack.c.l.b16 %v1245
      %v1250 = vunpack.c.l.b16 %v1246
      %v1251 = vpack.c.b16 %v1250, %v1249
      %v1253 = vsel %vm697, %v1251, 0
      %1255 = vmatpush.bf16.msra.mxu0 0
      %1256 = vmatpush.bf16.msra.mxu0 0
      %1257 = vmatpush.bf16.msra.mxu0 0
      %1258 = vmatpush.bf16.msra.mxu0 0
      %1259 = vmatpush.bf16.msra.mxu0 %v689
      %1260 = vmatpush.bf16.msra.mxu0 %v688
      %1261 = vmatpush.bf16.msra.mxu0 %v687
      %1262 = vmatpush.bf16.msra.mxu0 %v686
      %1263 = vmatmul.bf16.gmra.mxu0 %v1253
      %v1264 = vpop.f32.mrf.mxu0
      %v1265 = vadd.f32 0.0, %v1264
      %v1266 = vpop.f32.mrf.mxu0
      %v1267 = vadd.f32 0.0, %v1266
      %1268 = vdwg.mxu0
      %v1269 = vpack.c.bf16 %v1267, %v1265
      %s1270 = scalar_lea.vmem %s4, 144
      %v1271 = vld [vmem:[%s1270] sm:$0xf]
      %v1272 = vld [vmem:[%s1270 + $0x4] sm:$0xf]
      %v1273 = vld [vmem:[%s1270 + $0x8] sm:$0xf]
      %v1274 = vld [vmem:[%s1270 + $0xc] sm:$0xf]
      %v1279 = vunpack.c.l.b16 %v1271
      %v1280 = vunpack.c.l.b16 %v1272
      %v1281 = vunpack.c.l.b16 %v1273
      %v1282 = vunpack.c.l.b16 %v1274
      %v1283 = vpack.c.b16 %v1280, %v1279
      %v1284 = vpack.c.b16 %v1282, %v1281
      %v1288 = vsel %vm763, %v1269, 0
      %1290 = vmatpush.bf16.msra.mxu0 0
      %1291 = vmatpush.bf16.msra.mxu0 0
      %1292 = vmatpush.bf16.msra.mxu0 0
      %1293 = vmatpush.bf16.msra.mxu0 0
      %1294 = vmatpush.bf16.msra.mxu0 0
      %1295 = vmatpush.bf16.msra.mxu0 0
      %1296 = vmatpush.bf16.msra.mxu0 %v1284
      %1297 = vmatpush.bf16.msra.mxu0 %v1283
      %1298 = vmatmul.bf16.gmra.mxu0 %v1288
      %v1299 = vpop.f32.mrf.mxu0
      %v1300 = vadd.f32 0.0, %v1299
      %v1301 = vpop.f32.mrf.mxu0
      %v1302 = vadd.f32 0.0, %v1301
      %1303 = vdwg.mxu0
      %v1304 = vadd.f32 %v1242, %v1300
      %v1305 = vadd.f32 %v1243, %v1302
      %s1306 = scalar_lea.vmem %s3, 80
      %v1307 = vld [vmem:[%s1306] sm:$0xf]
      %v1308 = vld [vmem:[%s1306 + $0x4] sm:$0x1]
      %v1311 = vunpack.c.l.b16 %v1307
      %v1312 = vunpack.c.l.b16 %v1308
      %v1313 = vpack.c.b16 %v1312, %v1311
      %v1315 = vsel %vm697, %v1313, 0
      %1317 = vmatpush.bf16.msra.mxu0 0
      %1318 = vmatpush.bf16.msra.mxu0 0
      %1319 = vmatpush.bf16.msra.mxu0 0
      %1320 = vmatpush.bf16.msra.mxu0 0
      %1321 = vmatpush.bf16.msra.mxu0 %v689
      %1322 = vmatpush.bf16.msra.mxu0 %v688
      %1323 = vmatpush.bf16.msra.mxu0 %v687
      %1324 = vmatpush.bf16.msra.mxu0 %v686
      %1325 = vmatmul.bf16.gmra.mxu0 %v1315
      %v1326 = vpop.f32.mrf.mxu0
      %v1327 = vadd.f32 0.0, %v1326
      %v1328 = vpop.f32.mrf.mxu0
      %v1329 = vadd.f32 0.0, %v1328
      %1330 = vdwg.mxu0
      %v1331 = vpack.c.bf16 %v1329, %v1327
      %s1332 = scalar_lea.vmem %s4, 160
      %v1333 = vld [vmem:[%s1332] sm:$0xf]
      %v1334 = vld [vmem:[%s1332 + $0x4] sm:$0xf]
      %v1335 = vld [vmem:[%s1332 + $0x8] sm:$0xf]
      %v1336 = vld [vmem:[%s1332 + $0xc] sm:$0xf]
      %v1341 = vunpack.c.l.b16 %v1333
      %v1342 = vunpack.c.l.b16 %v1334
      %v1343 = vunpack.c.l.b16 %v1335
      %v1344 = vunpack.c.l.b16 %v1336
      %v1345 = vpack.c.b16 %v1342, %v1341
      %v1346 = vpack.c.b16 %v1344, %v1343
      %v1350 = vsel %vm763, %v1331, 0
      %1352 = vmatpush.bf16.msra.mxu0 0
      %1353 = vmatpush.bf16.msra.mxu0 0
      %1354 = vmatpush.bf16.msra.mxu0 0
      %1355 = vmatpush.bf16.msra.mxu0 0
      %1356 = vmatpush.bf16.msra.mxu0 0
      %1357 = vmatpush.bf16.msra.mxu0 0
      %1358 = vmatpush.bf16.msra.mxu0 %v1346
      %1359 = vmatpush.bf16.msra.mxu0 %v1345
      %1360 = vmatmul.bf16.gmra.mxu0 %v1350
      %v1361 = vpop.f32.mrf.mxu0
      %v1362 = vadd.f32 0.0, %v1361
      %v1363 = vpop.f32.mrf.mxu0
      %v1364 = vadd.f32 0.0, %v1363
      %1365 = vdwg.mxu0
      %v1366 = vadd.f32 %v1304, %v1362
      %v1367 = vadd.f32 %v1305, %v1364
      %s1368 = scalar_lea.vmem %s3, 88
      %v1369 = vld [vmem:[%s1368] sm:$0xf]
      %v1370 = vld [vmem:[%s1368 + $0x4] sm:$0x1]
      %v1373 = vunpack.c.l.b16 %v1369
      %v1374 = vunpack.c.l.b16 %v1370
      %v1375 = vpack.c.b16 %v1374, %v1373
      %v1377 = vsel %vm697, %v1375, 0
      %1379 = vmatpush.bf16.msra.mxu0 0
      %1380 = vmatpush.bf16.msra.mxu0 0
      %1381 = vmatpush.bf16.msra.mxu0 0
      %1382 = vmatpush.bf16.msra.mxu0 0
      %1383 = vmatpush.bf16.msra.mxu0 %v689
      %1384 = vmatpush.bf16.msra.mxu0 %v688
      %1385 = vmatpush.bf16.msra.mxu0 %v687
      %1386 = vmatpush.bf16.msra.mxu0 %v686
      %1387 = vmatmul.bf16.gmra.mxu0 %v1377
      %v1388 = vpop.f32.mrf.mxu0
      %v1389 = vadd.f32 0.0, %v1388
      %v1390 = vpop.f32.mrf.mxu0
      %v1391 = vadd.f32 0.0, %v1390
      %1392 = vdwg.mxu0
      %v1393 = vpack.c.bf16 %v1391, %v1389
      %s1394 = scalar_lea.vmem %s4, 176
      %v1395 = vld [vmem:[%s1394] sm:$0xf]
      %v1396 = vld [vmem:[%s1394 + $0x4] sm:$0xf]
      %v1397 = vld [vmem:[%s1394 + $0x8] sm:$0xf]
      %v1398 = vld [vmem:[%s1394 + $0xc] sm:$0xf]
      %v1403 = vunpack.c.l.b16 %v1395
      %v1404 = vunpack.c.l.b16 %v1396
      %v1405 = vunpack.c.l.b16 %v1397
      %v1406 = vunpack.c.l.b16 %v1398
      %v1407 = vpack.c.b16 %v1404, %v1403
      %v1408 = vpack.c.b16 %v1406, %v1405
      %v1412 = vsel %vm763, %v1393, 0
      %1414 = vmatpush.bf16.msra.mxu0 0
      %1415 = vmatpush.bf16.msra.mxu0 0
      %1416 = vmatpush.bf16.msra.mxu0 0
      %1417 = vmatpush.bf16.msra.mxu0 0
      %1418 = vmatpush.bf16.msra.mxu0 0
      %1419 = vmatpush.bf16.msra.mxu0 0
      %1420 = vmatpush.bf16.msra.mxu0 %v1408
      %1421 = vmatpush.bf16.msra.mxu0 %v1407
      %1422 = vmatmul.bf16.gmra.mxu0 %v1412
      %v1423 = vpop.f32.mrf.mxu0
      %v1424 = vadd.f32 0.0, %v1423
      %v1425 = vpop.f32.mrf.mxu0
      %v1426 = vadd.f32 0.0, %v1425
      %1427 = vdwg.mxu0
      %v1428 = vadd.f32 %v1366, %v1424
      %v1429 = vadd.f32 %v1367, %v1426
      %s1430 = scalar_lea.vmem %s3, 96
      %v1431 = vld [vmem:[%s1430] sm:$0xf]
      %v1432 = vld [vmem:[%s1430 + $0x4] sm:$0x1]
      %v1435 = vunpack.c.l.b16 %v1431
      %v1436 = vunpack.c.l.b16 %v1432
      %v1437 = vpack.c.b16 %v1436, %v1435
      %v1439 = vsel %vm697, %v1437, 0
      %1441 = vmatpush.bf16.msra.mxu0 0
      %1442 = vmatpush.bf16.msra.mxu0 0
      %1443 = vmatpush.bf16.msra.mxu0 0
      %1444 = vmatpush.bf16.msra.mxu0 0
      %1445 = vmatpush.bf16.msra.mxu0 %v689
      %1446 = vmatpush.bf16.msra.mxu0 %v688
      %1447 = vmatpush.bf16.msra.mxu0 %v687
      %1448 = vmatpush.bf16.msra.mxu0 %v686
      %1449 = vmatmul.bf16.gmra.mxu0 %v1439
      %v1450 = vpop.f32.mrf.mxu0
      %v1451 = vadd.f32 0.0, %v1450
      %v1452 = vpop.f32.mrf.mxu0
      %v1453 = vadd.f32 0.0, %v1452
      %1454 = vdwg.mxu0
      %v1455 = vpack.c.bf16 %v1453, %v1451
      %s1456 = scalar_lea.vmem %s4, 192
      %v1457 = vld [vmem:[%s1456] sm:$0xf]
      %v1458 = vld [vmem:[%s1456 + $0x4] sm:$0xf]
      %v1459 = vld [vmem:[%s1456 + $0x8] sm:$0xf]
      %v1460 = vld [vmem:[%s1456 + $0xc] sm:$0xf]
      %v1465 = vunpack.c.l.b16 %v1457
      %v1466 = vunpack.c.l.b16 %v1458
      %v1467 = vunpack.c.l.b16 %v1459
      %v1468 = vunpack.c.l.b16 %v1460
      %v1469 = vpack.c.b16 %v1466, %v1465
      %v1470 = vpack.c.b16 %v1468, %v1467
      %v1474 = vsel %vm763, %v1455, 0
      %1476 = vmatpush.bf16.msra.mxu0 0
      %1477 = vmatpush.bf16.msra.mxu0 0
      %1478 = vmatpush.bf16.msra.mxu0 0
      %1479 = vmatpush.bf16.msra.mxu0 0
      %1480 = vmatpush.bf16.msra.mxu0 0
      %1481 = vmatpush.bf16.msra.mxu0 0
      %1482 = vmatpush.bf16.msra.mxu0 %v1470
      %1483 = vmatpush.bf16.msra.mxu0 %v1469
      %1484 = vmatmul.bf16.gmra.mxu0 %v1474
      %v1485 = vpop.f32.mrf.mxu0
      %v1486 = vadd.f32 0.0, %v1485
      %v1487 = vpop.f32.mrf.mxu0
      %v1488 = vadd.f32 0.0, %v1487
      %1489 = vdwg.mxu0
      %v1490 = vadd.f32 %v1428, %v1486
      %v1491 = vadd.f32 %v1429, %v1488
      %s1492 = scalar_lea.vmem %s3, 104
      %v1493 = vld [vmem:[%s1492] sm:$0xf]
      %v1494 = vld [vmem:[%s1492 + $0x4] sm:$0x1]
      %v1497 = vunpack.c.l.b16 %v1493
      %v1498 = vunpack.c.l.b16 %v1494
      %v1499 = vpack.c.b16 %v1498, %v1497
      %v1501 = vsel %vm697, %v1499, 0
      %1503 = vmatpush.bf16.msra.mxu0 0
      %1504 = vmatpush.bf16.msra.mxu0 0
      %1505 = vmatpush.bf16.msra.mxu0 0
      %1506 = vmatpush.bf16.msra.mxu0 0
      %1507 = vmatpush.bf16.msra.mxu0 %v689
      %1508 = vmatpush.bf16.msra.mxu0 %v688
      %1509 = vmatpush.bf16.msra.mxu0 %v687
      %1510 = vmatpush.bf16.msra.mxu0 %v686
      %1511 = vmatmul.bf16.gmra.mxu0 %v1501
      %v1512 = vpop.f32.mrf.mxu0
      %v1513 = vadd.f32 0.0, %v1512
      %v1514 = vpop.f32.mrf.mxu0
      %v1515 = vadd.f32 0.0, %v1514
      %1516 = vdwg.mxu0
      %v1517 = vpack.c.bf16 %v1515, %v1513
      %s1518 = scalar_lea.vmem %s4, 208
      %v1519 = vld [vmem:[%s1518] sm:$0xf]
      %v1520 = vld [vmem:[%s1518 + $0x4] sm:$0xf]
      %v1521 = vld [vmem:[%s1518 + $0x8] sm:$0xf]
      %v1522 = vld [vmem:[%s1518 + $0xc] sm:$0xf]
      %v1527 = vunpack.c.l.b16 %v1519
      %v1528 = vunpack.c.l.b16 %v1520
      %v1529 = vunpack.c.l.b16 %v1521
      %v1530 = vunpack.c.l.b16 %v1522
      %v1531 = vpack.c.b16 %v1528, %v1527
      %v1532 = vpack.c.b16 %v1530, %v1529
      %v1536 = vsel %vm763, %v1517, 0
      %1538 = vmatpush.bf16.msra.mxu0 0
      %1539 = vmatpush.bf16.msra.mxu0 0
      %1540 = vmatpush.bf16.msra.mxu0 0
      %1541 = vmatpush.bf16.msra.mxu0 0
      %1542 = vmatpush.bf16.msra.mxu0 0
      %1543 = vmatpush.bf16.msra.mxu0 0
      %1544 = vmatpush.bf16.msra.mxu0 %v1532
      %1545 = vmatpush.bf16.msra.mxu0 %v1531
      %1546 = vmatmul.bf16.gmra.mxu0 %v1536
      %v1547 = vpop.f32.mrf.mxu0
      %v1548 = vadd.f32 0.0, %v1547
      %v1549 = vpop.f32.mrf.mxu0
      %v1550 = vadd.f32 0.0, %v1549
      %1551 = vdwg.mxu0
      %v1552 = vadd.f32 %v1490, %v1548
      %v1553 = vadd.f32 %v1491, %v1550
      %s1554 = scalar_lea.vmem %s3, 112
      %v1555 = vld [vmem:[%s1554] sm:$0xf]
      %v1556 = vld [vmem:[%s1554 + $0x4] sm:$0x1]
      %v1559 = vunpack.c.l.b16 %v1555
      %v1560 = vunpack.c.l.b16 %v1556
      %v1561 = vpack.c.b16 %v1560, %v1559
      %v1563 = vsel %vm697, %v1561, 0
      %1565 = vmatpush.bf16.msra.mxu0 0
      %1566 = vmatpush.bf16.msra.mxu0 0
      %1567 = vmatpush.bf16.msra.mxu0 0
      %1568 = vmatpush.bf16.msra.mxu0 0
      %1569 = vmatpush.bf16.msra.mxu0 %v689
      %1570 = vmatpush.bf16.msra.mxu0 %v688
      %1571 = vmatpush.bf16.msra.mxu0 %v687
      %1572 = vmatpush.bf16.msra.mxu0 %v686
      %1573 = vmatmul.bf16.gmra.mxu0 %v1563
      %v1574 = vpop.f32.mrf.mxu0
      %v1575 = vadd.f32 0.0, %v1574
      %v1576 = vpop.f32.mrf.mxu0
      %v1577 = vadd.f32 0.0, %v1576
      %1578 = vdwg.mxu0
      %v1579 = vpack.c.bf16 %v1577, %v1575
      %s1580 = scalar_lea.vmem %s4, 224
      %v1581 = vld [vmem:[%s1580] sm:$0xf]
      %v1582 = vld [vmem:[%s1580 + $0x4] sm:$0xf]
      %v1583 = vld [vmem:[%s1580 + $0x8] sm:$0xf]
      %v1584 = vld [vmem:[%s1580 + $0xc] sm:$0xf]
      %v1589 = vunpack.c.l.b16 %v1581
      %v1590 = vunpack.c.l.b16 %v1582
      %v1591 = vunpack.c.l.b16 %v1583
      %v1592 = vunpack.c.l.b16 %v1584
      %v1593 = vpack.c.b16 %v1590, %v1589
      %v1594 = vpack.c.b16 %v1592, %v1591
      %v1598 = vsel %vm763, %v1579, 0
      %1600 = vmatpush.bf16.msra.mxu0 0
      %1601 = vmatpush.bf16.msra.mxu0 0
      %1602 = vmatpush.bf16.msra.mxu0 0
      %1603 = vmatpush.bf16.msra.mxu0 0
      %1604 = vmatpush.bf16.msra.mxu0 0
      %1605 = vmatpush.bf16.msra.mxu0 0
      %1606 = vmatpush.bf16.msra.mxu0 %v1594
      %1607 = vmatpush.bf16.msra.mxu0 %v1593
      %1608 = vmatmul.bf16.gmra.mxu0 %v1598
      %v1609 = vpop.f32.mrf.mxu0
      %v1610 = vadd.f32 0.0, %v1609
      %v1611 = vpop.f32.mrf.mxu0
      %v1612 = vadd.f32 0.0, %v1611
      %1613 = vdwg.mxu0
      %v1614 = vadd.f32 %v1552, %v1610
      %v1615 = vadd.f32 %v1553, %v1612
      %s1616 = scalar_lea.vmem %s3, 120
      %v1617 = vld [vmem:[%s1616] sm:$0xf]
      %v1618 = vld [vmem:[%s1616 + $0x4] sm:$0x1]
      %v1621 = vunpack.c.l.b16 %v1617
      %v1622 = vunpack.c.l.b16 %v1618
      %v1623 = vpack.c.b16 %v1622, %v1621
      %v1625 = vsel %vm697, %v1623, 0
      %1627 = vmatpush.bf16.msra.mxu0 0
      %1628 = vmatpush.bf16.msra.mxu0 0
      %1629 = vmatpush.bf16.msra.mxu0 0
      %1630 = vmatpush.bf16.msra.mxu0 0
      %1631 = vmatpush.bf16.msra.mxu0 %v689
      %1632 = vmatpush.bf16.msra.mxu0 %v688
      %1633 = vmatpush.bf16.msra.mxu0 %v687
      %1634 = vmatpush.bf16.msra.mxu0 %v686
      %1635 = vmatmul.bf16.gmra.mxu0 %v1625
      %v1636 = vpop.f32.mrf.mxu0
      %v1637 = vadd.f32 0.0, %v1636
      %v1638 = vpop.f32.mrf.mxu0
      %v1639 = vadd.f32 0.0, %v1638
      %1640 = vdwg.mxu0
      %v1641 = vpack.c.bf16 %v1639, %v1637
      %s1642 = scalar_lea.vmem %s4, 240
      %v1643 = vld [vmem:[%s1642] sm:$0xf]
      %v1644 = vld [vmem:[%s1642 + $0x4] sm:$0xf]
      %v1645 = vld [vmem:[%s1642 + $0x8] sm:$0xf]
      %v1646 = vld [vmem:[%s1642 + $0xc] sm:$0xf]
      %v1651 = vunpack.c.l.b16 %v1643
      %v1652 = vunpack.c.l.b16 %v1644
      %v1653 = vunpack.c.l.b16 %v1645
      %v1654 = vunpack.c.l.b16 %v1646
      %v1655 = vpack.c.b16 %v1652, %v1651
      %v1656 = vpack.c.b16 %v1654, %v1653
      %v1660 = vsel %vm763, %v1641, 0
      %1662 = vmatpush.bf16.msra.mxu0 0
      %1663 = vmatpush.bf16.msra.mxu0 0
      %1664 = vmatpush.bf16.msra.mxu0 0
      %1665 = vmatpush.bf16.msra.mxu0 0
      %1666 = vmatpush.bf16.msra.mxu0 0
      %1667 = vmatpush.bf16.msra.mxu0 0
      %1668 = vmatpush.bf16.msra.mxu0 %v1656
      %1669 = vmatpush.bf16.msra.mxu0 %v1655
      %1670 = vmatmul.bf16.gmra.mxu0 %v1660
      %v1671 = vpop.f32.mrf.mxu0
      %v1672 = vadd.f32 0.0, %v1671
      %v1673 = vpop.f32.mrf.mxu0
      %v1674 = vadd.f32 0.0, %v1673
      %1675 = vdwg.mxu0
      %v1676 = vadd.f32 %v1614, %v1672
      %v1677 = vadd.f32 %v1615, %v1674
      %v1678 = vld [vmem:[%s5] sm:$0x1]
      %v1680 = vperm.slane %v1678, 0
      %v1682 = vadd.f32 %v1676, %v1680
      %v1683 = vadd.f32 %v1677, %v1680
      %v1684 = vmax.f32 %v1682, 0.0
      %v1685 = vmax.f32 %v1683, 0.0
      %v1686 = vpack.c.bf16 %v1685, %v1684
      %v1687 = vld [vmem:[%s6] sm:$0x1]
      %vm1688 = vcmask 72704
      %v1690 = vsel %vm1688, %v1687, 0
      %vm1692 = vcmask 1043456
      %vm1693 = vcmask 1044480
      %v1694 = vsel %vm1692, 4294967295, 65535
      %v1695 = vsel %vm1693, %v1694, 0
      %v1697 = vand.u32 %v1686, %v1695
      %1699 = vmatpush.bf16.msra.mxu0 0
      %1700 = vmatpush.bf16.msra.mxu0 0
      %1701 = vmatpush.bf16.msra.mxu0 0
      %1702 = vmatpush.bf16.msra.mxu0 0
      %1703 = vmatpush.bf16.msra.mxu0 0
      %1704 = vmatpush.bf16.msra.mxu0 0
      %1705 = vmatpush.bf16.msra.mxu0 0
      %1706 = vmatpush.bf16.msra.mxu0 %v1697
      %1707 = vmatmul.bf16.gmra.mxu0 %v1690
      %v1708 = vpop.f32.mrf.mxu0
      %v1709 = vadd.f32 0.0, %v1708
      %v1710 = vpop.f32.mrf.mxu0
      %1711 = vdwg.mxu0
      %v1712 = vpack.c.bf16 %v1709, %v1709
      %v1713 = vld [vmem:[%s7] sm:$0xf]
      %v1714 = vld [vmem:[%s7 + $0x4] sm:$0xf]
      %v1715 = vld [vmem:[%s7 + $0x8] sm:$0xf]
      %v1716 = vld [vmem:[%s7 + $0xc] sm:$0xf]
      %v1717 = vld [vmem:[%s7 + $0x10] sm:$0xf]
      %v1718 = vld [vmem:[%s7 + $0x14] sm:$0xf]
      %v1719 = vld [vmem:[%s7 + $0x18] sm:$0xf]
      %v1720 = vld [vmem:[%s7 + $0x1c] sm:$0xf]
      %s1721 = scalar_lea.vmem %s6, 1
      %v1722 = vld [vmem:[%s1721] sm:$0x1]
      %v1724 = vsel %vm1688, %v1722, 0
      %1726 = vmatpush.bf16.msra.mxu0 0
      %1727 = vmatpush.bf16.msra.mxu0 0
      %1728 = vmatpush.bf16.msra.mxu0 0
      %1729 = vmatpush.bf16.msra.mxu0 0
      %1730 = vmatpush.bf16.msra.mxu0 0
      %1731 = vmatpush.bf16.msra.mxu0 0
      %1732 = vmatpush.bf16.msra.mxu0 0
      %1733 = vmatpush.bf16.msra.mxu0 %v1697
      %1734 = vmatmul.bf16.gmra.mxu0 %v1724
      %v1735 = vpop.f32.mrf.mxu0
      %v1736 = vadd.f32 0.0, %v1735
      %v1737 = vpop.f32.mrf.mxu0
      %1738 = vdwg.mxu0
      %v1739 = vpack.c.bf16 %v1736, %v1736
      %s1740 = scalar_lea.vmem %s7, 32
      %v1741 = vld [vmem:[%s1740] sm:$0xf]
      %v1742 = vld [vmem:[%s1740 + $0x4] sm:$0xf]
      %v1743 = vld [vmem:[%s1740 + $0x8] sm:$0xf]
      %v1744 = vld [vmem:[%s1740 + $0xc] sm:$0xf]
      %v1745 = vld [vmem:[%s1740 + $0x10] sm:$0xf]
      %v1746 = vld [vmem:[%s1740 + $0x14] sm:$0xf]
      %v1747 = vld [vmem:[%s1740 + $0x18] sm:$0xf]
      %v1748 = vld [vmem:[%s1740 + $0x1c] sm:$0xf]
      %v1757 = vunpack.c.l.b16 %v1741
      %v1758 = vunpack.c.l.b16 %v1742
      %v1759 = vunpack.c.l.b16 %v1743
      %v1760 = vunpack.c.l.b16 %v1744
      %v1761 = vunpack.c.l.b16 %v1745
      %v1762 = vunpack.c.l.b16 %v1746
      %v1763 = vunpack.c.l.b16 %v1747
      %v1764 = vunpack.c.l.b16 %v1748
      %v1765 = vpack.c.b16 %v1758, %v1757
      %v1766 = vpack.c.b16 %v1760, %v1759
      %v1767 = vpack.c.b16 %v1762, %v1761
      %v1768 = vpack.c.b16 %v1764, %v1763
      %v1774 = vsel %vm697, %v1739, 0
      %1776 = vmatpush.bf16.msra.mxu0 0
      %1777 = vmatpush.bf16.msra.mxu0 0
      %1778 = vmatpush.bf16.msra.mxu0 0
      %1779 = vmatpush.bf16.msra.mxu0 0
      %1780 = vmatpush.bf16.msra.mxu0 %v1768
      %1781 = vmatpush.bf16.msra.mxu0 %v1767
      %1782 = vmatpush.bf16.msra.mxu0 %v1766
      %1783 = vmatpush.bf16.msra.mxu0 %v1765
      %1784 = vmatmul.bf16.gmra.mxu0 %v1774
      %v1785 = vpop.f32.mrf.mxu0
      %v1786 = vadd.f32 0.0, %v1785
      %v1787 = vpop.f32.mrf.mxu0
      %1788 = vdwg.mxu0
      %v1797 = vunpack.c.l.b16 %v1713
      %v1798 = vunpack.c.l.b16 %v1714
      %v1799 = vunpack.c.l.b16 %v1715
      %v1800 = vunpack.c.l.b16 %v1716
      %v1801 = vunpack.c.l.b16 %v1717
      %v1802 = vunpack.c.l.b16 %v1718
      %v1803 = vunpack.c.l.b16 %v1719
      %v1804 = vunpack.c.l.b16 %v1720
      %v1805 = vpack.c.b16 %v1798, %v1797
      %v1806 = vpack.c.b16 %v1800, %v1799
      %v1807 = vpack.c.b16 %v1802, %v1801
      %v1808 = vpack.c.b16 %v1804, %v1803
      %v1814 = vsel %vm697, %v1712, 0
      %1816 = vmatpush.bf16.msra.mxu0 0
      %1817 = vmatpush.bf16.msra.mxu0 0
      %1818 = vmatpush.bf16.msra.mxu0 0
      %1819 = vmatpush.bf16.msra.mxu0 0
      %1820 = vmatpush.bf16.msra.mxu0 %v1808
      %1821 = vmatpush.bf16.msra.mxu0 %v1807
      %1822 = vmatpush.bf16.msra.mxu0 %v1806
      %1823 = vmatpush.bf16.msra.mxu0 %v1805
      %1824 = vmatmul.bf16.gmra.mxu0 %v1814
      %v1825 = vpop.f32.mrf.mxu0
      %v1826 = vadd.f32 %v1786, %v1825
      %v1827 = vpop.f32.mrf.mxu0
      %1828 = vdwg.mxu0
      %s1829 = scalar_lea.vmem %s6, 2
      %v1830 = vld [vmem:[%s1829] sm:$0x1]
      %v1832 = vsel %vm1688, %v1830, 0
      %1834 = vmatpush.bf16.msra.mxu0 0
      %1835 = vmatpush.bf16.msra.mxu0 0
      %1836 = vmatpush.bf16.msra.mxu0 0
      %1837 = vmatpush.bf16.msra.mxu0 0
      %1838 = vmatpush.bf16.msra.mxu0 0
      %1839 = vmatpush.bf16.msra.mxu0 0
      %1840 = vmatpush.bf16.msra.mxu0 0
      %1841 = vmatpush.bf16.msra.mxu0 %v1697
      %1842 = vmatmul.bf16.gmra.mxu0 %v1832
      %v1843 = vpop.f32.mrf.mxu0
      %v1844 = vadd.f32 0.0, %v1843
      %v1845 = vpop.f32.mrf.mxu0
      %1846 = vdwg.mxu0
      %v1847 = vpack.c.bf16 %v1844, %v1844
      %s1848 = scalar_lea.vmem %s7, 64
      %v1849 = vld [vmem:[%s1848] sm:$0xf]
      %v1850 = vld [vmem:[%s1848 + $0x4] sm:$0xf]
      %v1851 = vld [vmem:[%s1848 + $0x8] sm:$0xf]
      %v1852 = vld [vmem:[%s1848 + $0xc] sm:$0xf]
      %v1853 = vld [vmem:[%s1848 + $0x10] sm:$0xf]
      %v1854 = vld [vmem:[%s1848 + $0x14] sm:$0xf]
      %v1855 = vld [vmem:[%s1848 + $0x18] sm:$0xf]
      %v1856 = vld [vmem:[%s1848 + $0x1c] sm:$0xf]
      %v1865 = vunpack.c.l.b16 %v1849
      %v1866 = vunpack.c.l.b16 %v1850
      %v1867 = vunpack.c.l.b16 %v1851
      %v1868 = vunpack.c.l.b16 %v1852
      %v1869 = vunpack.c.l.b16 %v1853
      %v1870 = vunpack.c.l.b16 %v1854
      %v1871 = vunpack.c.l.b16 %v1855
      %v1872 = vunpack.c.l.b16 %v1856
      %v1873 = vpack.c.b16 %v1866, %v1865
      %v1874 = vpack.c.b16 %v1868, %v1867
      %v1875 = vpack.c.b16 %v1870, %v1869
      %v1876 = vpack.c.b16 %v1872, %v1871
      %v1882 = vsel %vm697, %v1847, 0
      %1884 = vmatpush.bf16.msra.mxu0 0
      %1885 = vmatpush.bf16.msra.mxu0 0
      %1886 = vmatpush.bf16.msra.mxu0 0
      %1887 = vmatpush.bf16.msra.mxu0 0
      %1888 = vmatpush.bf16.msra.mxu0 %v1876
      %1889 = vmatpush.bf16.msra.mxu0 %v1875
      %1890 = vmatpush.bf16.msra.mxu0 %v1874
      %1891 = vmatpush.bf16.msra.mxu0 %v1873
      %1892 = vmatmul.bf16.gmra.mxu0 %v1882
      %v1893 = vpop.f32.mrf.mxu0
      %v1894 = vadd.f32 0.0, %v1893
      %v1895 = vpop.f32.mrf.mxu0
      %1896 = vdwg.mxu0
      %v1897 = vadd.f32 %v1826, %v1894
      %s1898 = scalar_lea.vmem %s6, 3
      %v1899 = vld [vmem:[%s1898] sm:$0x1]
      %v1901 = vsel %vm1688, %v1899, 0
      %1903 = vmatpush.bf16.msra.mxu0 0
      %1904 = vmatpush.bf16.msra.mxu0 0
      %1905 = vmatpush.bf16.msra.mxu0 0
      %1906 = vmatpush.bf16.msra.mxu0 0
      %1907 = vmatpush.bf16.msra.mxu0 0
      %1908 = vmatpush.bf16.msra.mxu0 0
      %1909 = vmatpush.bf16.msra.mxu0 0
      %1910 = vmatpush.bf16.msra.mxu0 %v1697
      %1911 = vmatmul.bf16.gmra.mxu0 %v1901
      %v1912 = vpop.f32.mrf.mxu0
      %v1913 = vadd.f32 0.0, %v1912
      %v1914 = vpop.f32.mrf.mxu0
      %1915 = vdwg.mxu0
      %v1916 = vpack.c.bf16 %v1913, %v1913
      %s1917 = scalar_lea.vmem %s7, 96
      %v1918 = vld [vmem:[%s1917] sm:$0xf]
      %v1919 = vld [vmem:[%s1917 + $0x4] sm:$0xf]
      %v1920 = vld [vmem:[%s1917 + $0x8] sm:$0xf]
      %v1921 = vld [vmem:[%s1917 + $0xc] sm:$0xf]
      %v1922 = vld [vmem:[%s1917 + $0x10] sm:$0xf]
      %v1923 = vld [vmem:[%s1917 + $0x14] sm:$0xf]
      %v1924 = vld [vmem:[%s1917 + $0x18] sm:$0xf]
      %v1925 = vld [vmem:[%s1917 + $0x1c] sm:$0xf]
      %v1934 = vunpack.c.l.b16 %v1918
      %v1935 = vunpack.c.l.b16 %v1919
      %v1936 = vunpack.c.l.b16 %v1920
      %v1937 = vunpack.c.l.b16 %v1921
      %v1938 = vunpack.c.l.b16 %v1922
      %v1939 = vunpack.c.l.b16 %v1923
      %v1940 = vunpack.c.l.b16 %v1924
      %v1941 = vunpack.c.l.b16 %v1925
      %v1942 = vpack.c.b16 %v1935, %v1934
      %v1943 = vpack.c.b16 %v1937, %v1936
      %v1944 = vpack.c.b16 %v1939, %v1938
      %v1945 = vpack.c.b16 %v1941, %v1940
      %v1951 = vsel %vm697, %v1916, 0
      %1953 = vmatpush.bf16.msra.mxu0 0
      %1954 = vmatpush.bf16.msra.mxu0 0
      %1955 = vmatpush.bf16.msra.mxu0 0
      %1956 = vmatpush.bf16.msra.mxu0 0
      %1957 = vmatpush.bf16.msra.mxu0 %v1945
      %1958 = vmatpush.bf16.msra.mxu0 %v1944
      %1959 = vmatpush.bf16.msra.mxu0 %v1943
      %1960 = vmatpush.bf16.msra.mxu0 %v1942
      %1961 = vmatmul.bf16.gmra.mxu0 %v1951
      %v1962 = vpop.f32.mrf.mxu0
      %v1963 = vadd.f32 0.0, %v1962
      %v1964 = vpop.f32.mrf.mxu0
      %1965 = vdwg.mxu0
      %v1966 = vadd.f32 %v1897, %v1963
      %s1967 = scalar_lea.vmem %s6, 4
      %v1968 = vld [vmem:[%s1967] sm:$0x1]
      %v1970 = vsel %vm1688, %v1968, 0
      %1972 = vmatpush.bf16.msra.mxu0 0
      %1973 = vmatpush.bf16.msra.mxu0 0
      %1974 = vmatpush.bf16.msra.mxu0 0
      %1975 = vmatpush.bf16.msra.mxu0 0
      %1976 = vmatpush.bf16.msra.mxu0 0
      %1977 = vmatpush.bf16.msra.mxu0 0
      %1978 = vmatpush.bf16.msra.mxu0 0
      %1979 = vmatpush.bf16.msra.mxu0 %v1697
      %1980 = vmatmul.bf16.gmra.mxu0 %v1970
      %v1981 = vpop.f32.mrf.mxu0
      %v1982 = vadd.f32 0.0, %v1981
      %v1983 = vpop.f32.mrf.mxu0
      %1984 = vdwg.mxu0
      %v1985 = vpack.c.bf16 %v1982, %v1982
      %s1986 = scalar_lea.vmem %s7, 128
      %v1987 = vld [vmem:[%s1986] sm:$0xf]
      %v1988 = vld [vmem:[%s1986 + $0x4] sm:$0xf]
      %v1989 = vld [vmem:[%s1986 + $0x8] sm:$0xf]
      %v1990 = vld [vmem:[%s1986 + $0xc] sm:$0xf]
      %v1991 = vld [vmem:[%s1986 + $0x10] sm:$0xf]
      %v1992 = vld [vmem:[%s1986 + $0x14] sm:$0xf]
      %v1993 = vld [vmem:[%s1986 + $0x18] sm:$0xf]
      %v1994 = vld [vmem:[%s1986 + $0x1c] sm:$0xf]
      %v2003 = vunpack.c.l.b16 %v1987
      %v2004 = vunpack.c.l.b16 %v1988
      %v2005 = vunpack.c.l.b16 %v1989
      %v2006 = vunpack.c.l.b16 %v1990
      %v2007 = vunpack.c.l.b16 %v1991
      %v2008 = vunpack.c.l.b16 %v1992
      %v2009 = vunpack.c.l.b16 %v1993
      %v2010 = vunpack.c.l.b16 %v1994
      %v2011 = vpack.c.b16 %v2004, %v2003
      %v2012 = vpack.c.b16 %v2006, %v2005
      %v2013 = vpack.c.b16 %v2008, %v2007
      %v2014 = vpack.c.b16 %v2010, %v2009
      %v2020 = vsel %vm697, %v1985, 0
      %2022 = vmatpush.bf16.msra.mxu0 0
      %2023 = vmatpush.bf16.msra.mxu0 0
      %2024 = vmatpush.bf16.msra.mxu0 0
      %2025 = vmatpush.bf16.msra.mxu0 0
      %2026 = vmatpush.bf16.msra.mxu0 %v2014
      %2027 = vmatpush.bf16.msra.mxu0 %v2013
      %2028 = vmatpush.bf16.msra.mxu0 %v2012
      %2029 = vmatpush.bf16.msra.mxu0 %v2011
      %2030 = vmatmul.bf16.gmra.mxu0 %v2020
      %v2031 = vpop.f32.mrf.mxu0
      %v2032 = vadd.f32 0.0, %v2031
      %v2033 = vpop.f32.mrf.mxu0
      %2034 = vdwg.mxu0
      %v2035 = vadd.f32 %v1966, %v2032
      %s2036 = scalar_lea.vmem %s6, 5
      %v2037 = vld [vmem:[%s2036] sm:$0x1]
      %v2039 = vsel %vm1688, %v2037, 0
      %2041 = vmatpush.bf16.msra.mxu0 0
      %2042 = vmatpush.bf16.msra.mxu0 0
      %2043 = vmatpush.bf16.msra.mxu0 0
      %2044 = vmatpush.bf16.msra.mxu0 0
      %2045 = vmatpush.bf16.msra.mxu0 0
      %2046 = vmatpush.bf16.msra.mxu0 0
      %2047 = vmatpush.bf16.msra.mxu0 0
      %2048 = vmatpush.bf16.msra.mxu0 %v1697
      %2049 = vmatmul.bf16.gmra.mxu0 %v2039
      %v2050 = vpop.f32.mrf.mxu0
      %v2051 = vadd.f32 0.0, %v2050
      %v2052 = vpop.f32.mrf.mxu0
      %2053 = vdwg.mxu0
      %v2054 = vpack.c.bf16 %v2051, %v2051
      %s2055 = scalar_lea.vmem %s7, 160
      %v2056 = vld [vmem:[%s2055] sm:$0xf]
      %v2057 = vld [vmem:[%s2055 + $0x4] sm:$0xf]
      %v2058 = vld [vmem:[%s2055 + $0x8] sm:$0xf]
      %v2059 = vld [vmem:[%s2055 + $0xc] sm:$0xf]
      %v2060 = vld [vmem:[%s2055 + $0x10] sm:$0xf]
      %v2061 = vld [vmem:[%s2055 + $0x14] sm:$0xf]
      %v2062 = vld [vmem:[%s2055 + $0x18] sm:$0xf]
      %v2063 = vld [vmem:[%s2055 + $0x1c] sm:$0xf]
      %v2072 = vunpack.c.l.b16 %v2056
      %v2073 = vunpack.c.l.b16 %v2057
      %v2074 = vunpack.c.l.b16 %v2058
      %v2075 = vunpack.c.l.b16 %v2059
      %v2076 = vunpack.c.l.b16 %v2060
      %v2077 = vunpack.c.l.b16 %v2061
      %v2078 = vunpack.c.l.b16 %v2062
      %v2079 = vunpack.c.l.b16 %v2063
      %v2080 = vpack.c.b16 %v2073, %v2072
      %v2081 = vpack.c.b16 %v2075, %v2074
      %v2082 = vpack.c.b16 %v2077, %v2076
      %v2083 = vpack.c.b16 %v2079, %v2078
      %v2089 = vsel %vm697, %v2054, 0
      %2091 = vmatpush.bf16.msra.mxu0 0
      %2092 = vmatpush.bf16.msra.mxu0 0
      %2093 = vmatpush.bf16.msra.mxu0 0
      %2094 = vmatpush.bf16.msra.mxu0 0
      %2095 = vmatpush.bf16.msra.mxu0 %v2083
      %2096 = vmatpush.bf16.msra.mxu0 %v2082
      %2097 = vmatpush.bf16.msra.mxu0 %v2081
      %2098 = vmatpush.bf16.msra.mxu0 %v2080
      %2099 = vmatmul.bf16.gmra.mxu0 %v2089
      %v2100 = vpop.f32.mrf.mxu0
      %v2101 = vadd.f32 0.0, %v2100
      %v2102 = vpop.f32.mrf.mxu0
      %2103 = vdwg.mxu0
      %v2104 = vadd.f32 %v2035, %v2101
      %s2105 = scalar_lea.vmem %s6, 6
      %v2106 = vld [vmem:[%s2105] sm:$0x1]
      %v2108 = vsel %vm1688, %v2106, 0
      %2110 = vmatpush.bf16.msra.mxu0 0
      %2111 = vmatpush.bf16.msra.mxu0 0
      %2112 = vmatpush.bf16.msra.mxu0 0
      %2113 = vmatpush.bf16.msra.mxu0 0
      %2114 = vmatpush.bf16.msra.mxu0 0
      %2115 = vmatpush.bf16.msra.mxu0 0
      %2116 = vmatpush.bf16.msra.mxu0 0
      %2117 = vmatpush.bf16.msra.mxu0 %v1697
      %2118 = vmatmul.bf16.gmra.mxu0 %v2108
      %v2119 = vpop.f32.mrf.mxu0
      %v2120 = vadd.f32 0.0, %v2119
      %v2121 = vpop.f32.mrf.mxu0
      %2122 = vdwg.mxu0
      %v2123 = vpack.c.bf16 %v2120, %v2120
      %s2124 = scalar_lea.vmem %s7, 192
      %v2125 = vld [vmem:[%s2124] sm:$0xf]
      %v2126 = vld [vmem:[%s2124 + $0x4] sm:$0xf]
      %v2127 = vld [vmem:[%s2124 + $0x8] sm:$0xf]
      %v2128 = vld [vmem:[%s2124 + $0xc] sm:$0xf]
      %v2129 = vld [vmem:[%s2124 + $0x10] sm:$0xf]
      %v2130 = vld [vmem:[%s2124 + $0x14] sm:$0xf]
      %v2131 = vld [vmem:[%s2124 + $0x18] sm:$0xf]
      %v2132 = vld [vmem:[%s2124 + $0x1c] sm:$0xf]
      %v2141 = vunpack.c.l.b16 %v2125
      %v2142 = vunpack.c.l.b16 %v2126
      %v2143 = vunpack.c.l.b16 %v2127
      %v2144 = vunpack.c.l.b16 %v2128
      %v2145 = vunpack.c.l.b16 %v2129
      %v2146 = vunpack.c.l.b16 %v2130
      %v2147 = vunpack.c.l.b16 %v2131
      %v2148 = vunpack.c.l.b16 %v2132
      %v2149 = vpack.c.b16 %v2142, %v2141
      %v2150 = vpack.c.b16 %v2144, %v2143
      %v2151 = vpack.c.b16 %v2146, %v2145
      %v2152 = vpack.c.b16 %v2148, %v2147
      %v2158 = vsel %vm697, %v2123, 0
      %2160 = vmatpush.bf16.msra.mxu0 0
      %2161 = vmatpush.bf16.msra.mxu0 0
      %2162 = vmatpush.bf16.msra.mxu0 0
      %2163 = vmatpush.bf16.msra.mxu0 0
      %2164 = vmatpush.bf16.msra.mxu0 %v2152
      %2165 = vmatpush.bf16.msra.mxu0 %v2151
      %2166 = vmatpush.bf16.msra.mxu0 %v2150
      %2167 = vmatpush.bf16.msra.mxu0 %v2149
      %2168 = vmatmul.bf16.gmra.mxu0 %v2158
      %v2169 = vpop.f32.mrf.mxu0
      %v2170 = vadd.f32 0.0, %v2169
      %v2171 = vpop.f32.mrf.mxu0
      %2172 = vdwg.mxu0
      %v2173 = vadd.f32 %v2104, %v2170
      %s2174 = scalar_lea.vmem %s6, 7
      %v2175 = vld [vmem:[%s2174] sm:$0x1]
      %v2177 = vsel %vm1688, %v2175, 0
      %2179 = vmatpush.bf16.msra.mxu0 0
      %2180 = vmatpush.bf16.msra.mxu0 0
      %2181 = vmatpush.bf16.msra.mxu0 0
      %2182 = vmatpush.bf16.msra.mxu0 0
      %2183 = vmatpush.bf16.msra.mxu0 0
      %2184 = vmatpush.bf16.msra.mxu0 0
      %2185 = vmatpush.bf16.msra.mxu0 0
      %2186 = vmatpush.bf16.msra.mxu0 %v1697
      %2187 = vmatmul.bf16.gmra.mxu0 %v2177
      %v2188 = vpop.f32.mrf.mxu0
      %v2189 = vadd.f32 0.0, %v2188
      %v2190 = vpop.f32.mrf.mxu0
      %2191 = vdwg.mxu0
      %v2192 = vpack.c.bf16 %v2189, %v2189
      %s2193 = scalar_lea.vmem %s7, 224
      %v2194 = vld [vmem:[%s2193] sm:$0xf]
      %v2195 = vld [vmem:[%s2193 + $0x4] sm:$0xf]
      %v2196 = vld [vmem:[%s2193 + $0x8] sm:$0xf]
      %v2197 = vld [vmem:[%s2193 + $0xc] sm:$0xf]
      %v2198 = vld [vmem:[%s2193 + $0x10] sm:$0xf]
      %v2199 = vld [vmem:[%s2193 + $0x14] sm:$0xf]
      %v2200 = vld [vmem:[%s2193 + $0x18] sm:$0xf]
      %v2201 = vld [vmem:[%s2193 + $0x1c] sm:$0xf]
      %v2210 = vunpack.c.l.b16 %v2194
      %v2211 = vunpack.c.l.b16 %v2195
      %v2212 = vunpack.c.l.b16 %v2196
      %v2213 = vunpack.c.l.b16 %v2197
      %v2214 = vunpack.c.l.b16 %v2198
      %v2215 = vunpack.c.l.b16 %v2199
      %v2216 = vunpack.c.l.b16 %v2200
      %v2217 = vunpack.c.l.b16 %v2201
      %v2218 = vpack.c.b16 %v2211, %v2210
      %v2219 = vpack.c.b16 %v2213, %v2212
      %v2220 = vpack.c.b16 %v2215, %v2214
      %v2221 = vpack.c.b16 %v2217, %v2216
      %v2227 = vsel %vm697, %v2192, 0
      %2229 = vmatpush.bf16.msra.mxu0 0
      %2230 = vmatpush.bf16.msra.mxu0 0
      %2231 = vmatpush.bf16.msra.mxu0 0
      %2232 = vmatpush.bf16.msra.mxu0 0
      %2233 = vmatpush.bf16.msra.mxu0 %v2221
      %2234 = vmatpush.bf16.msra.mxu0 %v2220
      %2235 = vmatpush.bf16.msra.mxu0 %v2219
      %2236 = vmatpush.bf16.msra.mxu0 %v2218
      %2237 = vmatmul.bf16.gmra.mxu0 %v2227
      %v2238 = vpop.f32.mrf.mxu0
      %v2239 = vadd.f32 0.0, %v2238
      %v2240 = vpop.f32.mrf.mxu0
      %2241 = vdwg.mxu0
      %v2242 = vadd.f32 %v2173, %v2239
      %s2243 = scalar_lea.vmem %s6, 8
      %v2244 = vld [vmem:[%s2243] sm:$0x1]
      %v2246 = vsel %vm1688, %v2244, 0
      %2248 = vmatpush.bf16.msra.mxu0 0
      %2249 = vmatpush.bf16.msra.mxu0 0
      %2250 = vmatpush.bf16.msra.mxu0 0
      %2251 = vmatpush.bf16.msra.mxu0 0
      %2252 = vmatpush.bf16.msra.mxu0 0
      %2253 = vmatpush.bf16.msra.mxu0 0
      %2254 = vmatpush.bf16.msra.mxu0 0
      %2255 = vmatpush.bf16.msra.mxu0 %v1697
      %2256 = vmatmul.bf16.gmra.mxu0 %v2246
      %v2257 = vpop.f32.mrf.mxu0
      %v2258 = vadd.f32 0.0, %v2257
      %v2259 = vpop.f32.mrf.mxu0
      %2260 = vdwg.mxu0
      %v2261 = vpack.c.bf16 %v2258, %v2258
      %s2262 = scalar_lea.vmem %s7, 256
      %v2263 = vld [vmem:[%s2262] sm:$0xf]
      %v2264 = vld [vmem:[%s2262 + $0x4] sm:$0xf]
      %v2265 = vld [vmem:[%s2262 + $0x8] sm:$0xf]
      %v2266 = vld [vmem:[%s2262 + $0xc] sm:$0xf]
      %v2267 = vld [vmem:[%s2262 + $0x10] sm:$0xf]
      %v2268 = vld [vmem:[%s2262 + $0x14] sm:$0xf]
      %v2269 = vld [vmem:[%s2262 + $0x18] sm:$0xf]
      %v2270 = vld [vmem:[%s2262 + $0x1c] sm:$0xf]
      %v2279 = vunpack.c.l.b16 %v2263
      %v2280 = vunpack.c.l.b16 %v2264
      %v2281 = vunpack.c.l.b16 %v2265
      %v2282 = vunpack.c.l.b16 %v2266
      %v2283 = vunpack.c.l.b16 %v2267
      %v2284 = vunpack.c.l.b16 %v2268
      %v2285 = vunpack.c.l.b16 %v2269
      %v2286 = vunpack.c.l.b16 %v2270
      %v2287 = vpack.c.b16 %v2280, %v2279
      %v2288 = vpack.c.b16 %v2282, %v2281
      %v2289 = vpack.c.b16 %v2284, %v2283
      %v2290 = vpack.c.b16 %v2286, %v2285
      %v2296 = vsel %vm697, %v2261, 0
      %2298 = vmatpush.bf16.msra.mxu0 0
      %2299 = vmatpush.bf16.msra.mxu0 0
      %2300 = vmatpush.bf16.msra.mxu0 0
      %2301 = vmatpush.bf16.msra.mxu0 0
      %2302 = vmatpush.bf16.msra.mxu0 %v2290
      %2303 = vmatpush.bf16.msra.mxu0 %v2289
      %2304 = vmatpush.bf16.msra.mxu0 %v2288
      %2305 = vmatpush.bf16.msra.mxu0 %v2287
      %2306 = vmatmul.bf16.gmra.mxu0 %v2296
      %v2307 = vpop.f32.mrf.mxu0
      %v2308 = vadd.f32 0.0, %v2307
      %v2309 = vpop.f32.mrf.mxu0
      %2310 = vdwg.mxu0
      %v2311 = vadd.f32 %v2242, %v2308
      %v2312 = vld [vmem:[%s8] sm:$0x1]
      %v2313 = vadd.f32 %v2311, %v2312
      %v2314 = vmax.f32 %v2313, 0.0
      %v2315 = vpack.c.bf16 %v2314, %v2314
      %v2316 = vld [vmem:[%s9] sm:$0xff]
      %v2317 = vld [vmem:[%s9 + $0x8] sm:$0xff]
      %v2318 = vld [vmem:[%s9 + $0x10] sm:$0xff]
      %v2319 = vld [vmem:[%s9 + $0x18] sm:$0xff]
      %v2320 = vld [vmem:[%s9 + $0x20] sm:$0xff]
      %v2321 = vld [vmem:[%s9 + $0x28] sm:$0xff]
      %v2322 = vld [vmem:[%s9 + $0x30] sm:$0xff]
      %v2323 = vld [vmem:[%s9 + $0x38] sm:$0xff]
      %v2324 = vld [vmem:[%s9 + $0x40] sm:$0xff]
      %v2325 = vld [vmem:[%s9 + $0x48] sm:$0xff]
      %v2326 = vld [vmem:[%s9 + $0x50] sm:$0xff]
      %v2327 = vld [vmem:[%s9 + $0x58] sm:$0xff]
      %v2328 = vld [vmem:[%s9 + $0x60] sm:$0xff]
      %v2329 = vld [vmem:[%s9 + $0x68] sm:$0xff]
      %v2330 = vld [vmem:[%s9 + $0x70] sm:$0xff]
      %v2331 = vld [vmem:[%s9 + $0x78] sm:$0xff]
      %v2332 = vld [vmem:[%s10] sm:$0xf]
      %v2349 = vunpack.c.l.b16 %v2316
      %v2350 = vunpack.c.h.b16 %v2316
      %v2351 = vunpack.c.l.b16 %v2317
      %v2352 = vunpack.c.h.b16 %v2317
      %v2353 = vunpack.c.l.b16 %v2318
      %v2354 = vunpack.c.h.b16 %v2318
      %v2355 = vunpack.c.l.b16 %v2319
      %v2356 = vunpack.c.h.b16 %v2319
      %v2357 = vunpack.c.l.b16 %v2320
      %v2358 = vunpack.c.h.b16 %v2320
      %v2359 = vunpack.c.l.b16 %v2321
      %v2360 = vunpack.c.h.b16 %v2321
      %v2361 = vunpack.c.l.b16 %v2322
      %v2362 = vunpack.c.h.b16 %v2322
      %v2363 = vunpack.c.l.b16 %v2323
      %v2364 = vunpack.c.h.b16 %v2323
      %v2365 = vunpack.c.l.b16 %v2324
      %v2366 = vunpack.c.h.b16 %v2324
      %v2367 = vunpack.c.l.b16 %v2325
      %v2368 = vunpack.c.h.b16 %v2325
      %v2369 = vunpack.c.l.b16 %v2326
      %v2370 = vunpack.c.h.b16 %v2326
      %v2371 = vunpack.c.l.b16 %v2327
      %v2372 = vunpack.c.h.b16 %v2327
      %v2373 = vunpack.c.l.b16 %v2328
      %v2374 = vunpack.c.h.b16 %v2328
      %v2375 = vunpack.c.l.b16 %v2329
      %v2376 = vunpack.c.h.b16 %v2329
      %v2377 = vunpack.c.l.b16 %v2330
      %v2378 = vunpack.c.h.b16 %v2330
      %v2379 = vunpack.c.l.b16 %v2331
      %v2380 = vunpack.c.h.b16 %v2331
      %v2381 = vpack.c.b16 %v2353, %v2349
      %v2382 = vpack.c.b16 %v2354, %v2350
      %v2383 = vpack.c.b16 %v2355, %v2351
      %v2384 = vpack.c.b16 %v2356, %v2352
      %v2385 = vpack.c.b16 %v2361, %v2357
      %v2386 = vpack.c.b16 %v2362, %v2358
      %v2387 = vpack.c.b16 %v2363, %v2359
      %v2388 = vpack.c.b16 %v2364, %v2360
      %v2389 = vpack.c.b16 %v2369, %v2365
      %v2390 = vpack.c.b16 %v2370, %v2366
      %v2391 = vpack.c.b16 %v2371, %v2367
      %v2392 = vpack.c.b16 %v2372, %v2368
      %v2393 = vpack.c.b16 %v2377, %v2373
      %v2394 = vpack.c.b16 %v2378, %v2374
      %v2395 = vpack.c.b16 %v2379, %v2375
      %v2396 = vpack.c.b16 %v2380, %v2376
      %v2414 = vperm.slane %v2332, 0
      %v2415 = vperm.slane %v2332, 1
      %v2416 = vperm.slane %v2332, 2
      %v2417 = vperm.slane %v2332, 3
      %v2423 = vsel %vm697, %v2315, 0
      %2425 = vmatpush.bf16.msra.mxu0 0
      %2426 = vmatpush.bf16.msra.mxu0 0
      %2427 = vmatpush.bf16.msra.mxu0 0
      %2428 = vmatpush.bf16.msra.mxu0 0
      %2429 = vmatpush.bf16.msra.mxu0 %v2393
      %2430 = vmatpush.bf16.msra.mxu0 %v2389
      %2431 = vmatpush.bf16.msra.mxu0 %v2385
      %2432 = vmatpush.bf16.msra.mxu0 %v2381
      %2433 = vmatmul.bf16.gmra.mxu0 %v2423
      %v2434 = vpop.f32.mrf.mxu0
      %v2435 = vadd.f32 %v2414, %v2434
      %v2436 = vpop.f32.mrf.mxu0
      %2437 = vdwg.mxu0
      %2438 = vmatpush.bf16.msra.mxu0 0
      %2439 = vmatpush.bf16.msra.mxu0 0
      %2440 = vmatpush.bf16.msra.mxu0 0
      %2441 = vmatpush.bf16.msra.mxu0 0
      %2442 = vmatpush.bf16.msra.mxu0 %v2394
      %2443 = vmatpush.bf16.msra.mxu0 %v2390
      %2444 = vmatpush.bf16.msra.mxu0 %v2386
      %2445 = vmatpush.bf16.msra.mxu0 %v2382
      %2446 = vmatmul.bf16.gmra.mxu0 %v2423
      %v2447 = vpop.f32.mrf.mxu0
      %v2448 = vadd.f32 %v2415, %v2447
      %v2449 = vpop.f32.mrf.mxu0
      %2450 = vdwg.mxu0
      %2451 = vmatpush.bf16.msra.mxu0 0
      %2452 = vmatpush.bf16.msra.mxu0 0
      %2453 = vmatpush.bf16.msra.mxu0 0
      %2454 = vmatpush.bf16.msra.mxu0 0
      %2455 = vmatpush.bf16.msra.mxu0 %v2395
      %2456 = vmatpush.bf16.msra.mxu0 %v2391
      %2457 = vmatpush.bf16.msra.mxu0 %v2387
      %2458 = vmatpush.bf16.msra.mxu0 %v2383
      %2459 = vmatmul.bf16.gmra.mxu0 %v2423
      %v2460 = vpop.f32.mrf.mxu0
      %v2461 = vadd.f32 %v2416, %v2460
      %v2462 = vpop.f32.mrf.mxu0
      %2463 = vdwg.mxu0
      %2464 = vmatpush.bf16.msra.mxu0 0
      %2465 = vmatpush.bf16.msra.mxu0 0
      %2466 = vmatpush.bf16.msra.mxu0 0
      %2467 = vmatpush.bf16.msra.mxu0 0
      %2468 = vmatpush.bf16.msra.mxu0 %v2396
      %2469 = vmatpush.bf16.msra.mxu0 %v2392
      %2470 = vmatpush.bf16.msra.mxu0 %v2388
      %2471 = vmatpush.bf16.msra.mxu0 %v2384
      %2472 = vmatmul.bf16.gmra.mxu0 %v2423
      %v2473 = vpop.f32.mrf.mxu0
      %v2474 = vadd.f32 %v2417, %v2473
      %v2475 = vpop.f32.mrf.mxu0
      %2476 = vdwg.mxu0
      %v2477 = vmax.f32 %v2435, 0.0
      %v2478 = vmax.f32 %v2448, 0.0
      %v2479 = vmax.f32 %v2461, 0.0
      %v2480 = vmax.f32 %v2474, 0.0
      %v2481 = vpack.c.bf16 %v2477, %v2477
      %v2482 = vpack.c.bf16 %v2478, %v2478
      %v2483 = vpack.c.bf16 %v2479, %v2479
      %v2484 = vpack.c.bf16 %v2480, %v2480
      %v2485 = vld [vmem:[%s11] sm:$0xf]
      %v2486 = vld [vmem:[%s11 + $0x4] sm:$0xf]
      %v2487 = vld [vmem:[%s11 + $0x8] sm:$0xf]
      %v2488 = vld [vmem:[%s11 + $0xc] sm:$0xf]
      %v2489 = vld [vmem:[%s11 + $0x10] sm:$0xf]
      %v2490 = vld [vmem:[%s11 + $0x14] sm:$0xf]
      %v2491 = vld [vmem:[%s11 + $0x18] sm:$0xf]
      %v2492 = vld [vmem:[%s11 + $0x1c] sm:$0xf]
      %v2493 = vld [vmem:[%s11 + $0x20] sm:$0xf]
      %v2494 = vld [vmem:[%s11 + $0x24] sm:$0xf]
      %v2495 = vld [vmem:[%s11 + $0x28] sm:$0xf]
      %v2496 = vld [vmem:[%s11 + $0x2c] sm:$0xf]
      %v2497 = vld [vmem:[%s11 + $0x30] sm:$0xf]
      %v2498 = vld [vmem:[%s11 + $0x34] sm:$0xf]
      %v2499 = vld [vmem:[%s11 + $0x38] sm:$0xf]
      %v2500 = vld [vmem:[%s11 + $0x3c] sm:$0xf]
      %v2501 = vld [vmem:[%s11 + $0x40] sm:$0xf]
      %v2502 = vld [vmem:[%s11 + $0x44] sm:$0xf]
      %v2503 = vld [vmem:[%s11 + $0x48] sm:$0xf]
      %v2504 = vld [vmem:[%s11 + $0x4c] sm:$0xf]
      %v2505 = vld [vmem:[%s11 + $0x50] sm:$0xf]
      %v2506 = vld [vmem:[%s11 + $0x54] sm:$0xf]
      %v2507 = vld [vmem:[%s11 + $0x58] sm:$0xf]
      %v2508 = vld [vmem:[%s11 + $0x5c] sm:$0xf]
      %v2509 = vld [vmem:[%s11 + $0x60] sm:$0xf]
      %v2510 = vld [vmem:[%s11 + $0x64] sm:$0xf]
      %v2511 = vld [vmem:[%s11 + $0x68] sm:$0xf]
      %v2512 = vld [vmem:[%s11 + $0x6c] sm:$0xf]
      %v2513 = vld [vmem:[%s11 + $0x70] sm:$0xf]
      %v2514 = vld [vmem:[%s11 + $0x74] sm:$0xf]
      %v2515 = vld [vmem:[%s11 + $0x78] sm:$0xf]
      %v2516 = vld [vmem:[%s11 + $0x7c] sm:$0xf]
      %v2517 = vld [vmem:[%s11 + $0x80] sm:$0xf]
      %v2518 = vld [vmem:[%s11 + $0x84] sm:$0xf]
      %v2519 = vld [vmem:[%s11 + $0x88] sm:$0xf]
      %v2520 = vld [vmem:[%s11 + $0x8c] sm:$0xf]
      %v2521 = vld [vmem:[%s11 + $0x90] sm:$0xf]
      %v2522 = vld [vmem:[%s11 + $0x94] sm:$0xf]
      %v2523 = vld [vmem:[%s11 + $0x98] sm:$0xf]
      %v2524 = vld [vmem:[%s11 + $0x9c] sm:$0xf]
      %v2525 = vld [vmem:[%s11 + $0xa0] sm:$0xf]
      %v2526 = vld [vmem:[%s11 + $0xa4] sm:$0xf]
      %v2527 = vld [vmem:[%s11 + $0xa8] sm:$0xf]
      %v2528 = vld [vmem:[%s11 + $0xac] sm:$0xf]
      %v2529 = vld [vmem:[%s11 + $0xb0] sm:$0xf]
      %v2530 = vld [vmem:[%s11 + $0xb4] sm:$0xf]
      %v2531 = vld [vmem:[%s11 + $0xb8] sm:$0xf]
      %v2532 = vld [vmem:[%s11 + $0xbc] sm:$0xf]
      %v2533 = vld [vmem:[%s11 + $0xc0] sm:$0xf]
      %v2534 = vld [vmem:[%s11 + $0xc4] sm:$0xf]
      %v2535 = vld [vmem:[%s11 + $0xc8] sm:$0xf]
      %v2536 = vld [vmem:[%s11 + $0xcc] sm:$0xf]
      %v2537 = vld [vmem:[%s11 + $0xd0] sm:$0xf]
      %v2538 = vld [vmem:[%s11 + $0xd4] sm:$0xf]
      %v2539 = vld [vmem:[%s11 + $0xd8] sm:$0xf]
      %v2540 = vld [vmem:[%s11 + $0xdc] sm:$0xf]
      %v2541 = vld [vmem:[%s11 + $0xe0] sm:$0xf]
      %v2542 = vld [vmem:[%s11 + $0xe4] sm:$0xf]
      %v2543 = vld [vmem:[%s11 + $0xe8] sm:$0xf]
      %v2544 = vld [vmem:[%s11 + $0xec] sm:$0xf]
      %v2545 = vld [vmem:[%s11 + $0xf0] sm:$0xf]
      %v2546 = vld [vmem:[%s11 + $0xf4] sm:$0xf]
      %v2547 = vld [vmem:[%s11 + $0xf8] sm:$0xf]
      %v2548 = vld [vmem:[%s11 + $0xfc] sm:$0xf]
      %v2549 = vld [vmem:[%s12] sm:$0x1]
      %v2614 = vunpack.c.l.b16 %v2485
      %v2615 = vunpack.c.l.b16 %v2486
      %v2616 = vunpack.c.l.b16 %v2487
      %v2617 = vunpack.c.l.b16 %v2488
      %v2618 = vunpack.c.l.b16 %v2489
      %v2619 = vunpack.c.l.b16 %v2490
      %v2620 = vunpack.c.l.b16 %v2491
      %v2621 = vunpack.c.l.b16 %v2492
      %v2622 = vunpack.c.l.b16 %v2493
      %v2623 = vunpack.c.l.b16 %v2494
      %v2624 = vunpack.c.l.b16 %v2495
      %v2625 = vunpack.c.l.b16 %v2496
      %v2626 = vunpack.c.l.b16 %v2497
      %v2627 = vunpack.c.l.b16 %v2498
      %v2628 = vunpack.c.l.b16 %v2499
      %v2629 = vunpack.c.l.b16 %v2500
      %v2630 = vunpack.c.l.b16 %v2501
      %v2631 = vunpack.c.l.b16 %v2502
      %v2632 = vunpack.c.l.b16 %v2503
      %v2633 = vunpack.c.l.b16 %v2504
      %v2634 = vunpack.c.l.b16 %v2505
      %v2635 = vunpack.c.l.b16 %v2506
      %v2636 = vunpack.c.l.b16 %v2507
      %v2637 = vunpack.c.l.b16 %v2508
      %v2638 = vunpack.c.l.b16 %v2509
      %v2639 = vunpack.c.l.b16 %v2510
      %v2640 = vunpack.c.l.b16 %v2511
      %v2641 = vunpack.c.l.b16 %v2512
      %v2642 = vunpack.c.l.b16 %v2513
      %v2643 = vunpack.c.l.b16 %v2514
      %v2644 = vunpack.c.l.b16 %v2515
      %v2645 = vunpack.c.l.b16 %v2516
      %v2646 = vunpack.c.l.b16 %v2517
      %v2647 = vunpack.c.l.b16 %v2518
      %v2648 = vunpack.c.l.b16 %v2519
      %v2649 = vunpack.c.l.b16 %v2520
      %v2650 = vunpack.c.l.b16 %v2521
      %v2651 = vunpack.c.l.b16 %v2522
      %v2652 = vunpack.c.l.b16 %v2523
      %v2653 = vunpack.c.l.b16 %v2524
      %v2654 = vunpack.c.l.b16 %v2525
      %v2655 = vunpack.c.l.b16 %v2526
      %v2656 = vunpack.c.l.b16 %v2527
      %v2657 = vunpack.c.l.b16 %v2528
      %v2658 = vunpack.c.l.b16 %v2529
      %v2659 = vunpack.c.l.b16 %v2530
      %v2660 = vunpack.c.l.b16 %v2531
      %v2661 = vunpack.c.l.b16 %v2532
      %v2662 = vunpack.c.l.b16 %v2533
      %v2663 = vunpack.c.l.b16 %v2534
      %v2664 = vunpack.c.l.b16 %v2535
      %v2665 = vunpack.c.l.b16 %v2536
      %v2666 = vunpack.c.l.b16 %v2537
      %v2667 = vunpack.c.l.b16 %v2538
      %v2668 = vunpack.c.l.b16 %v2539
      %v2669 = vunpack.c.l.b16 %v2540
      %v2670 = vunpack.c.l.b16 %v2541
      %v2671 = vunpack.c.l.b16 %v2542
      %v2672 = vunpack.c.l.b16 %v2543
      %v2673 = vunpack.c.l.b16 %v2544
      %v2674 = vunpack.c.l.b16 %v2545
      %v2675 = vunpack.c.l.b16 %v2546
      %v2676 = vunpack.c.l.b16 %v2547
      %v2677 = vunpack.c.l.b16 %v2548
      %v2678 = vpack.c.b16 %v2615, %v2614
      %v2679 = vpack.c.b16 %v2617, %v2616
      %v2680 = vpack.c.b16 %v2619, %v2618
      %v2681 = vpack.c.b16 %v2621, %v2620
      %v2682 = vpack.c.b16 %v2623, %v2622
      %v2683 = vpack.c.b16 %v2625, %v2624
      %v2684 = vpack.c.b16 %v2627, %v2626
      %v2685 = vpack.c.b16 %v2629, %v2628
      %v2686 = vpack.c.b16 %v2631, %v2630
      %v2687 = vpack.c.b16 %v2633, %v2632
      %v2688 = vpack.c.b16 %v2635, %v2634
      %v2689 = vpack.c.b16 %v2637, %v2636
      %v2690 = vpack.c.b16 %v2639, %v2638
      %v2691 = vpack.c.b16 %v2641, %v2640
      %v2692 = vpack.c.b16 %v2643, %v2642
      %v2693 = vpack.c.b16 %v2645, %v2644
      %v2694 = vpack.c.b16 %v2647, %v2646
      %v2695 = vpack.c.b16 %v2649, %v2648
      %v2696 = vpack.c.b16 %v2651, %v2650
      %v2697 = vpack.c.b16 %v2653, %v2652
      %v2698 = vpack.c.b16 %v2655, %v2654
      %v2699 = vpack.c.b16 %v2657, %v2656
      %v2700 = vpack.c.b16 %v2659, %v2658
      %v2701 = vpack.c.b16 %v2661, %v2660
      %v2702 = vpack.c.b16 %v2663, %v2662
      %v2703 = vpack.c.b16 %v2665, %v2664
      %v2704 = vpack.c.b16 %v2667, %v2666
      %v2705 = vpack.c.b16 %v2669, %v2668
      %v2706 = vpack.c.b16 %v2671, %v2670
      %v2707 = vpack.c.b16 %v2673, %v2672
      %v2708 = vpack.c.b16 %v2675, %v2674
      %v2709 = vpack.c.b16 %v2677, %v2676
      %2742 = vmatpush.bf16.msra.mxu0 %v2685
      %2743 = vmatpush.bf16.msra.mxu0 %v2684
      %2744 = vmatpush.bf16.msra.mxu0 %v2683
      %2745 = vmatpush.bf16.msra.mxu0 %v2682
      %2746 = vmatpush.bf16.msra.mxu0 %v2681
      %2747 = vmatpush.bf16.msra.mxu0 %v2680
      %2748 = vmatpush.bf16.msra.mxu0 %v2679
      %2749 = vmatpush.bf16.msra.mxu0 %v2678
      %2750 = vmatmul.bf16.gmra.mxu0 %v2481
      %v2751 = vpop.f32.mrf.mxu0
      %v2752 = vadd.f32 %v2549, %v2751
      %v2753 = vpop.f32.mrf.mxu0
      %2754 = vdwg.mxu0
      %2755 = vmatpush.bf16.msra.mxu0 %v2693
      %2756 = vmatpush.bf16.msra.mxu0 %v2692
      %2757 = vmatpush.bf16.msra.mxu0 %v2691
      %2758 = vmatpush.bf16.msra.mxu0 %v2690
      %2759 = vmatpush.bf16.msra.mxu0 %v2689
      %2760 = vmatpush.bf16.msra.mxu0 %v2688
      %2761 = vmatpush.bf16.msra.mxu0 %v2687
      %2762 = vmatpush.bf16.msra.mxu0 %v2686
      %2763 = vmatmul.bf16.gmra.mxu0 %v2482
      %v2764 = vpop.f32.mrf.mxu0
      %v2765 = vadd.f32 %v2752, %v2764
      %v2766 = vpop.f32.mrf.mxu0
      %2767 = vdwg.mxu0
      %2768 = vmatpush.bf16.msra.mxu0 %v2701
      %2769 = vmatpush.bf16.msra.mxu0 %v2700
      %2770 = vmatpush.bf16.msra.mxu0 %v2699
      %2771 = vmatpush.bf16.msra.mxu0 %v2698
      %2772 = vmatpush.bf16.msra.mxu0 %v2697
      %2773 = vmatpush.bf16.msra.mxu0 %v2696
      %2774 = vmatpush.bf16.msra.mxu0 %v2695
      %2775 = vmatpush.bf16.msra.mxu0 %v2694
      %2776 = vmatmul.bf16.gmra.mxu0 %v2483
      %v2777 = vpop.f32.mrf.mxu0
      %v2778 = vadd.f32 %v2765, %v2777
      %v2779 = vpop.f32.mrf.mxu0
      %2780 = vdwg.mxu0
      %2781 = vmatpush.bf16.msra.mxu0 %v2709
      %2782 = vmatpush.bf16.msra.mxu0 %v2708
      %2783 = vmatpush.bf16.msra.mxu0 %v2707
      %2784 = vmatpush.bf16.msra.mxu0 %v2706
      %2785 = vmatpush.bf16.msra.mxu0 %v2705
      %2786 = vmatpush.bf16.msra.mxu0 %v2704
      %2787 = vmatpush.bf16.msra.mxu0 %v2703
      %2788 = vmatpush.bf16.msra.mxu0 %v2702
      %2789 = vmatmul.bf16.gmra.mxu0 %v2484
      %v2790 = vpop.f32.mrf.mxu0
      %v2791 = vadd.f32 %v2778, %v2790
      %v2792 = vpop.f32.mrf.mxu0
      %2793 = vdwg.mxu0
      %v2794 = vperm.slane %v2791, 0
      %2795 = vst [vmem:[%s438] sm:$0xff] %v2794
      %p2796 = scmp.lt.s32.totalorder %s24, 1
      %s2797 = scalar_select %p2796, %s24, 1
      %s2798 = smul.addr %s2797, 8
      %s2799 = scalar_lea.vmem %s13, %s2798
      // Predicated region
      $region73: #{dqnbn_forward.1} parent=71 // pred_check
        %p2800 = pneg %p320
      $region74: #{dqnbn_forward.1} parent=71 // pred_check_branch
        %2802 = sbr.rel (%p2800) target = $region76
      $region75: #{dqnbn_forward.1} parent=71 // pred_region
        _
      $region76: #{dqnbn_forward.1} parent=71 // pred_fallthru
        _
    $region72: #{dqnbn_forward.1} parent=5 // pred_fallthru
      _
    %p2803 = scmp.le.s32.totalorder 2, %s19
    // Predicated region
    $region77: #{dqnbn_forward.1} parent=5 // pred_check
      %p2804 = pneg %p2803
    $region78: #{dqnbn_forward.1} parent=5 // pred_check_branch
      %2806 = sbr.rel (%p2804) target = $region80
    $region79: #{dqnbn_forward.1} parent=5 // pred_region
      %s2807 = ssub.s32 %s19, 2
      // Predicated region
      $region81: #{dqnbn_forward.1} parent=79 // pred_check
        %p2808 = pneg %p326
      $region82: #{dqnbn_forward.1} parent=79 // pred_check_branch
        %2810 = sbr.rel (%p2808) target = $region84
      $region83: #{dqnbn_forward.1} parent=79 // pred_region
        %p2811 = scmp.lt.s32.totalorder %s25, 1
        %s2812 = scalar_select %p2811, %s25, 1
        %s2813 = smul.addr %s2812, 8
        %s2814 = scalar_lea.vmem %s13, %s2813
      $region84: #{dqnbn_forward.1} parent=79 // pred_fallthru
        _
    $region80: #{dqnbn_forward.1} parent=5 // pred_fallthru
      _
  $region6: #{dqnbn_forward.1} parent=0 // loop_footer
    %s23 = sadd.s32 1, %s19
  $region7: #{dqnbn_forward.1} parent=0 // loop_footer_branch
    %18 = sbr.rel target = $region3
  $region8: #{dqnbn_forward.1} parent=0 // loop_exit
    _

</llo_original>
